<compile_context>
chip_gen: v5e
topology: v5e:2x2
jax: 0.10.0
libtpu: 0.0.40
codegen_flags: <defaults>
</compile_context>

<pallas_src>
import functools
import math

import jax
import jax.numpy as jnp
import numpy as np
from jax.experimental import pallas as pl
from jax.experimental.pallas import tpu as pltpu


# ---------------------------------------------------------------------------
# helpers
# ---------------------------------------------------------------------------
def _pick_tile(total, pref):
    """Largest power-of-two-ish tile <= pref that divides total (>= 8)."""
    t = min(pref, total)
    while t >= 8:
        if total % t == 0:
            return t
        t //= 2
    return total


# ---------------------------------------------------------------------------
# generic linear kernel:  y = x @ W + b     (bf16 operands, f32 accumulation)
# ---------------------------------------------------------------------------
def _linear_kernel(x_ref, w_ref, b_ref, o_ref):
    acc = jnp.dot(x_ref[...], w_ref[...], preferred_element_type=jnp.float32)
    o_ref[...] = (acc + b_ref[...]).astype(o_ref.dtype)


def _linear(x2d, w, b, out_dtype, tm):
    """x2d: (M, K) bf16, w: (K, N) bf16, b: (1, N) f32 -> (M, N) out_dtype."""
    M, K = x2d.shape
    N = w.shape[1]
    assert M % tm == 0
    # TODO(synk): for large E, add a K-contraction grid axis + f32 VMEM
    # accumulator (or pipeline_mode=pl.Buffered(1) on the weight spec) so the
    # resident (K, N) weight block fits v7x's 64 MiB VMEM budget.
    return pl.pallas_call(
        _linear_kernel,
        out_shape=jax.ShapeDtypeStruct((M, N), out_dtype),
        grid_spec=pltpu.PrefetchScalarGridSpec(
            num_scalar_prefetch=0,
            grid=(M // tm,),
            in_specs=[
                pl.BlockSpec((tm, K), lambda i: (i, 0)),   # activations
                pl.BlockSpec((K, N), lambda i: (0, 0)),    # weight (resident)
                pl.BlockSpec((1, N), lambda i: (0, 0)),    # bias   (resident)
            ],
            out_specs=pl.BlockSpec((tm, N), lambda i: (i, 0)),
        ),
        compiler_params=pltpu.CompilerParams(
            dimension_semantics=("parallel",)),
    )(x2d, w, b)


# ---------------------------------------------------------------------------
# causal flash attention, triangular (qi, ki) grid, asymmetric tiles
# ---------------------------------------------------------------------------
def _flash_kernel(qi_tbl, ki_tbl, q_ref, k_ref, v_ref, o_ref,
                  m_sc, l_sc, acc_sc, *, tq, tk):
    t = pl.program_id(2)
    qi = qi_tbl[t]
    ki = ki_tbl[t]
    q_start = qi * tq
    k_start = ki * tk

    @pl.when(ki == 0)
    def _init():
        m_sc[...] = jnp.full_like(m_sc, -jnp.inf)
        l_sc[...] = jnp.zeros_like(l_sc)
        acc_sc[...] = jnp.zeros_like(acc_sc)

    def _scores():
        # q already carries scale*log2(e); contract over the padded head dim
        # (padded q/k columns are zero so they contribute nothing).
        return jax.lax.dot_general(
            q_ref[0], k_ref[0], (((1,), (1,)), ((), ())),
            preferred_element_type=jnp.float32)            # (tq, tk) f32

    def _update(s):
        m_prev = m_sc[...]
        m_new = jnp.maximum(m_prev, s.max(axis=-1, keepdims=True))
        alpha = jnp.exp2(m_prev - m_new)                   # exp2: ln2 mul folded
        p = jnp.exp2(s - m_new)                            # f32 softmax path
        l_sc[...] = alpha * l_sc[...] + p.sum(axis=-1, keepdims=True)
        acc_sc[...] = alpha * acc_sc[...] + jax.lax.dot_general(
            p.astype(v_ref.dtype), v_ref[0], (((1,), (0,)), ((), ())),
            preferred_element_type=jnp.float32)
        m_sc[...] = m_new

    # Fully-masked (upper-triangular) blocks never appear in the grid.
    # Blocks overlapping the diagonal get a mask built from GLOBAL offsets
    # (correct for tq != tk); fully-visible blocks skip the mask work.
    needs_mask = (k_start + tk - 1) > q_start

    @pl.when(needs_mask)
    def _partial_block():
        s = _scores()
        row = jax.lax.broadcasted_iota(jnp.int32, s.shape, 0) + q_start
        col = jax.lax.broadcasted_iota(jnp.int32, s.shape, 1) + k_start
        _update(jnp.where(col <= row, s, -1e30))

    @pl.when(jnp.logical_not(needs_mask))
    def _full_block():
        _update(_scores())

    # Last kv block of this q row -> normalize and emit the output tile.
    @pl.when(k_start + tk >= q_start + tq)
    def _finalize():
        inv_l = pl.reciprocal(l_sc[...], approx=True)      # EUP slot, ~free
        o_ref[0] = (acc_sc[...] * inv_l).astype(o_ref.dtype)


def _flash_attention(qkv, B, S, H, Dp, tq, tk):
    """qkv: (B, S, 3*H*Dp) bf16, head-blocked & zero-padded, q pre-scaled.
    Returns (B, S, H*Dp) bf16 (padded head-dim columns are zero)."""
    n_q = S // tq
    # lower-triangular (qi, ki) pairs only -> ~2x fewer steps / K,V DMAs
    pairs_q, pairs_k = [], []
    for qi in range(n_q):
        last_ki = ((qi + 1) * tq - 1) // tk
        for ki in range(last_ki + 1):
            pairs_q.append(qi)
            pairs_k.append(ki)
    n_pairs = len(pairs_q)
    qi_of = jnp.asarray(pairs_q, dtype=jnp.int32)
    ki_of = jnp.asarray(pairs_k, dtype=jnp.int32)

    elem = 2  # bf16
    cost = pl.CostEstimate(
        flops=4 * B * H * n_pairs * tq * tk * Dp,              # qk^T + p@v
        transcendentals=B * H * n_pairs * tq * tk,             # exp2
        bytes_accessed=(B * H * n_pairs * 2 * tk * Dp * elem   # K/V streams
                        + 2 * B * S * H * Dp * elem))          # Q read + O write

    kernel = functools.partial(_flash_kernel, tq=tq, tk=tk)
    return pl.pallas_call(
        kernel,
        out_shape=jax.ShapeDtypeStruct((B, S, H * Dp), jnp.bfloat16),
        grid_spec=pltpu.PrefetchScalarGridSpec(
            num_scalar_prefetch=2,
            grid=(B, H, n_pairs),
            in_specs=[
                # q / k / v column blocks read straight from the fused qkv
                # buffer: column block index = part*H + h  (Dp-wide, lane-dense)
                pl.BlockSpec((1, tq, Dp),
                             lambda b, h, t, qt, kt: (b, qt[t], h)),
                pl.BlockSpec((1, tk, Dp),
                             lambda b, h, t, qt, kt: (b, kt[t], H + h)),
                pl.BlockSpec((1, tk, Dp),
                             lambda b, h, t, qt, kt: (b, kt[t], 2 * H + h)),
            ],
            out_specs=pl.BlockSpec((1, tq, Dp),
                                   lambda b, h, t, qt, kt: (b, qt[t], h)),
            scratch_shapes=[
                pltpu.VMEM((tq, 1), jnp.float32),    # running max
                pltpu.VMEM((tq, 1), jnp.float32),    # running sum
                pltpu.VMEM((tq, Dp), jnp.float32),   # output accumulator
            ],
        ),
        compiler_params=pltpu.CompilerParams(
            dimension_semantics=("parallel", "parallel", "arbitrary")),
        cost_estimate=cost,
    )(qi_of, ki_of, qkv, qkv, qkv)


# ---------------------------------------------------------------------------
# top-level wrapper (matches the PyTorch module's forward)
# ---------------------------------------------------------------------------
def multi_head_self_attention(x, params, num_heads, *, block_q=256,
                              block_kv=128, block_rows=256):
    """x: (B, S, E) f32.  params: wq/wk/wv/wo (E, E) in (in, out) layout,
    bq/bk/bv/bo (E,)."""
    B, S, E = x.shape
    assert E % num_heads == 0
    H = num_heads
    Dh = E // H
    Dp = 128 * ((Dh + 127) // 128)            # lane-dense padded head dim
    # softmax scale with log2(e) folded in so the kernel can use exp2
    scale = (1.0 / math.sqrt(Dh)) * 1.4426950408889634

    def pad_heads(w, b, s=1.0):
        w = (w * s).reshape(E, H, Dh)
        b = (b * s).reshape(H, Dh)
        wp = jnp.zeros((E, H, Dp), jnp.float32).at[:, :, :Dh].set(w)
        bp = jnp.zeros((H, Dp), jnp.float32).at[:, :Dh].set(b)
        return wp.reshape(E, H * Dp), bp.reshape(H * Dp)

    wq_p, bq_p = pad_heads(params["wq"], params["bq"], scale)
    wk_p, bk_p = pad_heads(params["wk"], params["bk"])
    wv_p, bv_p = pad_heads(params["wv"], params["bv"])
    w_qkv = jnp.concatenate([wq_p, wk_p, wv_p], axis=1).astype(jnp.bfloat16)
    b_qkv = jnp.concatenate([bq_p, bk_p, bv_p]).reshape(1, 3 * H * Dp)
    b_qkv = b_qkv.astype(jnp.float32)

    wo = params["wo"].reshape(H, Dh, E)
    w_o = (jnp.zeros((H, Dp, E), jnp.float32).at[:, :Dh, :].set(wo)
           .reshape(H * Dp, E).astype(jnp.bfloat16))
    b_o = params["bo"].reshape(1, E).astype(jnp.float32)

    tm = _pick_tile(B * S, block_rows)         # >=2 row blocks here (megacore)
    tq = _pick_tile(S, block_q)
    tk = _pick_tile(S, min(block_kv, tq))

    # 1) fused QKV projection (padded head layout, scale folded into Q).
    x2d = x.reshape(B * S, E).astype(jnp.bfloat16)
    qkv = _linear(x2d, w_qkv, b_qkv, jnp.bfloat16, tm)        # (B*S, 3*H*Dp)
    qkv = qkv.reshape(B, S, 3 * H * Dp)                       # contiguous view

    # 2) causal flash attention over the triangular grid.
    attn = _flash_attention(qkv, B, S, H, Dp, tq, tk)         # (B, S, H*Dp)

    # 3) output projection straight from the head-blocked layout (no transpose).
    out = _linear(attn.reshape(B * S, H * Dp), w_o, b_o, x.dtype, tm)
    return out.reshape(B, S, E)


# ---------------------------------------------------------------------------
# pure-JAX f32 reference (mirrors the PyTorch forward) for validation
# ---------------------------------------------------------------------------
def _reference(x, params, num_heads):
    B, S, E = x.shape
    Dh = E // num_heads
    scale = 1.0 / math.sqrt(Dh)

    def lin(a, w, b):
        return a @ w + b

    q = lin(x, params["wq"], params["bq"]).reshape(B, S, num_heads, Dh).transpose(0, 2, 1, 3)
    k = lin(x, params["wk"], params["bk"]).reshape(B, S, num_heads, Dh).transpose(0, 2, 1, 3)
    v = lin(x, params["wv"], params["bv"]).reshape(B, S, num_heads, Dh).transpose(0, 2, 1, 3)
    scores = jnp.einsum("bhqd,bhkd->bhqk", q, k) * scale
    mask = jnp.tril(jnp.ones((S, S), dtype=bool))[None, None]
    scores = jnp.where(mask, scores, -jnp.inf)
    w = jax.nn.softmax(scores, axis=-1)
    out = jnp.einsum("bhqk,bhkd->bhqd", w, v).transpose(0, 2, 1, 3).reshape(B, S, E)
    return lin(out, params["wo"], params["bo"])


def init_params(key, embed_dim):
    """nn.Linear-style init; weights stored pre-transposed as (in, out)."""
    keys = jax.random.split(key, 8)
    bound = 1.0 / math.sqrt(embed_dim)

    def w(k):
        return jax.random.uniform(k, (embed_dim, embed_dim), jnp.float32, -bound, bound)

    def b(k):
        return jax.random.uniform(k, (embed_dim,), jnp.float32, -bound, bound)

    return {
        "wq": w(keys[0]), "bq": b(keys[1]),
        "wk": w(keys[2]), "bk": b(keys[3]),
        "wv": w(keys[4]), "bv": b(keys[5]),
        "wo": w(keys[6]), "bo": b(keys[7]),
    }


if __name__ == "__main__":
    # Small shapes consistent with the module (embedding_dim=384, num_heads=4).
    B, S, E, H = 2, 256, 384, 4

    key = jax.random.PRNGKey(0)
    kx, kp = jax.random.split(key)
    x = jax.random.normal(kx, (B, S, E), dtype=jnp.float32)
    params = init_params(kp, E)

    y = multi_head_self_attention(x, params, num_heads=H)
    y = jax.block_until_ready(y)

    y_ref = _reference(x, params, num_heads=H)
    # bf16 operands through three MXU stages vs a pure-f32 reference.
    np.testing.assert_allclose(np.asarray(y), np.asarray(y_ref),
                               rtol=5e-2, atol=5e-2)

    print("KERNEL_OK")
</pallas_src>

<mosaic_0001>
module attributes {stable_mosaic.version = 11 : i64} {
  func.func @_linear_kernel(%arg0: i32, %arg1: memref<256x384xbf16, #tpu.memory_space<vmem>>, %arg2: memref<384x1536xbf16, #tpu.memory_space<vmem>>, %arg3: memref<1x1536xf32, #tpu.memory_space<vmem>>, %arg4: memref<256x1536xbf16, #tpu.memory_space<vmem>>) attributes {dimension_semantics = [#tpu.dimension_semantics<parallel>], iteration_bounds = array<i64: 2>, scalar_prefetch = 0 : i64, scratch_operands = 0 : i64, tpu.core_type = #tpu.core_type<tc>, window_params = [{transform_indices = @transform_0, window_bounds = array<i64: 256, 384>}, {pipeline_mode = #tpu.pipeline_mode<synchronous>, transform_indices = @transform_1, window_bounds = array<i64: 384, 1536>}, {pipeline_mode = #tpu.pipeline_mode<synchronous>, transform_indices = @transform_2, window_bounds = array<i64: 1, 1536>}, {transform_indices = @transform_3, window_bounds = array<i64: 256, 1536>}]} {
    %c0 = arith.constant 0 : index
    %c0_0 = arith.constant 0 : index
    %0 = vector.load %arg1[%c0, %c0_0] : memref<256x384xbf16, #tpu.memory_space<vmem>>, vector<256x384xbf16>
    %c0_1 = arith.constant 0 : index
    %c0_2 = arith.constant 0 : index
    %1 = vector.load %arg2[%c0_1, %c0_2] : memref<384x1536xbf16, #tpu.memory_space<vmem>>, vector<384x1536xbf16>
    %cst = arith.constant dense<0.000000e+00> : vector<256x1536xf32>
    %2 = tpu.matmul %0, %1, %cst {dimension_numbers = #tpu.dot_dimension_numbers<[1], [0], [0], [1], [0, 0, 1, 1], [], []>} : vector<256x384xbf16>, vector<384x1536xbf16>, vector<256x1536xf32> -> vector<256x1536xf32>
    %c0_3 = arith.constant 0 : index
    %c0_4 = arith.constant 0 : index
    %3 = vector.load %arg3[%c0_3, %c0_4] : memref<1x1536xf32, #tpu.memory_space<vmem>>, vector<1x1536xf32>
    %4 = vector.broadcast %3 : vector<1x1536xf32> to vector<256x1536xf32>
    %5 = arith.addf %2, %4 : vector<256x1536xf32>
    %6 = arith.truncf %5 : vector<256x1536xf32> to vector<256x1536xbf16>
    %c0_5 = arith.constant 0 : index
    %c0_6 = arith.constant 0 : index
    %7 = vector.load %arg4[%c0_5, %c0_6] : memref<256x1536xbf16, #tpu.memory_space<vmem>>, vector<256x1536xbf16>
    tpu.vector_store %arg4[%c0_5, %c0_6], %6 {strides = array<i32>} : memref<256x1536xbf16, #tpu.memory_space<vmem>>, vector<256x1536xbf16>,
    return
  }
  func.func @transform_0(%arg0: i32) -> (i32, i32) {
    %c0_i32 = arith.constant 0 : i32
    %c0_i32_0 = arith.constant 0 : i32
    return %arg0, %c0_i32 : i32, i32
  }
  func.func @transform_1(%arg0: i32) -> (i32, i32) {
    %c0_i32 = arith.constant 0 : i32
    %c0_i32_0 = arith.constant 0 : i32
    %c0_i32_1 = arith.constant 0 : i32
    return %c0_i32, %c0_i32_0 : i32, i32
  }
  func.func @transform_2(%arg0: i32) -> (i32, i32) {
    %c0_i32 = arith.constant 0 : i32
    %c0_i32_0 = arith.constant 0 : i32
    %c0_i32_1 = arith.constant 0 : i32
    return %c0_i32, %c0_i32_0 : i32, i32
  }
  func.func @transform_3(%arg0: i32) -> (i32, i32) {
    %c0_i32 = arith.constant 0 : i32
    %c0_i32_0 = arith.constant 0 : i32
    return %arg0, %c0_i32 : i32, i32
  }
}

</mosaic_0001>

<llo_original>
// kernel: tpu_custom_call.1
$region0: #{tpu_custom_call.1}
  #allocation0 [shape = 'u32[]', space=smem, size = 0x4, offset = 0x4, fixed_abs, tag = 'smem constant byte address 0x4 - core index']
  #allocation1 [shape = 'u32[72,128]{1,0:T(1,128)}', space=vmem, size = 0x9000, scoped, tag = 'internal scratch']
  %s0 = inlined_call_operand.hbm [shape: bf16[512,384], index: 0, kind: input, shape index: {}]
  %s1 = inlined_call_operand.hbm [shape: bf16[384,1536], index: 1, kind: input, shape index: {}]
  %s2 = inlined_call_operand.hbm [shape: f32[1,1536], index: 2, kind: input, shape index: {}]
  %s3 = inlined_call_operand.hbm [shape: bf16[512,1536], index: 3, kind: output, shape index: {}]
  %s4 = sld [smem:[#allocation0]]
  $region57: #{tpu_custom_call.1} parent=0
    _
  %s6 = ssub.s32 1, %s4
  %s7 = scalar_select 0, %s6, %s4
  $region1: #{tpu_custom_call.1} parent=0
    #allocation2 [shape = 'u8[393216]{0}', space=vmem, size = 0x60000, scoped, tag = 'input window, operand 0']
    #allocation3 [shape = 's32[2]{0}', space=sflag, size = 0x8, scoped, tag = 'scoped memory for tpu_custom_call.1']
    #allocation4 [shape = 's32[2]{0}', space=sflag, size = 0x8, scoped, tag = 'scoped memory for tpu_custom_call.1']
    #allocation5 [shape = 'u8[1179648]{0}', space=vmem, size = 0x120000, scoped, tag = 'input window, operand 1, single buffered']
    #allocation6 [shape = 's32[1]{0}', space=sflag, size = 0x4, scoped, tag = 'scoped memory for tpu_custom_call.1']
    #allocation7 [shape = 'u8[6144]{0}', space=vmem, size = 0x1800, scoped, tag = 'input window, operand 2, single buffered']
    #allocation8 [shape = 'u8[1572864]{0}', space=vmem, size = 0x180000, scoped, tag = 'output window, operand 0']
    %8 = vsyncpa [#allocation3], 0
    %s9 = scalar_lea.sflag [#allocation3], 1
    %10 = vsyncpa %s9, 0
    %11 = vsyncpa [#allocation6], 0
    %12 = vsyncpa [#allocation4], 0
    %s13 = scalar_lea.sflag [#allocation4], 1
    %14 = vsyncpa %s13, 0
    loop: start=0, step=1, limit=4
    $region2: #{tpu_custom_call.1} parent=1 // loop_pre_header
      _
    $region3: #{tpu_custom_call.1} parent=1 // loop_header
      %s16 = sphi 0, %s20
      %p17 = scmp.ge.s32.totalorder %s16, 4
      %s26 = sphi 0, %s28
      %s29 = sphi 0, %s26
      %s30 = sphi 0, %s29
      %s46 = sphi 0, %s30
      %s50 = sphi 0, %s50
      %s52 = sphi 0, %s50
      %s53 = sphi 0, %s52
      %s67 = sphi 0, %s53
      %s71 = sphi 0, %s71
      %s73 = sphi 0, %s71
      %s74 = sphi 0, %s73
      %s88 = sphi 0, %s74
      %s94 = sphi 0, %s96
      %s97 = sphi 0, %s94
      %s98 = sphi 0, %s97
      %s114 = sphi 0, %s98
    $region4: #{tpu_custom_call.1} parent=1 // loop_header_branch
      %19 = sbr.rel (%p17) target = $region8
    $region5: #{tpu_custom_call.1} parent=1 // loop_body
      %s21 = ssub.s32 %s16, 1
      %s22 = ssub.s32 %s16, 2
      %s23 = sadd.s32 %s16, 1
      %s24 = ssub.s32 %s16, %s23
      %p25 = scmp.eq.s32.totalorder %s24, 0
      %s27 = sadd.s32 %s26, 1
      %s28 = scalar_select %p25, %s26, %s27
      %p31 = pneg %p25
      %p32 = scmp.eq.s32.totalorder %s16, 1
      %p33 = por %p31, %p32
      %p34 = scmp.ne.s32.totalorder %s26, %s29
      %p35 = scmp.eq.s32.totalorder %s16, 0
      %p36 = por %p34, %p35
      %p37 = scmp.ne.s32.totalorder %s26, %s29
      %p38 = scmp.eq.s32.totalorder %s21, 1
      %p39 = por %p37, %p38
      %p40 = scmp.ne.s32.totalorder %s29, %s30
      %p41 = scmp.eq.s32.totalorder %s21, 0
      %p42 = por %p40, %p41
      %p43 = scmp.ne.s32.totalorder %s29, %s30
      %p44 = scmp.eq.s32.totalorder %s22, 1
      %p45 = por %p43, %p44
      %p47 = scmp.ne.s32.totalorder %s30, %s46
      %p48 = scmp.eq.s32.totalorder %s22, 0
      %p49 = por %p47, %p48
      %s51 = sadd.s32 %s50, 1
      %p54 = scmp.eq.s32.totalorder %s16, 1
      %p55 = scmp.ne.s32.totalorder %s50, %s52
      %p56 = scmp.eq.s32.totalorder %s16, 0
      %p57 = por %p55, %p56
      %p58 = scmp.ne.s32.totalorder %s50, %s52
      %p59 = scmp.eq.s32.totalorder %s21, 1
      %p60 = por %p58, %p59
      %p61 = scmp.ne.s32.totalorder %s52, %s53
      %p62 = scmp.eq.s32.totalorder %s21, 0
      %p63 = por %p61, %p62
      %p64 = scmp.ne.s32.totalorder %s52, %s53
      %p65 = scmp.eq.s32.totalorder %s22, 1
      %p66 = por %p64, %p65
      %p68 = scmp.ne.s32.totalorder %s53, %s67
      %p69 = scmp.eq.s32.totalorder %s22, 0
      %p70 = por %p68, %p69
      %s72 = sadd.s32 %s71, 1
      %p75 = scmp.eq.s32.totalorder %s16, 1
      %p76 = scmp.ne.s32.totalorder %s71, %s73
      %p77 = scmp.eq.s32.totalorder %s16, 0
      %p78 = por %p76, %p77
      %p79 = scmp.ne.s32.totalorder %s71, %s73
      %p80 = scmp.eq.s32.totalorder %s21, 1
      %p81 = por %p79, %p80
      %p82 = scmp.ne.s32.totalorder %s73, %s74
      %p83 = scmp.eq.s32.totalorder %s21, 0
      %p84 = por %p82, %p83
      %p85 = scmp.ne.s32.totalorder %s73, %s74
      %p86 = scmp.eq.s32.totalorder %s22, 1
      %p87 = por %p85, %p86
      %p89 = scmp.ne.s32.totalorder %s74, %s88
      %p90 = scmp.eq.s32.totalorder %s22, 0
      %p91 = por %p89, %p90
      %s92 = ssub.s32 %s16, %s23
      %p93 = scmp.eq.s32.totalorder %s92, 0
      %s95 = sadd.s32 %s94, 1
      %s96 = scalar_select %p93, %s94, %s95
      %p99 = pneg %p93
      %p100 = scmp.eq.s32.totalorder %s16, 1
      %p101 = por %p99, %p100
      %p102 = scmp.ne.s32.totalorder %s94, %s97
      %p103 = scmp.eq.s32.totalorder %s16, 0
      %p104 = por %p102, %p103
      %p105 = scmp.ne.s32.totalorder %s94, %s97
      %p106 = scmp.eq.s32.totalorder %s21, 1
      %p107 = por %p105, %p106
      %p108 = scmp.ne.s32.totalorder %s97, %s98
      %p109 = scmp.eq.s32.totalorder %s21, 0
      %p110 = por %p108, %p109
      %p111 = scmp.ne.s32.totalorder %s97, %s98
      %p112 = scmp.eq.s32.totalorder %s22, 1
      %p113 = por %p111, %p112
      %p115 = scmp.ne.s32.totalorder %s98, %s114
      %p116 = scmp.eq.s32.totalorder %s22, 0
      %p117 = por %p115, %p116
      %p118 = scmp.le.s32.totalorder 1, %s16
      %p119 = scmp.lt.s32.totalorder %s16, 3
      %p120 = pnand %p118, %p119
      %p121 = pneg %p120
      // Predicated region
      $region9: #{tpu_custom_call.1} parent=5 // pred_check
        _
      $region10: #{tpu_custom_call.1} parent=5 // pred_check_branch
        %123 = sbr.rel (%p120) target = $region12
      $region11: #{tpu_custom_call.1} parent=5 // pred_region
        %s124 = ssub.s32 %s16, 1
        // Predicated region
        $region13: #{tpu_custom_call.1} parent=11 // pred_check
          %p125 = pneg %p63
        $region14: #{tpu_custom_call.1} parent=11 // pred_check_branch
          %127 = sbr.rel (%p125) target = $region16
        $region15: #{tpu_custom_call.1} parent=11 // pred_region
          %129 = vsyncadd [#allocation6], 0
          %s130 = sshll.u32 %s1, 4
          %s131 = int_to_ptr.hbm [resolvable:$true] %s130
          %s132 = sshll.u32 [#allocation5], 4
          %s133 = int_to_ptr.vmem [resolvable:$true] %s132
          %138 = dma.hbm_to_vmem [thread:$0]  %s131, 36864, %s133, [#allocation6], 768, 768, 48
        $region16: #{tpu_custom_call.1} parent=11 // pred_fallthru
          _
        // Predicated region
        $region17: #{tpu_custom_call.1} parent=11 // pred_check
          %p139 = pneg %p84
        $region18: #{tpu_custom_call.1} parent=11 // pred_check_branch
          %141 = sbr.rel (%p139) target = $region20
        $region19: #{tpu_custom_call.1} parent=11 // pred_region
          %143 = vsyncadd [#allocation6], 0
          %s145 = sshll.u32 %s2, 4
          %s146 = int_to_ptr.hbm [resolvable:$true] %s145
          %s147 = sshll.u32 [#allocation7], 4
          %s148 = int_to_ptr.vmem [resolvable:$true] %s147
          %150 = dma.hbm_to_vmem [thread:$0]  %s146, 192, %s148, [#allocation6]
        $region20: #{tpu_custom_call.1} parent=11 // pred_fallthru
          _
      $region12: #{tpu_custom_call.1} parent=5 // pred_fallthru
        _
      %p151 = scmp.lt.s32.totalorder %s16, 2
      // Predicated region
      $region21: #{tpu_custom_call.1} parent=5 // pred_check
        %p152 = pneg %p151
      $region22: #{tpu_custom_call.1} parent=5 // pred_check_branch
        %154 = sbr.rel (%p152) target = $region24
      $region23: #{tpu_custom_call.1} parent=5 // pred_region
        // Predicated region
        $region25: #{tpu_custom_call.1} parent=23 // pred_check
          %p155 = pneg %p36
        $region26: #{tpu_custom_call.1} parent=23 // pred_check_branch
          %157 = sbr.rel (%p155) target = $region28
        $region27: #{tpu_custom_call.1} parent=23 // pred_region
          %s158 = sand.u32 %s26, 1
          %s159 = scalar_lea.sflag [#allocation3], %s158
          %s160 = sand.u32 %s26, 1
          %s161 = smul.addr %s160, 384
          %s162 = scalar_lea.vmem [#allocation2], %s161
          %s163 = smul.u32 32, %s16
          %165 = vsyncadd %s159, 0
          %s166 = smul.addr %s163, 3
          %s167 = smul.addr %s166, 4
          %s168 = scalar_lea.hbm %s0, %s167
          %s169 = sshll.u32 %s168, 4
          %s170 = int_to_ptr.hbm [resolvable:$true] %s169
          %s171 = sshll.u32 %s162, 4
          %s172 = int_to_ptr.vmem [resolvable:$true] %s171
          %177 = dma.hbm_to_vmem [thread:$0]  %s170, 6144, %s172, %s159, 192, 192, 12
        $region28: #{tpu_custom_call.1} parent=23 // pred_fallthru
          _
      $region24: #{tpu_custom_call.1} parent=5 // pred_fallthru
        _
      %p178 = scmp.le.s32.totalorder 1, %s16
      %p179 = scmp.lt.s32.totalorder %s16, 3
      %p180 = pnand %p178, %p179
      %p181 = pneg %p180
      // Predicated region
      $region29: #{tpu_custom_call.1} parent=5 // pred_check
        _
      $region30: #{tpu_custom_call.1} parent=5 // pred_check_branch
        %183 = sbr.rel (%p180) target = $region32
      $region31: #{tpu_custom_call.1} parent=5 // pred_region
        %s184 = ssub.s32 %s16, 1
        %s185 = sand.u32 %s29, 1
        %s186 = scalar_lea.sflag [#allocation3], %s185
        %s187 = sand.u32 %s29, 1
        %s188 = smul.addr %s187, 384
        %s189 = scalar_lea.vmem [#allocation2], %s188
        // Predicated region
        $region33: #{tpu_custom_call.1} parent=31 // pred_check
          %p190 = pneg %p42
        $region34: #{tpu_custom_call.1} parent=31 // pred_check_branch
          %192 = sbr.rel (%p190) target = $region36
        $region35: #{tpu_custom_call.1} parent=31 // pred_region
          %194 = dma.done %s186, 6144
        $region36: #{tpu_custom_call.1} parent=31 // pred_fallthru
          _
        // Predicated region
        $region37: #{tpu_custom_call.1} parent=31 // pred_check
          %p195 = pneg %p63
        $region38: #{tpu_custom_call.1} parent=31 // pred_check_branch
          %197 = sbr.rel (%p195) target = $region40
        $region39: #{tpu_custom_call.1} parent=31 // pred_region
          %199 = dma.done [#allocation6], 36864
        $region40: #{tpu_custom_call.1} parent=31 // pred_fallthru
          _
        // Predicated region
        $region41: #{tpu_custom_call.1} parent=31 // pred_check
          %p200 = pneg %p84
        $region42: #{tpu_custom_call.1} parent=31 // pred_check_branch
          %202 = sbr.rel (%p200) target = $region44
        $region43: #{tpu_custom_call.1} parent=31 // pred_region
          %204 = dma.done [#allocation6], 192
        $region44: #{tpu_custom_call.1} parent=31 // pred_fallthru
          _
        %s205 = sand.u32 %s29, 1
        %s206 = scalar_lea.sflag [#allocation3], %s205
        %s207 = sand.u32 %s29, 1
        %s208 = smul.addr %s207, 384
        %s209 = scalar_lea.vmem [#allocation2], %s208
        %p210 = pneg %p42
        %p211 = pneg %p39
        %p212 = pneg %p63
        %p213 = pneg %p60
        %p214 = pneg %p84
        %p215 = pneg %p81
        %p216 = pneg %p110
        %p217 = pneg %p107
        %s218 = sand.u32 %s97, 1
        %s219 = scalar_lea.sflag [#allocation4], %s218
        %s220 = sand.u32 %s97, 1
        %s221 = smul.addr %s220, 1536
        %s222 = scalar_lea.vmem [#allocation8], %s221
        %s223 = smul.u32 32, %s21
        %s224 = smul.u32 32, %s21
        %v225 = vld [vmem:[%s189] sm:$0xff]
        %v226 = vld [vmem:[%s189 + $0x8] sm:$0xf]
        %v227 = vld [vmem:[%s189 + $0xc] sm:$0xff]
        %v228 = vld [vmem:[%s189 + $0x14] sm:$0xf]
        %v229 = vld [vmem:[%s189 + $0x18] sm:$0xff]
        %v230 = vld [vmem:[%s189 + $0x20] sm:$0xf]
        %v231 = vld [vmem:[%s189 + $0x24] sm:$0xff]
        %v232 = vld [vmem:[%s189 + $0x2c] sm:$0xf]
        %v233 = vld [vmem:[%s189 + $0x30] sm:$0xff]
        %v234 = vld [vmem:[%s189 + $0x38] sm:$0xf]
        %v235 = vld [vmem:[%s189 + $0x3c] sm:$0xff]
        %v236 = vld [vmem:[%s189 + $0x44] sm:$0xf]
        %v237 = vld [vmem:[%s189 + $0x48] sm:$0xff]
        %v238 = vld [vmem:[%s189 + $0x50] sm:$0xf]
        %v239 = vld [vmem:[%s189 + $0x54] sm:$0xff]
        %v240 = vld [vmem:[%s189 + $0x5c] sm:$0xf]
        %v241 = vld [vmem:[%s189 + $0x60] sm:$0xff]
        %v242 = vld [vmem:[%s189 + $0x68] sm:$0xf]
        %v243 = vld [vmem:[%s189 + $0x6c] sm:$0xff]
        %v244 = vld [vmem:[%s189 + $0x74] sm:$0xf]
        %v245 = vld [vmem:[%s189 + $0x78] sm:$0xff]
        %v246 = vld [vmem:[%s189 + $0x80] sm:$0xf]
        %v247 = vld [vmem:[%s189 + $0x84] sm:$0xff]
        %v248 = vld [vmem:[%s189 + $0x8c] sm:$0xf]
        %v249 = vld [vmem:[%s189 + $0x90] sm:$0xff]
        %v250 = vld [vmem:[%s189 + $0x98] sm:$0xf]
        %v251 = vld [vmem:[%s189 + $0x9c] sm:$0xff]
        %v252 = vld [vmem:[%s189 + $0xa4] sm:$0xf]
        %v253 = vld [vmem:[%s189 + $0xa8] sm:$0xff]
        %v254 = vld [vmem:[%s189 + $0xb0] sm:$0xf]
        %v255 = vld [vmem:[%s189 + $0xb4] sm:$0xff]
        %v256 = vld [vmem:[%s189 + $0xbc] sm:$0xf]
        %v257 = vld [vmem:[%s189 + $0xc0] sm:$0xff]
        %v258 = vld [vmem:[%s189 + $0xc8] sm:$0xf]
        %v259 = vld [vmem:[%s189 + $0xcc] sm:$0xff]
        %v260 = vld [vmem:[%s189 + $0xd4] sm:$0xf]
        %v261 = vld [vmem:[%s189 + $0xd8] sm:$0xff]
        %v262 = vld [vmem:[%s189 + $0xe0] sm:$0xf]
        %v263 = vld [vmem:[%s189 + $0xe4] sm:$0xff]
        %v264 = vld [vmem:[%s189 + $0xec] sm:$0xf]
        %v265 = vld [vmem:[%s189 + $0xf0] sm:$0xff]
        %v266 = vld [vmem:[%s189 + $0xf8] sm:$0xf]
        %v267 = vld [vmem:[%s189 + $0xfc] sm:$0xff]
        %v268 = vld [vmem:[%s189 + $0x104] sm:$0xf]
        %v269 = vld [vmem:[%s189 + $0x108] sm:$0xff]
        %v270 = vld [vmem:[%s189 + $0x110] sm:$0xf]
        %v271 = vld [vmem:[%s189 + $0x114] sm:$0xff]
        %v272 = vld [vmem:[%s189 + $0x11c] sm:$0xf]
        %v273 = vld [vmem:[%s189 + $0x120] sm:$0xff]
        %v274 = vld [vmem:[%s189 + $0x128] sm:$0xf]
        %v275 = vld [vmem:[%s189 + $0x12c] sm:$0xff]
        %v276 = vld [vmem:[%s189 + $0x134] sm:$0xf]
        %v277 = vld [vmem:[%s189 + $0x138] sm:$0xff]
        %v278 = vld [vmem:[%s189 + $0x140] sm:$0xf]
        %v279 = vld [vmem:[%s189 + $0x144] sm:$0xff]
        %v280 = vld [vmem:[%s189 + $0x14c] sm:$0xf]
        %v281 = vld [vmem:[%s189 + $0x150] sm:$0xff]
        %v282 = vld [vmem:[%s189 + $0x158] sm:$0xf]
        %v283 = vld [vmem:[%s189 + $0x15c] sm:$0xff]
        %v284 = vld [vmem:[%s189 + $0x164] sm:$0xf]
        %v285 = vld [vmem:[%s189 + $0x168] sm:$0xff]
        %v286 = vld [vmem:[%s189 + $0x170] sm:$0xf]
        %v287 = vld [vmem:[%s189 + $0x174] sm:$0xff]
        %v288 = vld [vmem:[%s189 + $0x17c] sm:$0xf]
        %v289 = vld [vmem:[#allocation5] sm:$0xff]
        %v290 = vld [vmem:[#allocation5 + $0x8] sm:$0xff]
        %v291 = vld [vmem:[#allocation5 + $0x10] sm:$0xff]
        %v292 = vld [vmem:[#allocation5 + $0x18] sm:$0xff]
        %v293 = vld [vmem:[#allocation5 + $0x20] sm:$0xff]
        %v294 = vld [vmem:[#allocation5 + $0x28] sm:$0xff]
        %v295 = vld [vmem:[#allocation5 + $0x30] sm:$0xff]
        %v296 = vld [vmem:[#allocation5 + $0x38] sm:$0xff]
        %v297 = vld [vmem:[#allocation5 + $0x40] sm:$0xff]
        %v298 = vld [vmem:[#allocation5 + $0x48] sm:$0xff]
        %v299 = vld [vmem:[#allocation5 + $0x50] sm:$0xff]
        %v300 = vld [vmem:[#allocation5 + $0x58] sm:$0xff]
        %v301 = vld [vmem:[#allocation5 + $0x60] sm:$0xff]
        %v302 = vld [vmem:[#allocation5 + $0x68] sm:$0xff]
        %v303 = vld [vmem:[#allocation5 + $0x70] sm:$0xff]
        %v304 = vld [vmem:[#allocation5 + $0x78] sm:$0xff]
        %v305 = vld [vmem:[#allocation5 + $0x80] sm:$0xff]
        %v306 = vld [vmem:[#allocation5 + $0x88] sm:$0xff]
        %v307 = vld [vmem:[#allocation5 + $0x90] sm:$0xff]
        %v308 = vld [vmem:[#allocation5 + $0x98] sm:$0xff]
        %v309 = vld [vmem:[#allocation5 + $0xa0] sm:$0xff]
        %v310 = vld [vmem:[#allocation5 + $0xa8] sm:$0xff]
        %v311 = vld [vmem:[#allocation5 + $0xb0] sm:$0xff]
        %v312 = vld [vmem:[#allocation5 + $0xb8] sm:$0xff]
        %v313 = vld [vmem:[#allocation5 + $0xc0] sm:$0xff]
        %v314 = vld [vmem:[#allocation5 + $0xc8] sm:$0xff]
        %v315 = vld [vmem:[#allocation5 + $0xd0] sm:$0xff]
        %v316 = vld [vmem:[#allocation5 + $0xd8] sm:$0xff]
        %v317 = vld [vmem:[#allocation5 + $0xe0] sm:$0xff]
        %v318 = vld [vmem:[#allocation5 + $0xe8] sm:$0xff]
        %v319 = vld [vmem:[#allocation5 + $0xf0] sm:$0xff]
        %v320 = vld [vmem:[#allocation5 + $0xf8] sm:$0xff]
        %v321 = vld [vmem:[#allocation5 + $0x100] sm:$0xff]
        %v322 = vld [vmem:[#allocation5 + $0x108] sm:$0xff]
        %v323 = vld [vmem:[#allocation5 + $0x110] sm:$0xff]
        %v324 = vld [vmem:[#allocation5 + $0x118] sm:$0xff]
        %v325 = vld [vmem:[#allocation5 + $0x120] sm:$0xff]
        %v326 = vld [vmem:[#allocation5 + $0x128] sm:$0xff]
        %v327 = vld [vmem:[#allocation5 + $0x130] sm:$0xff]
        %v328 = vld [vmem:[#allocation5 + $0x138] sm:$0xff]
        %v329 = vld [vmem:[#allocation5 + $0x140] sm:$0xff]
        %v330 = vld [vmem:[#allocation5 + $0x148] sm:$0xff]
        %v331 = vld [vmem:[#allocation5 + $0x150] sm:$0xff]
        %v332 = vld [vmem:[#allocation5 + $0x158] sm:$0xff]
        %v333 = vld [vmem:[#allocation5 + $0x160] sm:$0xff]
        %v334 = vld [vmem:[#allocation5 + $0x168] sm:$0xff]
        %v335 = vld [vmem:[#allocation5 + $0x170] sm:$0xff]
        %v336 = vld [vmem:[#allocation5 + $0x178] sm:$0xff]
        %v337 = vld [vmem:[#allocation5 + $0x180] sm:$0xff]
        %v338 = vld [vmem:[#allocation5 + $0x188] sm:$0xff]
        %v339 = vld [vmem:[#allocation5 + $0x190] sm:$0xff]
        %v340 = vld [vmem:[#allocation5 + $0x198] sm:$0xff]
        %v341 = vld [vmem:[#allocation5 + $0x1a0] sm:$0xff]
        %v342 = vld [vmem:[#allocation5 + $0x1a8] sm:$0xff]
        %v343 = vld [vmem:[#allocation5 + $0x1b0] sm:$0xff]
        %v344 = vld [vmem:[#allocation5 + $0x1b8] sm:$0xff]
        %v345 = vld [vmem:[#allocation5 + $0x1c0] sm:$0xff]
        %v346 = vld [vmem:[#allocation5 + $0x1c8] sm:$0xff]
        %v347 = vld [vmem:[#allocation5 + $0x1d0] sm:$0xff]
        %v348 = vld [vmem:[#allocation5 + $0x1d8] sm:$0xff]
        %v349 = vld [vmem:[#allocation5 + $0x1e0] sm:$0xff]
        %v350 = vld [vmem:[#allocation5 + $0x1e8] sm:$0xff]
        %v351 = vld [vmem:[#allocation5 + $0x1f0] sm:$0xff]
        %v352 = vld [vmem:[#allocation5 + $0x1f8] sm:$0xff]
        %v353 = vld [vmem:[#allocation5 + $0x200] sm:$0xff]
        %v354 = vld [vmem:[#allocation5 + $0x208] sm:$0xff]
        %v355 = vld [vmem:[#allocation5 + $0x210] sm:$0xff]
        %v356 = vld [vmem:[#allocation5 + $0x218] sm:$0xff]
        %v357 = vld [vmem:[#allocation5 + $0x220] sm:$0xff]
        %v358 = vld [vmem:[#allocation5 + $0x228] sm:$0xff]
        %v359 = vld [vmem:[#allocation5 + $0x230] sm:$0xff]
        %v360 = vld [vmem:[#allocation5 + $0x238] sm:$0xff]
        %v361 = vld [vmem:[#allocation5 + $0x240] sm:$0xff]
        %v362 = vld [vmem:[#allocation5 + $0x248] sm:$0xff]
        %v363 = vld [vmem:[#allocation5 + $0x250] sm:$0xff]
        %v364 = vld [vmem:[#allocation5 + $0x258] sm:$0xff]
        %v365 = vld [vmem:[#allocation5 + $0x260] sm:$0xff]
        %v366 = vld [vmem:[#allocation5 + $0x268] sm:$0xff]
        %v367 = vld [vmem:[#allocation5 + $0x270] sm:$0xff]
        %v368 = vld [vmem:[#allocation5 + $0x278] sm:$0xff]
        %v369 = vld [vmem:[#allocation5 + $0x280] sm:$0xff]
        %v370 = vld [vmem:[#allocation5 + $0x288] sm:$0xff]
        %v371 = vld [vmem:[#allocation5 + $0x290] sm:$0xff]
        %v372 = vld [vmem:[#allocation5 + $0x298] sm:$0xff]
        %v373 = vld [vmem:[#allocation5 + $0x2a0] sm:$0xff]
        %v374 = vld [vmem:[#allocation5 + $0x2a8] sm:$0xff]
        %v375 = vld [vmem:[#allocation5 + $0x2b0] sm:$0xff]
        %v376 = vld [vmem:[#allocation5 + $0x2b8] sm:$0xff]
        %v377 = vld [vmem:[#allocation5 + $0x2c0] sm:$0xff]
        %v378 = vld [vmem:[#allocation5 + $0x2c8] sm:$0xff]
        %v379 = vld [vmem:[#allocation5 + $0x2d0] sm:$0xff]
        %v380 = vld [vmem:[#allocation5 + $0x2d8] sm:$0xff]
        %v381 = vld [vmem:[#allocation5 + $0x2e0] sm:$0xff]
        %v382 = vld [vmem:[#allocation5 + $0x2e8] sm:$0xff]
        %v383 = vld [vmem:[#allocation5 + $0x2f0] sm:$0xff]
        %v384 = vld [vmem:[#allocation5 + $0x2f8] sm:$0xff]
        %v385 = vld [vmem:[#allocation5 + $0x300] sm:$0xff]
        %v386 = vld [vmem:[#allocation5 + $0x308] sm:$0xff]
        %v387 = vld [vmem:[#allocation5 + $0x310] sm:$0xff]
        %v388 = vld [vmem:[#allocation5 + $0x318] sm:$0xff]
        %v389 = vld [vmem:[#allocation5 + $0x320] sm:$0xff]
        %v390 = vld [vmem:[#allocation5 + $0x328] sm:$0xff]
        %v391 = vld [vmem:[#allocation5 + $0x330] sm:$0xff]
        %v392 = vld [vmem:[#allocation5 + $0x338] sm:$0xff]
        %v393 = vld [vmem:[#allocation5 + $0x340] sm:$0xff]
        %v394 = vld [vmem:[#allocation5 + $0x348] sm:$0xff]
        %v395 = vld [vmem:[#allocation5 + $0x350] sm:$0xff]
        %v396 = vld [vmem:[#allocation5 + $0x358] sm:$0xff]
        %v397 = vld [vmem:[#allocation5 + $0x360] sm:$0xff]
        %v398 = vld [vmem:[#allocation5 + $0x368] sm:$0xff]
        %v399 = vld [vmem:[#allocation5 + $0x370] sm:$0xff]
        %v400 = vld [vmem:[#allocation5 + $0x378] sm:$0xff]
        %v401 = vld [vmem:[#allocation5 + $0x380] sm:$0xff]
        %v402 = vld [vmem:[#allocation5 + $0x388] sm:$0xff]
        %v403 = vld [vmem:[#allocation5 + $0x390] sm:$0xff]
        %v404 = vld [vmem:[#allocation5 + $0x398] sm:$0xff]
        %v405 = vld [vmem:[#allocation5 + $0x3a0] sm:$0xff]
        %v406 = vld [vmem:[#allocation5 + $0x3a8] sm:$0xff]
        %v407 = vld [vmem:[#allocation5 + $0x3b0] sm:$0xff]
        %v408 = vld [vmem:[#allocation5 + $0x3b8] sm:$0xff]
        %v409 = vld [vmem:[#allocation5 + $0x3c0] sm:$0xff]
        %v410 = vld [vmem:[#allocation5 + $0x3c8] sm:$0xff]
        %v411 = vld [vmem:[#allocation5 + $0x3d0] sm:$0xff]
        %v412 = vld [vmem:[#allocation5 + $0x3d8] sm:$0xff]
        %v413 = vld [vmem:[#allocation5 + $0x3e0] sm:$0xff]
        %v414 = vld [vmem:[#allocation5 + $0x3e8] sm:$0xff]
        %v415 = vld [vmem:[#allocation5 + $0x3f0] sm:$0xff]
        %v416 = vld [vmem:[#allocation5 + $0x3f8] sm:$0xff]
        %v417 = vld [vmem:[#allocation5 + $0x400] sm:$0xff]
        %v418 = vld [vmem:[#allocation5 + $0x408] sm:$0xff]
        %v419 = vld [vmem:[#allocation5 + $0x410] sm:$0xff]
        %v420 = vld [vmem:[#allocation5 + $0x418] sm:$0xff]
        %v421 = vld [vmem:[#allocation5 + $0x420] sm:$0xff]
        %v422 = vld [vmem:[#allocation5 + $0x428] sm:$0xff]
        %v423 = vld [vmem:[#allocation5 + $0x430] sm:$0xff]
        %v424 = vld [vmem:[#allocation5 + $0x438] sm:$0xff]
        %v425 = vld [vmem:[#allocation5 + $0x440] sm:$0xff]
        %v426 = vld [vmem:[#allocation5 + $0x448] sm:$0xff]
        %v427 = vld [vmem:[#allocation5 + $0x450] sm:$0xff]
        %v428 = vld [vmem:[#allocation5 + $0x458] sm:$0xff]
        %v429 = vld [vmem:[#allocation5 + $0x460] sm:$0xff]
        %v430 = vld [vmem:[#allocation5 + $0x468] sm:$0xff]
        %v431 = vld [vmem:[#allocation5 + $0x470] sm:$0xff]
        %v432 = vld [vmem:[#allocation5 + $0x478] sm:$0xff]
        %v433 = vld [vmem:[#allocation5 + $0x480] sm:$0xff]
        %v434 = vld [vmem:[#allocation5 + $0x488] sm:$0xff]
        %v435 = vld [vmem:[#allocation5 + $0x490] sm:$0xff]
        %v436 = vld [vmem:[#allocation5 + $0x498] sm:$0xff]
        %v437 = vld [vmem:[#allocation5 + $0x4a0] sm:$0xff]
        %v438 = vld [vmem:[#allocation5 + $0x4a8] sm:$0xff]
        %v439 = vld [vmem:[#allocation5 + $0x4b0] sm:$0xff]
        %v440 = vld [vmem:[#allocation5 + $0x4b8] sm:$0xff]
        %v441 = vld [vmem:[#allocation5 + $0x4c0] sm:$0xff]
        %v442 = vld [vmem:[#allocation5 + $0x4c8] sm:$0xff]
        %v443 = vld [vmem:[#allocation5 + $0x4d0] sm:$0xff]
        %v444 = vld [vmem:[#allocation5 + $0x4d8] sm:$0xff]
        %v445 = vld [vmem:[#allocation5 + $0x4e0] sm:$0xff]
        %v446 = vld [vmem:[#allocation5 + $0x4e8] sm:$0xff]
        %v447 = vld [vmem:[#allocation5 + $0x4f0] sm:$0xff]
        %v448 = vld [vmem:[#allocation5 + $0x4f8] sm:$0xff]
        %v449 = vld [vmem:[#allocation5 + $0x500] sm:$0xff]
        %v450 = vld [vmem:[#allocation5 + $0x508] sm:$0xff]
        %v451 = vld [vmem:[#allocation5 + $0x510] sm:$0xff]
        %v452 = vld [vmem:[#allocation5 + $0x518] sm:$0xff]
        %v453 = vld [vmem:[#allocation5 + $0x520] sm:$0xff]
        %v454 = vld [vmem:[#allocation5 + $0x528] sm:$0xff]
        %v455 = vld [vmem:[#allocation5 + $0x530] sm:$0xff]
        %v456 = vld [vmem:[#allocation5 + $0x538] sm:$0xff]
        %v457 = vld [vmem:[#allocation5 + $0x540] sm:$0xff]
        %v458 = vld [vmem:[#allocation5 + $0x548] sm:$0xff]
        %v459 = vld [vmem:[#allocation5 + $0x550] sm:$0xff]
        %v460 = vld [vmem:[#allocation5 + $0x558] sm:$0xff]
        %v461 = vld [vmem:[#allocation5 + $0x560] sm:$0xff]
        %v462 = vld [vmem:[#allocation5 + $0x568] sm:$0xff]
        %v463 = vld [vmem:[#allocation5 + $0x570] sm:$0xff]
        %v464 = vld [vmem:[#allocation5 + $0x578] sm:$0xff]
        %v465 = vld [vmem:[#allocation5 + $0x580] sm:$0xff]
        %v466 = vld [vmem:[#allocation5 + $0x588] sm:$0xff]
        %v467 = vld [vmem:[#allocation5 + $0x590] sm:$0xff]
        %v468 = vld [vmem:[#allocation5 + $0x598] sm:$0xff]
        %v469 = vld [vmem:[#allocation5 + $0x5a0] sm:$0xff]
        %v470 = vld [vmem:[#allocation5 + $0x5a8] sm:$0xff]
        %v471 = vld [vmem:[#allocation5 + $0x5b0] sm:$0xff]
        %v472 = vld [vmem:[#allocation5 + $0x5b8] sm:$0xff]
        %v473 = vld [vmem:[#allocation5 + $0x5c0] sm:$0xff]
        %v474 = vld [vmem:[#allocation5 + $0x5c8] sm:$0xff]
        %v475 = vld [vmem:[#allocation5 + $0x5d0] sm:$0xff]
        %v476 = vld [vmem:[#allocation5 + $0x5d8] sm:$0xff]
        %v477 = vld [vmem:[#allocation5 + $0x5e0] sm:$0xff]
        %v478 = vld [vmem:[#allocation5 + $0x5e8] sm:$0xff]
        %v479 = vld [vmem:[#allocation5 + $0x5f0] sm:$0xff]
        %v480 = vld [vmem:[#allocation5 + $0x5f8] sm:$0xff]
        %v481 = vld [vmem:[#allocation5 + $0x600] sm:$0xff]
        %v482 = vld [vmem:[#allocation5 + $0x608] sm:$0xff]
        %v483 = vld [vmem:[#allocation5 + $0x610] sm:$0xff]
        %v484 = vld [vmem:[#allocation5 + $0x618] sm:$0xff]
        %v485 = vld [vmem:[#allocation5 + $0x620] sm:$0xff]
        %v486 = vld [vmem:[#allocation5 + $0x628] sm:$0xff]
        %v487 = vld [vmem:[#allocation5 + $0x630] sm:$0xff]
        %v488 = vld [vmem:[#allocation5 + $0x638] sm:$0xff]
        %v489 = vld [vmem:[#allocation5 + $0x640] sm:$0xff]
        %v490 = vld [vmem:[#allocation5 + $0x648] sm:$0xff]
        %v491 = vld [vmem:[#allocation5 + $0x650] sm:$0xff]
        %v492 = vld [vmem:[#allocation5 + $0x658] sm:$0xff]
        %v493 = vld [vmem:[#allocation5 + $0x660] sm:$0xff]
        %v494 = vld [vmem:[#allocation5 + $0x668] sm:$0xff]
        %v495 = vld [vmem:[#allocation5 + $0x670] sm:$0xff]
        %v496 = vld [vmem:[#allocation5 + $0x678] sm:$0xff]
        %v497 = vld [vmem:[#allocation5 + $0x680] sm:$0xff]
        %v498 = vld [vmem:[#allocation5 + $0x688] sm:$0xff]
        %v499 = vld [vmem:[#allocation5 + $0x690] sm:$0xff]
        %v500 = vld [vmem:[#allocation5 + $0x698] sm:$0xff]
        %v501 = vld [vmem:[#allocation5 + $0x6a0] sm:$0xff]
        %v502 = vld [vmem:[#allocation5 + $0x6a8] sm:$0xff]
        %v503 = vld [vmem:[#allocation5 + $0x6b0] sm:$0xff]
        %v504 = vld [vmem:[#allocation5 + $0x6b8] sm:$0xff]
        %v505 = vld [vmem:[#allocation5 + $0x6c0] sm:$0xff]
        %v506 = vld [vmem:[#allocation5 + $0x6c8] sm:$0xff]
        %v507 = vld [vmem:[#allocation5 + $0x6d0] sm:$0xff]
        %v508 = vld [vmem:[#allocation5 + $0x6d8] sm:$0xff]
        %v509 = vld [vmem:[#allocation5 + $0x6e0] sm:$0xff]
        %v510 = vld [vmem:[#allocation5 + $0x6e8] sm:$0xff]
        %v511 = vld [vmem:[#allocation5 + $0x6f0] sm:$0xff]
        %v512 = vld [vmem:[#allocation5 + $0x6f8] sm:$0xff]
        %v513 = vld [vmem:[#allocation5 + $0x700] sm:$0xff]
        %v514 = vld [vmem:[#allocation5 + $0x708] sm:$0xff]
        %v515 = vld [vmem:[#allocation5 + $0x710] sm:$0xff]
        %v516 = vld [vmem:[#allocation5 + $0x718] sm:$0xff]
        %v517 = vld [vmem:[#allocation5 + $0x720] sm:$0xff]
        %v518 = vld [vmem:[#allocation5 + $0x728] sm:$0xff]
        %v519 = vld [vmem:[#allocation5 + $0x730] sm:$0xff]
        %v520 = vld [vmem:[#allocation5 + $0x738] sm:$0xff]
        %v521 = vld [vmem:[#allocation5 + $0x740] sm:$0xff]
        %v522 = vld [vmem:[#allocation5 + $0x748] sm:$0xff]
        %v523 = vld [vmem:[#allocation5 + $0x750] sm:$0xff]
        %v524 = vld [vmem:[#allocation5 + $0x758] sm:$0xff]
        %v525 = vld [vmem:[#allocation5 + $0x760] sm:$0xff]
        %v526 = vld [vmem:[#allocation5 + $0x768] sm:$0xff]
        %v527 = vld [vmem:[#allocation5 + $0x770] sm:$0xff]
        %v528 = vld [vmem:[#allocation5 + $0x778] sm:$0xff]
        %v529 = vld [vmem:[#allocation5 + $0x780] sm:$0xff]
        %v530 = vld [vmem:[#allocation5 + $0x788] sm:$0xff]
        %v531 = vld [vmem:[#allocation5 + $0x790] sm:$0xff]
        %v532 = vld [vmem:[#allocation5 + $0x798] sm:$0xff]
        %v533 = vld [vmem:[#allocation5 + $0x7a0] sm:$0xff]
        %v534 = vld [vmem:[#allocation5 + $0x7a8] sm:$0xff]
        %v535 = vld [vmem:[#allocation5 + $0x7b0] sm:$0xff]
        %v536 = vld [vmem:[#allocation5 + $0x7b8] sm:$0xff]
        %v537 = vld [vmem:[#allocation5 + $0x7c0] sm:$0xff]
        %v538 = vld [vmem:[#allocation5 + $0x7c8] sm:$0xff]
        %v539 = vld [vmem:[#allocation5 + $0x7d0] sm:$0xff]
        %v540 = vld [vmem:[#allocation5 + $0x7d8] sm:$0xff]
        %v541 = vld [vmem:[#allocation5 + $0x7e0] sm:$0xff]
        %v542 = vld [vmem:[#allocation5 + $0x7e8] sm:$0xff]
        %v543 = vld [vmem:[#allocation5 + $0x7f0] sm:$0xff]
        %v544 = vld [vmem:[#allocation5 + $0x7f8] sm:$0xff]
        %v545 = vld [vmem:[#allocation5 + $0x800] sm:$0xff]
        %v546 = vld [vmem:[#allocation5 + $0x808] sm:$0xff]
        %v547 = vld [vmem:[#allocation5 + $0x810] sm:$0xff]
        %v548 = vld [vmem:[#allocation5 + $0x818] sm:$0xff]
        %v549 = vld [vmem:[#allocation5 + $0x820] sm:$0xff]
        %v550 = vld [vmem:[#allocation5 + $0x828] sm:$0xff]
        %v551 = vld [vmem:[#allocation5 + $0x830] sm:$0xff]
        %v552 = vld [vmem:[#allocation5 + $0x838] sm:$0xff]
        %v553 = vld [vmem:[#allocation5 + $0x840] sm:$0xff]
        %v554 = vld [vmem:[#allocation5 + $0x848] sm:$0xff]
        %v555 = vld [vmem:[#allocation5 + $0x850] sm:$0xff]
        %v556 = vld [vmem:[#allocation5 + $0x858] sm:$0xff]
        %v557 = vld [vmem:[#allocation5 + $0x860] sm:$0xff]
        %v558 = vld [vmem:[#allocation5 + $0x868] sm:$0xff]
        %v559 = vld [vmem:[#allocation5 + $0x870] sm:$0xff]
        %v560 = vld [vmem:[#allocation5 + $0x878] sm:$0xff]
        %v561 = vld [vmem:[#allocation5 + $0x880] sm:$0xff]
        %v562 = vld [vmem:[#allocation5 + $0x888] sm:$0xff]
        %v563 = vld [vmem:[#allocation5 + $0x890] sm:$0xff]
        %v564 = vld [vmem:[#allocation5 + $0x898] sm:$0xff]
        %v565 = vld [vmem:[#allocation5 + $0x8a0] sm:$0xff]
        %v566 = vld [vmem:[#allocation5 + $0x8a8] sm:$0xff]
        %v567 = vld [vmem:[#allocation5 + $0x8b0] sm:$0xff]
        %v568 = vld [vmem:[#allocation5 + $0x8b8] sm:$0xff]
        %v569 = vld [vmem:[#allocation5 + $0x8c0] sm:$0xff]
        %v570 = vld [vmem:[#allocation5 + $0x8c8] sm:$0xff]
        %v571 = vld [vmem:[#allocation5 + $0x8d0] sm:$0xff]
        %v572 = vld [vmem:[#allocation5 + $0x8d8] sm:$0xff]
        %v573 = vld [vmem:[#allocation5 + $0x8e0] sm:$0xff]
        %v574 = vld [vmem:[#allocation5 + $0x8e8] sm:$0xff]
        %v575 = vld [vmem:[#allocation5 + $0x8f0] sm:$0xff]
        %v576 = vld [vmem:[#allocation5 + $0x8f8] sm:$0xff]
        %v577 = vld [vmem:[#allocation7] sm:$0xff]
        %v578 = vld [vmem:[#allocation7 + $0x8] sm:$0xf]
        %v581 = vperm.slane %v577, 0
        %v582 = vperm.slane %v577, 1
        %v583 = vperm.slane %v577, 2
        %v584 = vperm.slane %v577, 3
        %v585 = vperm.slane %v577, 4
        %v586 = vperm.slane %v577, 5
        %v587 = vperm.slane %v577, 6
        %v588 = vperm.slane %v577, 7
        %v589 = vperm.slane %v578, 0
        %v590 = vperm.slane %v578, 1
        %v591 = vperm.slane %v578, 2
        %v592 = vperm.slane %v578, 3
        %v669 = vunpack.c.l.b16 %v225
        %v670 = vunpack.c.h.b16 %v225
        %v671 = vunpack.c.l.b16 %v226
        %v672 = vunpack.c.l.b16 %v227
        %v673 = vunpack.c.h.b16 %v227
        %v674 = vunpack.c.l.b16 %v228
        %v675 = vunpack.c.l.b16 %v229
        %v676 = vunpack.c.h.b16 %v229
        %v677 = vunpack.c.l.b16 %v230
        %v678 = vunpack.c.l.b16 %v231
        %v679 = vunpack.c.h.b16 %v231
        %v680 = vunpack.c.l.b16 %v232
        %v681 = vunpack.c.l.b16 %v233
        %v682 = vunpack.c.h.b16 %v233
        %v683 = vunpack.c.l.b16 %v234
        %v684 = vunpack.c.l.b16 %v235
        %v685 = vunpack.c.h.b16 %v235
        %v686 = vunpack.c.l.b16 %v236
        %v687 = vunpack.c.l.b16 %v237
        %v688 = vunpack.c.h.b16 %v237
        %v689 = vunpack.c.l.b16 %v238
        %v690 = vunpack.c.l.b16 %v239
        %v691 = vunpack.c.h.b16 %v239
        %v692 = vunpack.c.l.b16 %v240
        %v693 = vunpack.c.l.b16 %v241
        %v694 = vunpack.c.h.b16 %v241
        %v695 = vunpack.c.l.b16 %v242
        %v696 = vunpack.c.l.b16 %v243
        %v697 = vunpack.c.h.b16 %v243
        %v698 = vunpack.c.l.b16 %v244
        %v699 = vunpack.c.l.b16 %v245
        %v700 = vunpack.c.h.b16 %v245
        %v701 = vunpack.c.l.b16 %v246
        %v702 = vunpack.c.l.b16 %v247
        %v703 = vunpack.c.h.b16 %v247
        %v704 = vunpack.c.l.b16 %v248
        %v705 = vunpack.c.l.b16 %v249
        %v706 = vunpack.c.h.b16 %v249
        %v707 = vunpack.c.l.b16 %v250
        %v708 = vunpack.c.l.b16 %v251
        %v709 = vunpack.c.h.b16 %v251
        %v710 = vunpack.c.l.b16 %v252
        %v711 = vunpack.c.l.b16 %v253
        %v712 = vunpack.c.h.b16 %v253
        %v713 = vunpack.c.l.b16 %v254
        %v714 = vunpack.c.l.b16 %v255
        %v715 = vunpack.c.h.b16 %v255
        %v716 = vunpack.c.l.b16 %v256
        %v717 = vunpack.c.l.b16 %v257
        %v718 = vunpack.c.h.b16 %v257
        %v719 = vunpack.c.l.b16 %v258
        %v720 = vunpack.c.l.b16 %v259
        %v721 = vunpack.c.h.b16 %v259
        %v722 = vunpack.c.l.b16 %v260
        %v723 = vunpack.c.l.b16 %v261
        %v724 = vunpack.c.h.b16 %v261
        %v725 = vunpack.c.l.b16 %v262
        %v726 = vunpack.c.l.b16 %v263
        %v727 = vunpack.c.h.b16 %v263
        %v728 = vunpack.c.l.b16 %v264
        %v729 = vunpack.c.l.b16 %v265
        %v730 = vunpack.c.h.b16 %v265
        %v731 = vunpack.c.l.b16 %v266
        %v732 = vunpack.c.l.b16 %v267
        %v733 = vunpack.c.h.b16 %v267
        %v734 = vunpack.c.l.b16 %v268
        %v735 = vunpack.c.l.b16 %v269
        %v736 = vunpack.c.h.b16 %v269
        %v737 = vunpack.c.l.b16 %v270
        %v738 = vunpack.c.l.b16 %v271
        %v739 = vunpack.c.h.b16 %v271
        %v740 = vunpack.c.l.b16 %v272
        %v741 = vunpack.c.l.b16 %v273
        %v742 = vunpack.c.h.b16 %v273
        %v743 = vunpack.c.l.b16 %v274
        %v744 = vunpack.c.l.b16 %v275
        %v745 = vunpack.c.h.b16 %v275
        %v746 = vunpack.c.l.b16 %v276
        %v747 = vunpack.c.l.b16 %v277
        %v748 = vunpack.c.h.b16 %v277
        %v749 = vunpack.c.l.b16 %v278
        %v750 = vunpack.c.l.b16 %v279
        %v751 = vunpack.c.h.b16 %v279
        %v752 = vunpack.c.l.b16 %v280
        %v753 = vunpack.c.l.b16 %v281
        %v754 = vunpack.c.h.b16 %v281
        %v755 = vunpack.c.l.b16 %v282
        %v756 = vunpack.c.l.b16 %v283
        %v757 = vunpack.c.h.b16 %v283
        %v758 = vunpack.c.l.b16 %v284
        %v759 = vunpack.c.l.b16 %v285
        %v760 = vunpack.c.h.b16 %v285
        %v761 = vunpack.c.l.b16 %v286
        %v762 = vunpack.c.l.b16 %v287
        %v763 = vunpack.c.h.b16 %v287
        %v764 = vunpack.c.l.b16 %v288
        %v765 = vpack.c.b16 %v672, %v669
        %v766 = vpack.c.b16 %v673, %v670
        %v767 = vpack.c.b16 %v674, %v671
        %v768 = vpack.c.b16 %v678, %v675
        %v769 = vpack.c.b16 %v679, %v676
        %v770 = vpack.c.b16 %v680, %v677
        %v771 = vpack.c.b16 %v684, %v681
        %v772 = vpack.c.b16 %v685, %v682
        %v773 = vpack.c.b16 %v686, %v683
        %v774 = vpack.c.b16 %v690, %v687
        %v775 = vpack.c.b16 %v691, %v688
        %v776 = vpack.c.b16 %v692, %v689
        %v777 = vpack.c.b16 %v696, %v693
        %v778 = vpack.c.b16 %v697, %v694
        %v779 = vpack.c.b16 %v698, %v695
        %v780 = vpack.c.b16 %v702, %v699
        %v781 = vpack.c.b16 %v703, %v700
        %v782 = vpack.c.b16 %v704, %v701
        %v783 = vpack.c.b16 %v708, %v705
        %v784 = vpack.c.b16 %v709, %v706
        %v785 = vpack.c.b16 %v710, %v707
        %v786 = vpack.c.b16 %v714, %v711
        %v787 = vpack.c.b16 %v715, %v712
        %v788 = vpack.c.b16 %v716, %v713
        %v789 = vpack.c.b16 %v720, %v717
        %v790 = vpack.c.b16 %v721, %v718
        %v791 = vpack.c.b16 %v722, %v719
        %v792 = vpack.c.b16 %v726, %v723
        %v793 = vpack.c.b16 %v727, %v724
        %v794 = vpack.c.b16 %v728, %v725
        %v795 = vpack.c.b16 %v732, %v729
        %v796 = vpack.c.b16 %v733, %v730
        %v797 = vpack.c.b16 %v734, %v731
        %v798 = vpack.c.b16 %v738, %v735
        %v799 = vpack.c.b16 %v739, %v736
        %v800 = vpack.c.b16 %v740, %v737
        %v801 = vpack.c.b16 %v744, %v741
        %v802 = vpack.c.b16 %v745, %v742
        %v803 = vpack.c.b16 %v746, %v743
        %v804 = vpack.c.b16 %v750, %v747
        %v805 = vpack.c.b16 %v751, %v748
        %v806 = vpack.c.b16 %v752, %v749
        %v807 = vpack.c.b16 %v756, %v753
        %v808 = vpack.c.b16 %v757, %v754
        %v809 = vpack.c.b16 %v758, %v755
        %v810 = vpack.c.b16 %v762, %v759
        %v811 = vpack.c.b16 %v763, %v760
        %v812 = vpack.c.b16 %v764, %v761
        %v1149 = vunpack.c.l.b16 %v289
        %v1150 = vunpack.c.h.b16 %v289
        %v1151 = vunpack.c.l.b16 %v290
        %v1152 = vunpack.c.h.b16 %v290
        %v1153 = vunpack.c.l.b16 %v291
        %v1154 = vunpack.c.h.b16 %v291
        %v1155 = vunpack.c.l.b16 %v292
        %v1156 = vunpack.c.h.b16 %v292
        %v1157 = vunpack.c.l.b16 %v293
        %v1158 = vunpack.c.h.b16 %v293
        %v1159 = vunpack.c.l.b16 %v294
        %v1160 = vunpack.c.h.b16 %v294
        %v1161 = vunpack.c.l.b16 %v295
        %v1162 = vunpack.c.h.b16 %v295
        %v1163 = vunpack.c.l.b16 %v296
        %v1164 = vunpack.c.h.b16 %v296
        %v1165 = vunpack.c.l.b16 %v297
        %v1166 = vunpack.c.h.b16 %v297
        %v1167 = vunpack.c.l.b16 %v298
        %v1168 = vunpack.c.h.b16 %v298
        %v1169 = vunpack.c.l.b16 %v299
        %v1170 = vunpack.c.h.b16 %v299
        %v1171 = vunpack.c.l.b16 %v300
        %v1172 = vunpack.c.h.b16 %v300
        %v1173 = vunpack.c.l.b16 %v301
        %v1174 = vunpack.c.h.b16 %v301
        %v1175 = vunpack.c.l.b16 %v302
        %v1176 = vunpack.c.h.b16 %v302
        %v1177 = vunpack.c.l.b16 %v303
        %v1178 = vunpack.c.h.b16 %v303
        %v1179 = vunpack.c.l.b16 %v304
        %v1180 = vunpack.c.h.b16 %v304
        %v1181 = vunpack.c.l.b16 %v305
        %v1182 = vunpack.c.h.b16 %v305
        %v1183 = vunpack.c.l.b16 %v306
        %v1184 = vunpack.c.h.b16 %v306
        %v1185 = vunpack.c.l.b16 %v307
        %v1186 = vunpack.c.h.b16 %v307
        %v1187 = vunpack.c.l.b16 %v308
        %v1188 = vunpack.c.h.b16 %v308
        %v1189 = vunpack.c.l.b16 %v309
        %v1190 = vunpack.c.h.b16 %v309
        %v1191 = vunpack.c.l.b16 %v310
        %v1192 = vunpack.c.h.b16 %v310
        %v1193 = vunpack.c.l.b16 %v311
        %v1194 = vunpack.c.h.b16 %v311
        %v1195 = vunpack.c.l.b16 %v312
        %v1196 = vunpack.c.h.b16 %v312
        %v1197 = vunpack.c.l.b16 %v313
        %v1198 = vunpack.c.h.b16 %v313
        %v1199 = vunpack.c.l.b16 %v314
        %v1200 = vunpack.c.h.b16 %v314
        %v1201 = vunpack.c.l.b16 %v315
        %v1202 = vunpack.c.h.b16 %v315
        %v1203 = vunpack.c.l.b16 %v316
        %v1204 = vunpack.c.h.b16 %v316
        %v1205 = vunpack.c.l.b16 %v317
        %v1206 = vunpack.c.h.b16 %v317
        %v1207 = vunpack.c.l.b16 %v318
        %v1208 = vunpack.c.h.b16 %v318
        %v1209 = vunpack.c.l.b16 %v319
        %v1210 = vunpack.c.h.b16 %v319
        %v1211 = vunpack.c.l.b16 %v320
        %v1212 = vunpack.c.h.b16 %v320
        %v1213 = vunpack.c.l.b16 %v321
        %v1214 = vunpack.c.h.b16 %v321
        %v1215 = vunpack.c.l.b16 %v322
        %v1216 = vunpack.c.h.b16 %v322
        %v1217 = vunpack.c.l.b16 %v323
        %v1218 = vunpack.c.h.b16 %v323
        %v1219 = vunpack.c.l.b16 %v324
        %v1220 = vunpack.c.h.b16 %v324
        %v1221 = vunpack.c.l.b16 %v325
        %v1222 = vunpack.c.h.b16 %v325
        %v1223 = vunpack.c.l.b16 %v326
        %v1224 = vunpack.c.h.b16 %v326
        %v1225 = vunpack.c.l.b16 %v327
        %v1226 = vunpack.c.h.b16 %v327
        %v1227 = vunpack.c.l.b16 %v328
        %v1228 = vunpack.c.h.b16 %v328
        %v1229 = vunpack.c.l.b16 %v329
        %v1230 = vunpack.c.h.b16 %v329
        %v1231 = vunpack.c.l.b16 %v330
        %v1232 = vunpack.c.h.b16 %v330
        %v1233 = vunpack.c.l.b16 %v331
        %v1234 = vunpack.c.h.b16 %v331
        %v1235 = vunpack.c.l.b16 %v332
        %v1236 = vunpack.c.h.b16 %v332
        %v1237 = vunpack.c.l.b16 %v333
        %v1238 = vunpack.c.h.b16 %v333
        %v1239 = vunpack.c.l.b16 %v334
        %v1240 = vunpack.c.h.b16 %v334
        %v1241 = vunpack.c.l.b16 %v335
        %v1242 = vunpack.c.h.b16 %v335
        %v1243 = vunpack.c.l.b16 %v336
        %v1244 = vunpack.c.h.b16 %v336
        %v1245 = vunpack.c.l.b16 %v337
        %v1246 = vunpack.c.h.b16 %v337
        %v1247 = vunpack.c.l.b16 %v338
        %v1248 = vunpack.c.h.b16 %v338
        %v1249 = vunpack.c.l.b16 %v339
        %v1250 = vunpack.c.h.b16 %v339
        %v1251 = vunpack.c.l.b16 %v340
        %v1252 = vunpack.c.h.b16 %v340
        %v1253 = vunpack.c.l.b16 %v341
        %v1254 = vunpack.c.h.b16 %v341
        %v1255 = vunpack.c.l.b16 %v342
        %v1256 = vunpack.c.h.b16 %v342
        %v1257 = vunpack.c.l.b16 %v343
        %v1258 = vunpack.c.h.b16 %v343
        %v1259 = vunpack.c.l.b16 %v344
        %v1260 = vunpack.c.h.b16 %v344
        %v1261 = vunpack.c.l.b16 %v345
        %v1262 = vunpack.c.h.b16 %v345
        %v1263 = vunpack.c.l.b16 %v346
        %v1264 = vunpack.c.h.b16 %v346
        %v1265 = vunpack.c.l.b16 %v347
        %v1266 = vunpack.c.h.b16 %v347
        %v1267 = vunpack.c.l.b16 %v348
        %v1268 = vunpack.c.h.b16 %v348
        %v1269 = vunpack.c.l.b16 %v349
        %v1270 = vunpack.c.h.b16 %v349
        %v1271 = vunpack.c.l.b16 %v350
        %v1272 = vunpack.c.h.b16 %v350
        %v1273 = vunpack.c.l.b16 %v351
        %v1274 = vunpack.c.h.b16 %v351
        %v1275 = vunpack.c.l.b16 %v352
        %v1276 = vunpack.c.h.b16 %v352
        %v1277 = vunpack.c.l.b16 %v353
        %v1278 = vunpack.c.h.b16 %v353
        %v1279 = vunpack.c.l.b16 %v354
        %v1280 = vunpack.c.h.b16 %v354
        %v1281 = vunpack.c.l.b16 %v355
        %v1282 = vunpack.c.h.b16 %v355
        %v1283 = vunpack.c.l.b16 %v356
        %v1284 = vunpack.c.h.b16 %v356
        %v1285 = vunpack.c.l.b16 %v357
        %v1286 = vunpack.c.h.b16 %v357
        %v1287 = vunpack.c.l.b16 %v358
        %v1288 = vunpack.c.h.b16 %v358
        %v1289 = vunpack.c.l.b16 %v359
        %v1290 = vunpack.c.h.b16 %v359
        %v1291 = vunpack.c.l.b16 %v360
        %v1292 = vunpack.c.h.b16 %v360
        %v1293 = vunpack.c.l.b16 %v361
        %v1294 = vunpack.c.h.b16 %v361
        %v1295 = vunpack.c.l.b16 %v362
        %v1296 = vunpack.c.h.b16 %v362
        %v1297 = vunpack.c.l.b16 %v363
        %v1298 = vunpack.c.h.b16 %v363
        %v1299 = vunpack.c.l.b16 %v364
        %v1300 = vunpack.c.h.b16 %v364
        %v1301 = vunpack.c.l.b16 %v365
        %v1302 = vunpack.c.h.b16 %v365
        %v1303 = vunpack.c.l.b16 %v366
        %v1304 = vunpack.c.h.b16 %v366
        %v1305 = vunpack.c.l.b16 %v367
        %v1306 = vunpack.c.h.b16 %v367
        %v1307 = vunpack.c.l.b16 %v368
        %v1308 = vunpack.c.h.b16 %v368
        %v1309 = vunpack.c.l.b16 %v369
        %v1310 = vunpack.c.h.b16 %v369
        %v1311 = vunpack.c.l.b16 %v370
        %v1312 = vunpack.c.h.b16 %v370
        %v1313 = vunpack.c.l.b16 %v371
        %v1314 = vunpack.c.h.b16 %v371
        %v1315 = vunpack.c.l.b16 %v372
        %v1316 = vunpack.c.h.b16 %v372
        %v1317 = vunpack.c.l.b16 %v373
        %v1318 = vunpack.c.h.b16 %v373
        %v1319 = vunpack.c.l.b16 %v374
        %v1320 = vunpack.c.h.b16 %v374
        %v1321 = vunpack.c.l.b16 %v375
        %v1322 = vunpack.c.h.b16 %v375
        %v1323 = vunpack.c.l.b16 %v376
        %v1324 = vunpack.c.h.b16 %v376
        %v1325 = vunpack.c.l.b16 %v377
        %v1326 = vunpack.c.h.b16 %v377
        %v1327 = vunpack.c.l.b16 %v378
        %v1328 = vunpack.c.h.b16 %v378
        %v1329 = vunpack.c.l.b16 %v379
        %v1330 = vunpack.c.h.b16 %v379
        %v1331 = vunpack.c.l.b16 %v380
        %v1332 = vunpack.c.h.b16 %v380
        %v1333 = vunpack.c.l.b16 %v381
        %v1334 = vunpack.c.h.b16 %v381
        %v1335 = vunpack.c.l.b16 %v382
        %v1336 = vunpack.c.h.b16 %v382
        %v1337 = vunpack.c.l.b16 %v383
        %v1338 = vunpack.c.h.b16 %v383
        %v1339 = vunpack.c.l.b16 %v384
        %v1340 = vunpack.c.h.b16 %v384
        %v1341 = vunpack.c.l.b16 %v385
        %v1342 = vunpack.c.h.b16 %v385
        %v1343 = vunpack.c.l.b16 %v386
        %v1344 = vunpack.c.h.b16 %v386
        %v1345 = vunpack.c.l.b16 %v387
        %v1346 = vunpack.c.h.b16 %v387
        %v1347 = vunpack.c.l.b16 %v388
        %v1348 = vunpack.c.h.b16 %v388
        %v1349 = vunpack.c.l.b16 %v389
        %v1350 = vunpack.c.h.b16 %v389
        %v1351 = vunpack.c.l.b16 %v390
        %v1352 = vunpack.c.h.b16 %v390
        %v1353 = vunpack.c.l.b16 %v391
        %v1354 = vunpack.c.h.b16 %v391
        %v1355 = vunpack.c.l.b16 %v392
        %v1356 = vunpack.c.h.b16 %v392
        %v1357 = vunpack.c.l.b16 %v393
        %v1358 = vunpack.c.h.b16 %v393
        %v1359 = vunpack.c.l.b16 %v394
        %v1360 = vunpack.c.h.b16 %v394
        %v1361 = vunpack.c.l.b16 %v395
        %v1362 = vunpack.c.h.b16 %v395
        %v1363 = vunpack.c.l.b16 %v396
        %v1364 = vunpack.c.h.b16 %v396
        %v1365 = vunpack.c.l.b16 %v397
        %v1366 = vunpack.c.h.b16 %v397
        %v1367 = vunpack.c.l.b16 %v398
        %v1368 = vunpack.c.h.b16 %v398
        %v1369 = vunpack.c.l.b16 %v399
        %v1370 = vunpack.c.h.b16 %v399
        %v1371 = vunpack.c.l.b16 %v400
        %v1372 = vunpack.c.h.b16 %v400
        %v1373 = vunpack.c.l.b16 %v401
        %v1374 = vunpack.c.h.b16 %v401
        %v1375 = vunpack.c.l.b16 %v402
        %v1376 = vunpack.c.h.b16 %v402
        %v1377 = vunpack.c.l.b16 %v403
        %v1378 = vunpack.c.h.b16 %v403
        %v1379 = vunpack.c.l.b16 %v404
        %v1380 = vunpack.c.h.b16 %v404
        %v1381 = vunpack.c.l.b16 %v405
        %v1382 = vunpack.c.h.b16 %v405
        %v1383 = vunpack.c.l.b16 %v406
        %v1384 = vunpack.c.h.b16 %v406
        %v1385 = vunpack.c.l.b16 %v407
        %v1386 = vunpack.c.h.b16 %v407
        %v1387 = vunpack.c.l.b16 %v408
        %v1388 = vunpack.c.h.b16 %v408
        %v1389 = vunpack.c.l.b16 %v409
        %v1390 = vunpack.c.h.b16 %v409
        %v1391 = vunpack.c.l.b16 %v410
        %v1392 = vunpack.c.h.b16 %v410
        %v1393 = vunpack.c.l.b16 %v411
        %v1394 = vunpack.c.h.b16 %v411
        %v1395 = vunpack.c.l.b16 %v412
        %v1396 = vunpack.c.h.b16 %v412
        %v1397 = vunpack.c.l.b16 %v413
        %v1398 = vunpack.c.h.b16 %v413
        %v1399 = vunpack.c.l.b16 %v414
        %v1400 = vunpack.c.h.b16 %v414
        %v1401 = vunpack.c.l.b16 %v415
        %v1402 = vunpack.c.h.b16 %v415
        %v1403 = vunpack.c.l.b16 %v416
        %v1404 = vunpack.c.h.b16 %v416
        %v1405 = vunpack.c.l.b16 %v417
        %v1406 = vunpack.c.h.b16 %v417
        %v1407 = vunpack.c.l.b16 %v418
        %v1408 = vunpack.c.h.b16 %v418
        %v1409 = vunpack.c.l.b16 %v419
        %v1410 = vunpack.c.h.b16 %v419
        %v1411 = vunpack.c.l.b16 %v420
        %v1412 = vunpack.c.h.b16 %v420
        %v1413 = vunpack.c.l.b16 %v421
        %v1414 = vunpack.c.h.b16 %v421
        %v1415 = vunpack.c.l.b16 %v422
        %v1416 = vunpack.c.h.b16 %v422
        %v1417 = vunpack.c.l.b16 %v423
        %v1418 = vunpack.c.h.b16 %v423
        %v1419 = vunpack.c.l.b16 %v424
        %v1420 = vunpack.c.h.b16 %v424
        %v1421 = vunpack.c.l.b16 %v425
        %v1422 = vunpack.c.h.b16 %v425
        %v1423 = vunpack.c.l.b16 %v426
        %v1424 = vunpack.c.h.b16 %v426
        %v1425 = vunpack.c.l.b16 %v427
        %v1426 = vunpack.c.h.b16 %v427
        %v1427 = vunpack.c.l.b16 %v428
        %v1428 = vunpack.c.h.b16 %v428
        %v1429 = vunpack.c.l.b16 %v429
        %v1430 = vunpack.c.h.b16 %v429
        %v1431 = vunpack.c.l.b16 %v430
        %v1432 = vunpack.c.h.b16 %v430
        %v1433 = vunpack.c.l.b16 %v431
        %v1434 = vunpack.c.h.b16 %v431
        %v1435 = vunpack.c.l.b16 %v432
        %v1436 = vunpack.c.h.b16 %v432
        %v1437 = vunpack.c.l.b16 %v433
        %v1438 = vunpack.c.h.b16 %v433
        %v1439 = vunpack.c.l.b16 %v434
        %v1440 = vunpack.c.h.b16 %v434
        %v1441 = vunpack.c.l.b16 %v435
        %v1442 = vunpack.c.h.b16 %v435
        %v1443 = vunpack.c.l.b16 %v436
        %v1444 = vunpack.c.h.b16 %v436
        %v1445 = vunpack.c.l.b16 %v437
        %v1446 = vunpack.c.h.b16 %v437
        %v1447 = vunpack.c.l.b16 %v438
        %v1448 = vunpack.c.h.b16 %v438
        %v1449 = vunpack.c.l.b16 %v439
        %v1450 = vunpack.c.h.b16 %v439
        %v1451 = vunpack.c.l.b16 %v440
        %v1452 = vunpack.c.h.b16 %v440
        %v1453 = vunpack.c.l.b16 %v441
        %v1454 = vunpack.c.h.b16 %v441
        %v1455 = vunpack.c.l.b16 %v442
        %v1456 = vunpack.c.h.b16 %v442
        %v1457 = vunpack.c.l.b16 %v443
        %v1458 = vunpack.c.h.b16 %v443
        %v1459 = vunpack.c.l.b16 %v444
        %v1460 = vunpack.c.h.b16 %v444
        %v1461 = vunpack.c.l.b16 %v445
        %v1462 = vunpack.c.h.b16 %v445
        %v1463 = vunpack.c.l.b16 %v446
        %v1464 = vunpack.c.h.b16 %v446
        %v1465 = vunpack.c.l.b16 %v447
        %v1466 = vunpack.c.h.b16 %v447
        %v1467 = vunpack.c.l.b16 %v448
        %v1468 = vunpack.c.h.b16 %v448
        %v1469 = vunpack.c.l.b16 %v449
        %v1470 = vunpack.c.h.b16 %v449
        %v1471 = vunpack.c.l.b16 %v450
        %v1472 = vunpack.c.h.b16 %v450
        %v1473 = vunpack.c.l.b16 %v451
        %v1474 = vunpack.c.h.b16 %v451
        %v1475 = vunpack.c.l.b16 %v452
        %v1476 = vunpack.c.h.b16 %v452
        %v1477 = vunpack.c.l.b16 %v453
        %v1478 = vunpack.c.h.b16 %v453
        %v1479 = vunpack.c.l.b16 %v454
        %v1480 = vunpack.c.h.b16 %v454
        %v1481 = vunpack.c.l.b16 %v455
        %v1482 = vunpack.c.h.b16 %v455
        %v1483 = vunpack.c.l.b16 %v456
        %v1484 = vunpack.c.h.b16 %v456
        %v1485 = vunpack.c.l.b16 %v457
        %v1486 = vunpack.c.h.b16 %v457
        %v1487 = vunpack.c.l.b16 %v458
        %v1488 = vunpack.c.h.b16 %v458
        %v1489 = vunpack.c.l.b16 %v459
        %v1490 = vunpack.c.h.b16 %v459
        %v1491 = vunpack.c.l.b16 %v460
        %v1492 = vunpack.c.h.b16 %v460
        %v1493 = vunpack.c.l.b16 %v461
        %v1494 = vunpack.c.h.b16 %v461
        %v1495 = vunpack.c.l.b16 %v462
        %v1496 = vunpack.c.h.b16 %v462
        %v1497 = vunpack.c.l.b16 %v463
        %v1498 = vunpack.c.h.b16 %v463
        %v1499 = vunpack.c.l.b16 %v464
        %v1500 = vunpack.c.h.b16 %v464
        %v1501 = vunpack.c.l.b16 %v465
        %v1502 = vunpack.c.h.b16 %v465
        %v1503 = vunpack.c.l.b16 %v466
        %v1504 = vunpack.c.h.b16 %v466
        %v1505 = vunpack.c.l.b16 %v467
        %v1506 = vunpack.c.h.b16 %v467
        %v1507 = vunpack.c.l.b16 %v468
        %v1508 = vunpack.c.h.b16 %v468
        %v1509 = vunpack.c.l.b16 %v469
        %v1510 = vunpack.c.h.b16 %v469
        %v1511 = vunpack.c.l.b16 %v470
        %v1512 = vunpack.c.h.b16 %v470
        %v1513 = vunpack.c.l.b16 %v471
        %v1514 = vunpack.c.h.b16 %v471
        %v1515 = vunpack.c.l.b16 %v472
        %v1516 = vunpack.c.h.b16 %v472
        %v1517 = vunpack.c.l.b16 %v473
        %v1518 = vunpack.c.h.b16 %v473
        %v1519 = vunpack.c.l.b16 %v474
        %v1520 = vunpack.c.h.b16 %v474
        %v1521 = vunpack.c.l.b16 %v475
        %v1522 = vunpack.c.h.b16 %v475
        %v1523 = vunpack.c.l.b16 %v476
        %v1524 = vunpack.c.h.b16 %v476
        %v1525 = vunpack.c.l.b16 %v477
        %v1526 = vunpack.c.h.b16 %v477
        %v1527 = vunpack.c.l.b16 %v478
        %v1528 = vunpack.c.h.b16 %v478
        %v1529 = vunpack.c.l.b16 %v479
        %v1530 = vunpack.c.h.b16 %v479
        %v1531 = vunpack.c.l.b16 %v480
        %v1532 = vunpack.c.h.b16 %v480
        %v1533 = vunpack.c.l.b16 %v481
        %v1534 = vunpack.c.h.b16 %v481
        %v1535 = vunpack.c.l.b16 %v482
        %v1536 = vunpack.c.h.b16 %v482
        %v1537 = vunpack.c.l.b16 %v483
        %v1538 = vunpack.c.h.b16 %v483
        %v1539 = vunpack.c.l.b16 %v484
        %v1540 = vunpack.c.h.b16 %v484
        %v1541 = vunpack.c.l.b16 %v485
        %v1542 = vunpack.c.h.b16 %v485
        %v1543 = vunpack.c.l.b16 %v486
        %v1544 = vunpack.c.h.b16 %v486
        %v1545 = vunpack.c.l.b16 %v487
        %v1546 = vunpack.c.h.b16 %v487
        %v1547 = vunpack.c.l.b16 %v488
        %v1548 = vunpack.c.h.b16 %v488
        %v1549 = vunpack.c.l.b16 %v489
        %v1550 = vunpack.c.h.b16 %v489
        %v1551 = vunpack.c.l.b16 %v490
        %v1552 = vunpack.c.h.b16 %v490
        %v1553 = vunpack.c.l.b16 %v491
        %v1554 = vunpack.c.h.b16 %v491
        %v1555 = vunpack.c.l.b16 %v492
        %v1556 = vunpack.c.h.b16 %v492
        %v1557 = vunpack.c.l.b16 %v493
        %v1558 = vunpack.c.h.b16 %v493
        %v1559 = vunpack.c.l.b16 %v494
        %v1560 = vunpack.c.h.b16 %v494
        %v1561 = vunpack.c.l.b16 %v495
        %v1562 = vunpack.c.h.b16 %v495
        %v1563 = vunpack.c.l.b16 %v496
        %v1564 = vunpack.c.h.b16 %v496
        %v1565 = vunpack.c.l.b16 %v497
        %v1566 = vunpack.c.h.b16 %v497
        %v1567 = vunpack.c.l.b16 %v498
        %v1568 = vunpack.c.h.b16 %v498
        %v1569 = vunpack.c.l.b16 %v499
        %v1570 = vunpack.c.h.b16 %v499
        %v1571 = vunpack.c.l.b16 %v500
        %v1572 = vunpack.c.h.b16 %v500
        %v1573 = vunpack.c.l.b16 %v501
        %v1574 = vunpack.c.h.b16 %v501
        %v1575 = vunpack.c.l.b16 %v502
        %v1576 = vunpack.c.h.b16 %v502
        %v1577 = vunpack.c.l.b16 %v503
        %v1578 = vunpack.c.h.b16 %v503
        %v1579 = vunpack.c.l.b16 %v504
        %v1580 = vunpack.c.h.b16 %v504
        %v1581 = vunpack.c.l.b16 %v505
        %v1582 = vunpack.c.h.b16 %v505
        %v1583 = vunpack.c.l.b16 %v506
        %v1584 = vunpack.c.h.b16 %v506
        %v1585 = vunpack.c.l.b16 %v507
        %v1586 = vunpack.c.h.b16 %v507
        %v1587 = vunpack.c.l.b16 %v508
        %v1588 = vunpack.c.h.b16 %v508
        %v1589 = vunpack.c.l.b16 %v509
        %v1590 = vunpack.c.h.b16 %v509
        %v1591 = vunpack.c.l.b16 %v510
        %v1592 = vunpack.c.h.b16 %v510
        %v1593 = vunpack.c.l.b16 %v511
        %v1594 = vunpack.c.h.b16 %v511
        %v1595 = vunpack.c.l.b16 %v512
        %v1596 = vunpack.c.h.b16 %v512
        %v1597 = vunpack.c.l.b16 %v513
        %v1598 = vunpack.c.h.b16 %v513
        %v1599 = vunpack.c.l.b16 %v514
        %v1600 = vunpack.c.h.b16 %v514
        %v1601 = vunpack.c.l.b16 %v515
        %v1602 = vunpack.c.h.b16 %v515
        %v1603 = vunpack.c.l.b16 %v516
        %v1604 = vunpack.c.h.b16 %v516
        %v1605 = vunpack.c.l.b16 %v517
        %v1606 = vunpack.c.h.b16 %v517
        %v1607 = vunpack.c.l.b16 %v518
        %v1608 = vunpack.c.h.b16 %v518
        %v1609 = vunpack.c.l.b16 %v519
        %v1610 = vunpack.c.h.b16 %v519
        %v1611 = vunpack.c.l.b16 %v520
        %v1612 = vunpack.c.h.b16 %v520
        %v1613 = vunpack.c.l.b16 %v521
        %v1614 = vunpack.c.h.b16 %v521
        %v1615 = vunpack.c.l.b16 %v522
        %v1616 = vunpack.c.h.b16 %v522
        %v1617 = vunpack.c.l.b16 %v523
        %v1618 = vunpack.c.h.b16 %v523
        %v1619 = vunpack.c.l.b16 %v524
        %v1620 = vunpack.c.h.b16 %v524
        %v1621 = vunpack.c.l.b16 %v525
        %v1622 = vunpack.c.h.b16 %v525
        %v1623 = vunpack.c.l.b16 %v526
        %v1624 = vunpack.c.h.b16 %v526
        %v1625 = vunpack.c.l.b16 %v527
        %v1626 = vunpack.c.h.b16 %v527
        %v1627 = vunpack.c.l.b16 %v528
        %v1628 = vunpack.c.h.b16 %v528
        %v1629 = vunpack.c.l.b16 %v529
        %v1630 = vunpack.c.h.b16 %v529
        %v1631 = vunpack.c.l.b16 %v530
        %v1632 = vunpack.c.h.b16 %v530
        %v1633 = vunpack.c.l.b16 %v531
        %v1634 = vunpack.c.h.b16 %v531
        %v1635 = vunpack.c.l.b16 %v532
        %v1636 = vunpack.c.h.b16 %v532
        %v1637 = vunpack.c.l.b16 %v533
        %v1638 = vunpack.c.h.b16 %v533
        %v1639 = vunpack.c.l.b16 %v534
        %v1640 = vunpack.c.h.b16 %v534
        %v1641 = vunpack.c.l.b16 %v535
        %v1642 = vunpack.c.h.b16 %v535
        %v1643 = vunpack.c.l.b16 %v536
        %v1644 = vunpack.c.h.b16 %v536
        %v1645 = vunpack.c.l.b16 %v537
        %v1646 = vunpack.c.h.b16 %v537
        %v1647 = vunpack.c.l.b16 %v538
        %v1648 = vunpack.c.h.b16 %v538
        %v1649 = vunpack.c.l.b16 %v539
        %v1650 = vunpack.c.h.b16 %v539
        %v1651 = vunpack.c.l.b16 %v540
        %v1652 = vunpack.c.h.b16 %v540
        %v1653 = vunpack.c.l.b16 %v541
        %v1654 = vunpack.c.h.b16 %v541
        %v1655 = vunpack.c.l.b16 %v542
        %v1656 = vunpack.c.h.b16 %v542
        %v1657 = vunpack.c.l.b16 %v543
        %v1658 = vunpack.c.h.b16 %v543
        %v1659 = vunpack.c.l.b16 %v544
        %v1660 = vunpack.c.h.b16 %v544
        %v1661 = vunpack.c.l.b16 %v545
        %v1662 = vunpack.c.h.b16 %v545
        %v1663 = vunpack.c.l.b16 %v546
        %v1664 = vunpack.c.h.b16 %v546
        %v1665 = vunpack.c.l.b16 %v547
        %v1666 = vunpack.c.h.b16 %v547
        %v1667 = vunpack.c.l.b16 %v548
        %v1668 = vunpack.c.h.b16 %v548
        %v1669 = vunpack.c.l.b16 %v549
        %v1670 = vunpack.c.h.b16 %v549
        %v1671 = vunpack.c.l.b16 %v550
        %v1672 = vunpack.c.h.b16 %v550
        %v1673 = vunpack.c.l.b16 %v551
        %v1674 = vunpack.c.h.b16 %v551
        %v1675 = vunpack.c.l.b16 %v552
        %v1676 = vunpack.c.h.b16 %v552
        %v1677 = vunpack.c.l.b16 %v553
        %v1678 = vunpack.c.h.b16 %v553
        %v1679 = vunpack.c.l.b16 %v554
        %v1680 = vunpack.c.h.b16 %v554
        %v1681 = vunpack.c.l.b16 %v555
        %v1682 = vunpack.c.h.b16 %v555
        %v1683 = vunpack.c.l.b16 %v556
        %v1684 = vunpack.c.h.b16 %v556
        %v1685 = vunpack.c.l.b16 %v557
        %v1686 = vunpack.c.h.b16 %v557
        %v1687 = vunpack.c.l.b16 %v558
        %v1688 = vunpack.c.h.b16 %v558
        %v1689 = vunpack.c.l.b16 %v559
        %v1690 = vunpack.c.h.b16 %v559
        %v1691 = vunpack.c.l.b16 %v560
        %v1692 = vunpack.c.h.b16 %v560
        %v1693 = vunpack.c.l.b16 %v561
        %v1694 = vunpack.c.h.b16 %v561
        %v1695 = vunpack.c.l.b16 %v562
        %v1696 = vunpack.c.h.b16 %v562
        %v1697 = vunpack.c.l.b16 %v563
        %v1698 = vunpack.c.h.b16 %v563
        %v1699 = vunpack.c.l.b16 %v564
        %v1700 = vunpack.c.h.b16 %v564
        %v1701 = vunpack.c.l.b16 %v565
        %v1702 = vunpack.c.h.b16 %v565
        %v1703 = vunpack.c.l.b16 %v566
        %v1704 = vunpack.c.h.b16 %v566
        %v1705 = vunpack.c.l.b16 %v567
        %v1706 = vunpack.c.h.b16 %v567
        %v1707 = vunpack.c.l.b16 %v568
        %v1708 = vunpack.c.h.b16 %v568
        %v1709 = vunpack.c.l.b16 %v569
        %v1710 = vunpack.c.h.b16 %v569
        %v1711 = vunpack.c.l.b16 %v570
        %v1712 = vunpack.c.h.b16 %v570
        %v1713 = vunpack.c.l.b16 %v571
        %v1714 = vunpack.c.h.b16 %v571
        %v1715 = vunpack.c.l.b16 %v572
        %v1716 = vunpack.c.h.b16 %v572
        %v1717 = vunpack.c.l.b16 %v573
        %v1718 = vunpack.c.h.b16 %v573
        %v1719 = vunpack.c.l.b16 %v574
        %v1720 = vunpack.c.h.b16 %v574
        %v1721 = vunpack.c.l.b16 %v575
        %v1722 = vunpack.c.h.b16 %v575
        %v1723 = vunpack.c.l.b16 %v576
        %v1724 = vunpack.c.h.b16 %v576
        %v1725 = vpack.c.b16 %v1161, %v1149
        %v1726 = vpack.c.b16 %v1162, %v1150
        %v1727 = vpack.c.b16 %v1163, %v1151
        %v1728 = vpack.c.b16 %v1164, %v1152
        %v1729 = vpack.c.b16 %v1165, %v1153
        %v1730 = vpack.c.b16 %v1166, %v1154
        %v1731 = vpack.c.b16 %v1167, %v1155
        %v1732 = vpack.c.b16 %v1168, %v1156
        %v1733 = vpack.c.b16 %v1169, %v1157
        %v1734 = vpack.c.b16 %v1170, %v1158
        %v1735 = vpack.c.b16 %v1171, %v1159
        %v1736 = vpack.c.b16 %v1172, %v1160
        %v1737 = vpack.c.b16 %v1185, %v1173
        %v1738 = vpack.c.b16 %v1186, %v1174
        %v1739 = vpack.c.b16 %v1187, %v1175
        %v1740 = vpack.c.b16 %v1188, %v1176
        %v1741 = vpack.c.b16 %v1189, %v1177
        %v1742 = vpack.c.b16 %v1190, %v1178
        %v1743 = vpack.c.b16 %v1191, %v1179
        %v1744 = vpack.c.b16 %v1192, %v1180
        %v1745 = vpack.c.b16 %v1193, %v1181
        %v1746 = vpack.c.b16 %v1194, %v1182
        %v1747 = vpack.c.b16 %v1195, %v1183
        %v1748 = vpack.c.b16 %v1196, %v1184
        %v1749 = vpack.c.b16 %v1209, %v1197
        %v1750 = vpack.c.b16 %v1210, %v1198
        %v1751 = vpack.c.b16 %v1211, %v1199
        %v1752 = vpack.c.b16 %v1212, %v1200
        %v1753 = vpack.c.b16 %v1213, %v1201
        %v1754 = vpack.c.b16 %v1214, %v1202
        %v1755 = vpack.c.b16 %v1215, %v1203
        %v1756 = vpack.c.b16 %v1216, %v1204
        %v1757 = vpack.c.b16 %v1217, %v1205
        %v1758 = vpack.c.b16 %v1218, %v1206
        %v1759 = vpack.c.b16 %v1219, %v1207
        %v1760 = vpack.c.b16 %v1220, %v1208
        %v1761 = vpack.c.b16 %v1233, %v1221
        %v1762 = vpack.c.b16 %v1234, %v1222
        %v1763 = vpack.c.b16 %v1235, %v1223
        %v1764 = vpack.c.b16 %v1236, %v1224
        %v1765 = vpack.c.b16 %v1237, %v1225
        %v1766 = vpack.c.b16 %v1238, %v1226
        %v1767 = vpack.c.b16 %v1239, %v1227
        %v1768 = vpack.c.b16 %v1240, %v1228
        %v1769 = vpack.c.b16 %v1241, %v1229
        %v1770 = vpack.c.b16 %v1242, %v1230
        %v1771 = vpack.c.b16 %v1243, %v1231
        %v1772 = vpack.c.b16 %v1244, %v1232
        %v1773 = vpack.c.b16 %v1257, %v1245
        %v1774 = vpack.c.b16 %v1258, %v1246
        %v1775 = vpack.c.b16 %v1259, %v1247
        %v1776 = vpack.c.b16 %v1260, %v1248
        %v1777 = vpack.c.b16 %v1261, %v1249
        %v1778 = vpack.c.b16 %v1262, %v1250
        %v1779 = vpack.c.b16 %v1263, %v1251
        %v1780 = vpack.c.b16 %v1264, %v1252
        %v1781 = vpack.c.b16 %v1265, %v1253
        %v1782 = vpack.c.b16 %v1266, %v1254
        %v1783 = vpack.c.b16 %v1267, %v1255
        %v1784 = vpack.c.b16 %v1268, %v1256
        %v1785 = vpack.c.b16 %v1281, %v1269
        %v1786 = vpack.c.b16 %v1282, %v1270
        %v1787 = vpack.c.b16 %v1283, %v1271
        %v1788 = vpack.c.b16 %v1284, %v1272
        %v1789 = vpack.c.b16 %v1285, %v1273
        %v1790 = vpack.c.b16 %v1286, %v1274
        %v1791 = vpack.c.b16 %v1287, %v1275
        %v1792 = vpack.c.b16 %v1288, %v1276
        %v1793 = vpack.c.b16 %v1289, %v1277
        %v1794 = vpack.c.b16 %v1290, %v1278
        %v1795 = vpack.c.b16 %v1291, %v1279
        %v1796 = vpack.c.b16 %v1292, %v1280
        %v1797 = vpack.c.b16 %v1305, %v1293
        %v1798 = vpack.c.b16 %v1306, %v1294
        %v1799 = vpack.c.b16 %v1307, %v1295
        %v1800 = vpack.c.b16 %v1308, %v1296
        %v1801 = vpack.c.b16 %v1309, %v1297
        %v1802 = vpack.c.b16 %v1310, %v1298
        %v1803 = vpack.c.b16 %v1311, %v1299
        %v1804 = vpack.c.b16 %v1312, %v1300
        %v1805 = vpack.c.b16 %v1313, %v1301
        %v1806 = vpack.c.b16 %v1314, %v1302
        %v1807 = vpack.c.b16 %v1315, %v1303
        %v1808 = vpack.c.b16 %v1316, %v1304
        %v1809 = vpack.c.b16 %v1329, %v1317
        %v1810 = vpack.c.b16 %v1330, %v1318
        %v1811 = vpack.c.b16 %v1331, %v1319
        %v1812 = vpack.c.b16 %v1332, %v1320
        %v1813 = vpack.c.b16 %v1333, %v1321
        %v1814 = vpack.c.b16 %v1334, %v1322
        %v1815 = vpack.c.b16 %v1335, %v1323
        %v1816 = vpack.c.b16 %v1336, %v1324
        %v1817 = vpack.c.b16 %v1337, %v1325
        %v1818 = vpack.c.b16 %v1338, %v1326
        %v1819 = vpack.c.b16 %v1339, %v1327
        %v1820 = vpack.c.b16 %v1340, %v1328
        %v1821 = vpack.c.b16 %v1353, %v1341
        %v1822 = vpack.c.b16 %v1354, %v1342
        %v1823 = vpack.c.b16 %v1355, %v1343
        %v1824 = vpack.c.b16 %v1356, %v1344
        %v1825 = vpack.c.b16 %v1357, %v1345
        %v1826 = vpack.c.b16 %v1358, %v1346
        %v1827 = vpack.c.b16 %v1359, %v1347
        %v1828 = vpack.c.b16 %v1360, %v1348
        %v1829 = vpack.c.b16 %v1361, %v1349
        %v1830 = vpack.c.b16 %v1362, %v1350
        %v1831 = vpack.c.b16 %v1363, %v1351
        %v1832 = vpack.c.b16 %v1364, %v1352
        %v1833 = vpack.c.b16 %v1377, %v1365
        %v1834 = vpack.c.b16 %v1378, %v1366
        %v1835 = vpack.c.b16 %v1379, %v1367
        %v1836 = vpack.c.b16 %v1380, %v1368
        %v1837 = vpack.c.b16 %v1381, %v1369
        %v1838 = vpack.c.b16 %v1382, %v1370
        %v1839 = vpack.c.b16 %v1383, %v1371
        %v1840 = vpack.c.b16 %v1384, %v1372
        %v1841 = vpack.c.b16 %v1385, %v1373
        %v1842 = vpack.c.b16 %v1386, %v1374
        %v1843 = vpack.c.b16 %v1387, %v1375
        %v1844 = vpack.c.b16 %v1388, %v1376
        %v1845 = vpack.c.b16 %v1401, %v1389
        %v1846 = vpack.c.b16 %v1402, %v1390
        %v1847 = vpack.c.b16 %v1403, %v1391
        %v1848 = vpack.c.b16 %v1404, %v1392
        %v1849 = vpack.c.b16 %v1405, %v1393
        %v1850 = vpack.c.b16 %v1406, %v1394
        %v1851 = vpack.c.b16 %v1407, %v1395
        %v1852 = vpack.c.b16 %v1408, %v1396
        %v1853 = vpack.c.b16 %v1409, %v1397
        %v1854 = vpack.c.b16 %v1410, %v1398
        %v1855 = vpack.c.b16 %v1411, %v1399
        %v1856 = vpack.c.b16 %v1412, %v1400
        %v1857 = vpack.c.b16 %v1425, %v1413
        %v1858 = vpack.c.b16 %v1426, %v1414
        %v1859 = vpack.c.b16 %v1427, %v1415
        %v1860 = vpack.c.b16 %v1428, %v1416
        %v1861 = vpack.c.b16 %v1429, %v1417
        %v1862 = vpack.c.b16 %v1430, %v1418
        %v1863 = vpack.c.b16 %v1431, %v1419
        %v1864 = vpack.c.b16 %v1432, %v1420
        %v1865 = vpack.c.b16 %v1433, %v1421
        %v1866 = vpack.c.b16 %v1434, %v1422
        %v1867 = vpack.c.b16 %v1435, %v1423
        %v1868 = vpack.c.b16 %v1436, %v1424
        %v1869 = vpack.c.b16 %v1449, %v1437
        %v1870 = vpack.c.b16 %v1450, %v1438
        %v1871 = vpack.c.b16 %v1451, %v1439
        %v1872 = vpack.c.b16 %v1452, %v1440
        %v1873 = vpack.c.b16 %v1453, %v1441
        %v1874 = vpack.c.b16 %v1454, %v1442
        %v1875 = vpack.c.b16 %v1455, %v1443
        %v1876 = vpack.c.b16 %v1456, %v1444
        %v1877 = vpack.c.b16 %v1457, %v1445
        %v1878 = vpack.c.b16 %v1458, %v1446
        %v1879 = vpack.c.b16 %v1459, %v1447
        %v1880 = vpack.c.b16 %v1460, %v1448
        %v1881 = vpack.c.b16 %v1473, %v1461
        %v1882 = vpack.c.b16 %v1474, %v1462
        %v1883 = vpack.c.b16 %v1475, %v1463
        %v1884 = vpack.c.b16 %v1476, %v1464
        %v1885 = vpack.c.b16 %v1477, %v1465
        %v1886 = vpack.c.b16 %v1478, %v1466
        %v1887 = vpack.c.b16 %v1479, %v1467
        %v1888 = vpack.c.b16 %v1480, %v1468
        %v1889 = vpack.c.b16 %v1481, %v1469
        %v1890 = vpack.c.b16 %v1482, %v1470
        %v1891 = vpack.c.b16 %v1483, %v1471
        %v1892 = vpack.c.b16 %v1484, %v1472
        %v1893 = vpack.c.b16 %v1497, %v1485
        %v1894 = vpack.c.b16 %v1498, %v1486
        %v1895 = vpack.c.b16 %v1499, %v1487
        %v1896 = vpack.c.b16 %v1500, %v1488
        %v1897 = vpack.c.b16 %v1501, %v1489
        %v1898 = vpack.c.b16 %v1502, %v1490
        %v1899 = vpack.c.b16 %v1503, %v1491
        %v1900 = vpack.c.b16 %v1504, %v1492
        %v1901 = vpack.c.b16 %v1505, %v1493
        %v1902 = vpack.c.b16 %v1506, %v1494
        %v1903 = vpack.c.b16 %v1507, %v1495
        %v1904 = vpack.c.b16 %v1508, %v1496
        %v1905 = vpack.c.b16 %v1521, %v1509
        %v1906 = vpack.c.b16 %v1522, %v1510
        %v1907 = vpack.c.b16 %v1523, %v1511
        %v1908 = vpack.c.b16 %v1524, %v1512
        %v1909 = vpack.c.b16 %v1525, %v1513
        %v1910 = vpack.c.b16 %v1526, %v1514
        %v1911 = vpack.c.b16 %v1527, %v1515
        %v1912 = vpack.c.b16 %v1528, %v1516
        %v1913 = vpack.c.b16 %v1529, %v1517
        %v1914 = vpack.c.b16 %v1530, %v1518
        %v1915 = vpack.c.b16 %v1531, %v1519
        %v1916 = vpack.c.b16 %v1532, %v1520
        %v1917 = vpack.c.b16 %v1545, %v1533
        %v1918 = vpack.c.b16 %v1546, %v1534
        %v1919 = vpack.c.b16 %v1547, %v1535
        %v1920 = vpack.c.b16 %v1548, %v1536
        %v1921 = vpack.c.b16 %v1549, %v1537
        %v1922 = vpack.c.b16 %v1550, %v1538
        %v1923 = vpack.c.b16 %v1551, %v1539
        %v1924 = vpack.c.b16 %v1552, %v1540
        %v1925 = vpack.c.b16 %v1553, %v1541
        %v1926 = vpack.c.b16 %v1554, %v1542
        %v1927 = vpack.c.b16 %v1555, %v1543
        %v1928 = vpack.c.b16 %v1556, %v1544
        %v1929 = vpack.c.b16 %v1569, %v1557
        %v1930 = vpack.c.b16 %v1570, %v1558
        %v1931 = vpack.c.b16 %v1571, %v1559
        %v1932 = vpack.c.b16 %v1572, %v1560
        %v1933 = vpack.c.b16 %v1573, %v1561
        %v1934 = vpack.c.b16 %v1574, %v1562
        %v1935 = vpack.c.b16 %v1575, %v1563
        %v1936 = vpack.c.b16 %v1576, %v1564
        %v1937 = vpack.c.b16 %v1577, %v1565
        %v1938 = vpack.c.b16 %v1578, %v1566
        %v1939 = vpack.c.b16 %v1579, %v1567
        %v1940 = vpack.c.b16 %v1580, %v1568
        %v1941 = vpack.c.b16 %v1593, %v1581
        %v1942 = vpack.c.b16 %v1594, %v1582
        %v1943 = vpack.c.b16 %v1595, %v1583
        %v1944 = vpack.c.b16 %v1596, %v1584
        %v1945 = vpack.c.b16 %v1597, %v1585
        %v1946 = vpack.c.b16 %v1598, %v1586
        %v1947 = vpack.c.b16 %v1599, %v1587
        %v1948 = vpack.c.b16 %v1600, %v1588
        %v1949 = vpack.c.b16 %v1601, %v1589
        %v1950 = vpack.c.b16 %v1602, %v1590
        %v1951 = vpack.c.b16 %v1603, %v1591
        %v1952 = vpack.c.b16 %v1604, %v1592
        %v1953 = vpack.c.b16 %v1617, %v1605
        %v1954 = vpack.c.b16 %v1618, %v1606
        %v1955 = vpack.c.b16 %v1619, %v1607
        %v1956 = vpack.c.b16 %v1620, %v1608
        %v1957 = vpack.c.b16 %v1621, %v1609
        %v1958 = vpack.c.b16 %v1622, %v1610
        %v1959 = vpack.c.b16 %v1623, %v1611
        %v1960 = vpack.c.b16 %v1624, %v1612
        %v1961 = vpack.c.b16 %v1625, %v1613
        %v1962 = vpack.c.b16 %v1626, %v1614
        %v1963 = vpack.c.b16 %v1627, %v1615
        %v1964 = vpack.c.b16 %v1628, %v1616
        %v1965 = vpack.c.b16 %v1641, %v1629
        %v1966 = vpack.c.b16 %v1642, %v1630
        %v1967 = vpack.c.b16 %v1643, %v1631
        %v1968 = vpack.c.b16 %v1644, %v1632
        %v1969 = vpack.c.b16 %v1645, %v1633
        %v1970 = vpack.c.b16 %v1646, %v1634
        %v1971 = vpack.c.b16 %v1647, %v1635
        %v1972 = vpack.c.b16 %v1648, %v1636
        %v1973 = vpack.c.b16 %v1649, %v1637
        %v1974 = vpack.c.b16 %v1650, %v1638
        %v1975 = vpack.c.b16 %v1651, %v1639
        %v1976 = vpack.c.b16 %v1652, %v1640
        %v1977 = vpack.c.b16 %v1665, %v1653
        %v1978 = vpack.c.b16 %v1666, %v1654
        %v1979 = vpack.c.b16 %v1667, %v1655
        %v1980 = vpack.c.b16 %v1668, %v1656
        %v1981 = vpack.c.b16 %v1669, %v1657
        %v1982 = vpack.c.b16 %v1670, %v1658
        %v1983 = vpack.c.b16 %v1671, %v1659
        %v1984 = vpack.c.b16 %v1672, %v1660
        %v1985 = vpack.c.b16 %v1673, %v1661
        %v1986 = vpack.c.b16 %v1674, %v1662
        %v1987 = vpack.c.b16 %v1675, %v1663
        %v1988 = vpack.c.b16 %v1676, %v1664
        %v1989 = vpack.c.b16 %v1689, %v1677
        %v1990 = vpack.c.b16 %v1690, %v1678
        %v1991 = vpack.c.b16 %v1691, %v1679
        %v1992 = vpack.c.b16 %v1692, %v1680
        %v1993 = vpack.c.b16 %v1693, %v1681
        %v1994 = vpack.c.b16 %v1694, %v1682
        %v1995 = vpack.c.b16 %v1695, %v1683
        %v1996 = vpack.c.b16 %v1696, %v1684
        %v1997 = vpack.c.b16 %v1697, %v1685
        %v1998 = vpack.c.b16 %v1698, %v1686
        %v1999 = vpack.c.b16 %v1699, %v1687
        %v2000 = vpack.c.b16 %v1700, %v1688
        %v2001 = vpack.c.b16 %v1713, %v1701
        %v2002 = vpack.c.b16 %v1714, %v1702
        %v2003 = vpack.c.b16 %v1715, %v1703
        %v2004 = vpack.c.b16 %v1716, %v1704
        %v2005 = vpack.c.b16 %v1717, %v1705
        %v2006 = vpack.c.b16 %v1718, %v1706
        %v2007 = vpack.c.b16 %v1719, %v1707
        %v2008 = vpack.c.b16 %v1720, %v1708
        %v2009 = vpack.c.b16 %v1721, %v1709
        %v2010 = vpack.c.b16 %v1722, %v1710
        %v2011 = vpack.c.b16 %v1723, %v1711
        %v2012 = vpack.c.b16 %v1724, %v1712
        %2301 = vmatpush.bf16.msra.mxu0 %v1809
        %2302 = vmatpush.bf16.msra.mxu0 %v1797
        %2303 = vmatpush.bf16.msra.mxu0 %v1785
        %2304 = vmatpush.bf16.msra.mxu0 %v1773
        %2305 = vmatpush.bf16.msra.mxu0 %v1761
        %2306 = vmatpush.bf16.msra.mxu0 %v1749
        %2307 = vmatpush.bf16.msra.mxu0 %v1737
        %2308 = vmatpush.bf16.msra.mxu0 %v1725
        %2309 = vmatmul.bf16.gmra.mxu0 %v765
        %v2310 = vpop.f32.mrf.mxu0
        %v2311 = vadd.f32 %v581, %v2310
        %v2312 = vpop.f32.mrf.mxu0
        %v2313 = vadd.f32 %v581, %v2312
        %2314 = vmatmul.bf16.gmra.mxu0 %v768
        %v2315 = vpop.f32.mrf.mxu0
        %v2316 = vadd.f32 %v581, %v2315
        %v2317 = vpop.f32.mrf.mxu0
        %v2318 = vadd.f32 %v581, %v2317
        %2319 = vmatmul.bf16.gmra.mxu0 %v771
        %v2320 = vpop.f32.mrf.mxu0
        %v2321 = vadd.f32 %v581, %v2320
        %v2322 = vpop.f32.mrf.mxu0
        %v2323 = vadd.f32 %v581, %v2322
        %2324 = vmatmul.bf16.gmra.mxu0 %v774
        %v2325 = vpop.f32.mrf.mxu0
        %v2326 = vadd.f32 %v581, %v2325
        %v2327 = vpop.f32.mrf.mxu0
        %v2328 = vadd.f32 %v581, %v2327
        %2329 = vmatmul.bf16.gmra.mxu0 %v777
        %v2330 = vpop.f32.mrf.mxu0
        %v2331 = vadd.f32 %v581, %v2330
        %v2332 = vpop.f32.mrf.mxu0
        %v2333 = vadd.f32 %v581, %v2332
        %2334 = vmatmul.bf16.gmra.mxu0 %v780
        %v2335 = vpop.f32.mrf.mxu0
        %v2336 = vadd.f32 %v581, %v2335
        %v2337 = vpop.f32.mrf.mxu0
        %v2338 = vadd.f32 %v581, %v2337
        %2339 = vmatmul.bf16.gmra.mxu0 %v783
        %v2340 = vpop.f32.mrf.mxu0
        %v2341 = vadd.f32 %v581, %v2340
        %v2342 = vpop.f32.mrf.mxu0
        %v2343 = vadd.f32 %v581, %v2342
        %2344 = vmatmul.bf16.gmra.mxu0 %v786
        %v2345 = vpop.f32.mrf.mxu0
        %v2346 = vadd.f32 %v581, %v2345
        %v2347 = vpop.f32.mrf.mxu0
        %v2348 = vadd.f32 %v581, %v2347
        %2349 = vmatmul.bf16.gmra.mxu0 %v789
        %v2350 = vpop.f32.mrf.mxu0
        %v2351 = vadd.f32 %v581, %v2350
        %v2352 = vpop.f32.mrf.mxu0
        %v2353 = vadd.f32 %v581, %v2352
        %2354 = vmatmul.bf16.gmra.mxu0 %v792
        %v2355 = vpop.f32.mrf.mxu0
        %v2356 = vadd.f32 %v581, %v2355
        %v2357 = vpop.f32.mrf.mxu0
        %v2358 = vadd.f32 %v581, %v2357
        %2359 = vmatmul.bf16.gmra.mxu0 %v795
        %v2360 = vpop.f32.mrf.mxu0
        %v2361 = vadd.f32 %v581, %v2360
        %v2362 = vpop.f32.mrf.mxu0
        %v2363 = vadd.f32 %v581, %v2362
        %2364 = vmatmul.bf16.gmra.mxu0 %v798
        %v2365 = vpop.f32.mrf.mxu0
        %v2366 = vadd.f32 %v581, %v2365
        %v2367 = vpop.f32.mrf.mxu0
        %v2368 = vadd.f32 %v581, %v2367
        %2369 = vmatmul.bf16.gmra.mxu0 %v801
        %v2370 = vpop.f32.mrf.mxu0
        %v2371 = vadd.f32 %v581, %v2370
        %v2372 = vpop.f32.mrf.mxu0
        %v2373 = vadd.f32 %v581, %v2372
        %2374 = vmatmul.bf16.gmra.mxu0 %v804
        %v2375 = vpop.f32.mrf.mxu0
        %v2376 = vadd.f32 %v581, %v2375
        %v2377 = vpop.f32.mrf.mxu0
        %v2378 = vadd.f32 %v581, %v2377
        %2379 = vmatmul.bf16.gmra.mxu0 %v807
        %v2380 = vpop.f32.mrf.mxu0
        %v2381 = vadd.f32 %v581, %v2380
        %v2382 = vpop.f32.mrf.mxu0
        %v2383 = vadd.f32 %v581, %v2382
        %2384 = vmatmul.bf16.gmra.mxu0 %v810
        %v2385 = vpop.f32.mrf.mxu0
        %v2386 = vadd.f32 %v581, %v2385
        %v2387 = vpop.f32.mrf.mxu0
        %v2388 = vadd.f32 %v581, %v2387
        %2389 = vdwg.mxu0
        %2390 = vmatpush.bf16.msra.mxu0 %v1905
        %2391 = vmatpush.bf16.msra.mxu0 %v1893
        %2392 = vmatpush.bf16.msra.mxu0 %v1881
        %2393 = vmatpush.bf16.msra.mxu0 %v1869
        %2394 = vmatpush.bf16.msra.mxu0 %v1857
        %2395 = vmatpush.bf16.msra.mxu0 %v1845
        %2396 = vmatpush.bf16.msra.mxu0 %v1833
        %2397 = vmatpush.bf16.msra.mxu0 %v1821
        %2398 = vmatmul.bf16.gmra.mxu0 %v766
        %v2399 = vpop.f32.mrf.mxu0
        %v2400 = vadd.f32 %v2311, %v2399
        %v2401 = vpop.f32.mrf.mxu0
        %v2402 = vadd.f32 %v2313, %v2401
        %2403 = vmatmul.bf16.gmra.mxu0 %v769
        %v2404 = vpop.f32.mrf.mxu0
        %v2405 = vadd.f32 %v2316, %v2404
        %v2406 = vpop.f32.mrf.mxu0
        %v2407 = vadd.f32 %v2318, %v2406
        %2408 = vmatmul.bf16.gmra.mxu0 %v772
        %v2409 = vpop.f32.mrf.mxu0
        %v2410 = vadd.f32 %v2321, %v2409
        %v2411 = vpop.f32.mrf.mxu0
        %v2412 = vadd.f32 %v2323, %v2411
        %2413 = vmatmul.bf16.gmra.mxu0 %v775
        %v2414 = vpop.f32.mrf.mxu0
        %v2415 = vadd.f32 %v2326, %v2414
        %v2416 = vpop.f32.mrf.mxu0
        %v2417 = vadd.f32 %v2328, %v2416
        %2418 = vmatmul.bf16.gmra.mxu0 %v778
        %v2419 = vpop.f32.mrf.mxu0
        %v2420 = vadd.f32 %v2331, %v2419
        %v2421 = vpop.f32.mrf.mxu0
        %v2422 = vadd.f32 %v2333, %v2421
        %2423 = vmatmul.bf16.gmra.mxu0 %v781
        %v2424 = vpop.f32.mrf.mxu0
        %v2425 = vadd.f32 %v2336, %v2424
        %v2426 = vpop.f32.mrf.mxu0
        %v2427 = vadd.f32 %v2338, %v2426
        %2428 = vmatmul.bf16.gmra.mxu0 %v784
        %v2429 = vpop.f32.mrf.mxu0
        %v2430 = vadd.f32 %v2341, %v2429
        %v2431 = vpop.f32.mrf.mxu0
        %v2432 = vadd.f32 %v2343, %v2431
        %2433 = vmatmul.bf16.gmra.mxu0 %v787
        %v2434 = vpop.f32.mrf.mxu0
        %v2435 = vadd.f32 %v2346, %v2434
        %v2436 = vpop.f32.mrf.mxu0
        %v2437 = vadd.f32 %v2348, %v2436
        %2438 = vmatmul.bf16.gmra.mxu0 %v790
        %v2439 = vpop.f32.mrf.mxu0
        %v2440 = vadd.f32 %v2351, %v2439
        %v2441 = vpop.f32.mrf.mxu0
        %v2442 = vadd.f32 %v2353, %v2441
        %2443 = vmatmul.bf16.gmra.mxu0 %v793
        %v2444 = vpop.f32.mrf.mxu0
        %v2445 = vadd.f32 %v2356, %v2444
        %v2446 = vpop.f32.mrf.mxu0
        %v2447 = vadd.f32 %v2358, %v2446
        %2448 = vmatmul.bf16.gmra.mxu0 %v796
        %v2449 = vpop.f32.mrf.mxu0
        %v2450 = vadd.f32 %v2361, %v2449
        %v2451 = vpop.f32.mrf.mxu0
        %v2452 = vadd.f32 %v2363, %v2451
        %2453 = vmatmul.bf16.gmra.mxu0 %v799
        %v2454 = vpop.f32.mrf.mxu0
        %v2455 = vadd.f32 %v2366, %v2454
        %v2456 = vpop.f32.mrf.mxu0
        %v2457 = vadd.f32 %v2368, %v2456
        %2458 = vmatmul.bf16.gmra.mxu0 %v802
        %v2459 = vpop.f32.mrf.mxu0
        %v2460 = vadd.f32 %v2371, %v2459
        %v2461 = vpop.f32.mrf.mxu0
        %v2462 = vadd.f32 %v2373, %v2461
        %2463 = vmatmul.bf16.gmra.mxu0 %v805
        %v2464 = vpop.f32.mrf.mxu0
        %v2465 = vadd.f32 %v2376, %v2464
        %v2466 = vpop.f32.mrf.mxu0
        %v2467 = vadd.f32 %v2378, %v2466
        %2468 = vmatmul.bf16.gmra.mxu0 %v808
        %v2469 = vpop.f32.mrf.mxu0
        %v2470 = vadd.f32 %v2381, %v2469
        %v2471 = vpop.f32.mrf.mxu0
        %v2472 = vadd.f32 %v2383, %v2471
        %2473 = vmatmul.bf16.gmra.mxu0 %v811
        %v2474 = vpop.f32.mrf.mxu0
        %v2475 = vadd.f32 %v2386, %v2474
        %v2476 = vpop.f32.mrf.mxu0
        %v2477 = vadd.f32 %v2388, %v2476
        %2478 = vdwg.mxu0
        %2479 = vmatpush.bf16.msra.mxu0 %v2001
        %2480 = vmatpush.bf16.msra.mxu0 %v1989
        %2481 = vmatpush.bf16.msra.mxu0 %v1977
        %2482 = vmatpush.bf16.msra.mxu0 %v1965
        %2483 = vmatpush.bf16.msra.mxu0 %v1953
        %2484 = vmatpush.bf16.msra.mxu0 %v1941
        %2485 = vmatpush.bf16.msra.mxu0 %v1929
        %2486 = vmatpush.bf16.msra.mxu0 %v1917
        %2487 = vmatmul.bf16.gmra.mxu0 %v767
        %v2488 = vpop.f32.mrf.mxu0
        %v2489 = vadd.f32 %v2400, %v2488
        %v2490 = vpop.f32.mrf.mxu0
        %v2491 = vadd.f32 %v2402, %v2490
        %2492 = vmatmul.bf16.gmra.mxu0 %v770
        %v2493 = vpop.f32.mrf.mxu0
        %v2494 = vadd.f32 %v2405, %v2493
        %v2495 = vpop.f32.mrf.mxu0
        %v2496 = vadd.f32 %v2407, %v2495
        %2497 = vmatmul.bf16.gmra.mxu0 %v773
        %v2498 = vpop.f32.mrf.mxu0
        %v2499 = vadd.f32 %v2410, %v2498
        %v2500 = vpop.f32.mrf.mxu0
        %v2501 = vadd.f32 %v2412, %v2500
        %2502 = vmatmul.bf16.gmra.mxu0 %v776
        %v2503 = vpop.f32.mrf.mxu0
        %v2504 = vadd.f32 %v2415, %v2503
        %v2505 = vpop.f32.mrf.mxu0
        %v2506 = vadd.f32 %v2417, %v2505
        %2507 = vmatmul.bf16.gmra.mxu0 %v779
        %v2508 = vpop.f32.mrf.mxu0
        %v2509 = vadd.f32 %v2420, %v2508
        %v2510 = vpop.f32.mrf.mxu0
        %v2511 = vadd.f32 %v2422, %v2510
        %2512 = vmatmul.bf16.gmra.mxu0 %v782
        %v2513 = vpop.f32.mrf.mxu0
        %v2514 = vadd.f32 %v2425, %v2513
        %v2515 = vpop.f32.mrf.mxu0
        %v2516 = vadd.f32 %v2427, %v2515
        %2517 = vmatmul.bf16.gmra.mxu0 %v785
        %v2518 = vpop.f32.mrf.mxu0
        %v2519 = vadd.f32 %v2430, %v2518
        %v2520 = vpop.f32.mrf.mxu0
        %v2521 = vadd.f32 %v2432, %v2520
        %2522 = vmatmul.bf16.gmra.mxu0 %v788
        %v2523 = vpop.f32.mrf.mxu0
        %v2524 = vadd.f32 %v2435, %v2523
        %v2525 = vpop.f32.mrf.mxu0
        %v2526 = vadd.f32 %v2437, %v2525
        %2527 = vmatmul.bf16.gmra.mxu0 %v791
        %v2528 = vpop.f32.mrf.mxu0
        %v2529 = vadd.f32 %v2440, %v2528
        %v2530 = vpop.f32.mrf.mxu0
        %v2531 = vadd.f32 %v2442, %v2530
        %2532 = vmatmul.bf16.gmra.mxu0 %v794
        %v2533 = vpop.f32.mrf.mxu0
        %v2534 = vadd.f32 %v2445, %v2533
        %v2535 = vpop.f32.mrf.mxu0
        %v2536 = vadd.f32 %v2447, %v2535
        %2537 = vmatmul.bf16.gmra.mxu0 %v797
        %v2538 = vpop.f32.mrf.mxu0
        %v2539 = vadd.f32 %v2450, %v2538
        %v2540 = vpop.f32.mrf.mxu0
        %v2541 = vadd.f32 %v2452, %v2540
        %2542 = vmatmul.bf16.gmra.mxu0 %v800
        %v2543 = vpop.f32.mrf.mxu0
        %v2544 = vadd.f32 %v2455, %v2543
        %v2545 = vpop.f32.mrf.mxu0
        %v2546 = vadd.f32 %v2457, %v2545
        %2547 = vmatmul.bf16.gmra.mxu0 %v803
        %v2548 = vpop.f32.mrf.mxu0
        %v2549 = vadd.f32 %v2460, %v2548
        %v2550 = vpop.f32.mrf.mxu0
        %v2551 = vadd.f32 %v2462, %v2550
        %2552 = vmatmul.bf16.gmra.mxu0 %v806
        %v2553 = vpop.f32.mrf.mxu0
        %v2554 = vadd.f32 %v2465, %v2553
        %v2555 = vpop.f32.mrf.mxu0
        %v2556 = vadd.f32 %v2467, %v2555
        %2557 = vmatmul.bf16.gmra.mxu0 %v809
        %v2558 = vpop.f32.mrf.mxu0
        %v2559 = vadd.f32 %v2470, %v2558
        %v2560 = vpop.f32.mrf.mxu0
        %v2561 = vadd.f32 %v2472, %v2560
        %2562 = vmatmul.bf16.gmra.mxu0 %v812
        %v2563 = vpop.f32.mrf.mxu0
        %v2564 = vadd.f32 %v2475, %v2563
        %v2565 = vpop.f32.mrf.mxu0
        %v2566 = vadd.f32 %v2477, %v2565
        %2567 = vdwg.mxu0
        %2568 = vmatpush.bf16.msra.mxu0 %v1810
        %2569 = vmatpush.bf16.msra.mxu0 %v1798
        %2570 = vmatpush.bf16.msra.mxu0 %v1786
        %2571 = vmatpush.bf16.msra.mxu0 %v1774
        %2572 = vmatpush.bf16.msra.mxu0 %v1762
        %2573 = vmatpush.bf16.msra.mxu0 %v1750
        %2574 = vmatpush.bf16.msra.mxu0 %v1738
        %2575 = vmatpush.bf16.msra.mxu0 %v1726
        %2576 = vmatmul.bf16.gmra.mxu0 %v765
        %v2577 = vpop.f32.mrf.mxu0
        %v2578 = vadd.f32 %v582, %v2577
        %v2579 = vpop.f32.mrf.mxu0
        %v2580 = vadd.f32 %v582, %v2579
        %2581 = vmatmul.bf16.gmra.mxu0 %v768
        %v2582 = vpop.f32.mrf.mxu0
        %v2583 = vadd.f32 %v582, %v2582
        %v2584 = vpop.f32.mrf.mxu0
        %v2585 = vadd.f32 %v582, %v2584
        %2586 = vmatmul.bf16.gmra.mxu0 %v771
        %v2587 = vpop.f32.mrf.mxu0
        %v2588 = vadd.f32 %v582, %v2587
        %v2589 = vpop.f32.mrf.mxu0
        %v2590 = vadd.f32 %v582, %v2589
        %2591 = vmatmul.bf16.gmra.mxu0 %v774
        %v2592 = vpop.f32.mrf.mxu0
        %v2593 = vadd.f32 %v582, %v2592
        %v2594 = vpop.f32.mrf.mxu0
        %v2595 = vadd.f32 %v582, %v2594
        %2596 = vmatmul.bf16.gmra.mxu0 %v777
        %v2597 = vpop.f32.mrf.mxu0
        %v2598 = vadd.f32 %v582, %v2597
        %v2599 = vpop.f32.mrf.mxu0
        %v2600 = vadd.f32 %v582, %v2599
        %2601 = vmatmul.bf16.gmra.mxu0 %v780
        %v2602 = vpop.f32.mrf.mxu0
        %v2603 = vadd.f32 %v582, %v2602
        %v2604 = vpop.f32.mrf.mxu0
        %v2605 = vadd.f32 %v582, %v2604
        %2606 = vmatmul.bf16.gmra.mxu0 %v783
        %v2607 = vpop.f32.mrf.mxu0
        %v2608 = vadd.f32 %v582, %v2607
        %v2609 = vpop.f32.mrf.mxu0
        %v2610 = vadd.f32 %v582, %v2609
        %2611 = vmatmul.bf16.gmra.mxu0 %v786
        %v2612 = vpop.f32.mrf.mxu0
        %v2613 = vadd.f32 %v582, %v2612
        %v2614 = vpop.f32.mrf.mxu0
        %v2615 = vadd.f32 %v582, %v2614
        %2616 = vmatmul.bf16.gmra.mxu0 %v789
        %v2617 = vpop.f32.mrf.mxu0
        %v2618 = vadd.f32 %v582, %v2617
        %v2619 = vpop.f32.mrf.mxu0
        %v2620 = vadd.f32 %v582, %v2619
        %2621 = vmatmul.bf16.gmra.mxu0 %v792
        %v2622 = vpop.f32.mrf.mxu0
        %v2623 = vadd.f32 %v582, %v2622
        %v2624 = vpop.f32.mrf.mxu0
        %v2625 = vadd.f32 %v582, %v2624
        %2626 = vmatmul.bf16.gmra.mxu0 %v795
        %v2627 = vpop.f32.mrf.mxu0
        %v2628 = vadd.f32 %v582, %v2627
        %v2629 = vpop.f32.mrf.mxu0
        %v2630 = vadd.f32 %v582, %v2629
        %2631 = vmatmul.bf16.gmra.mxu0 %v798
        %v2632 = vpop.f32.mrf.mxu0
        %v2633 = vadd.f32 %v582, %v2632
        %v2634 = vpop.f32.mrf.mxu0
        %v2635 = vadd.f32 %v582, %v2634
        %2636 = vmatmul.bf16.gmra.mxu0 %v801
        %v2637 = vpop.f32.mrf.mxu0
        %v2638 = vadd.f32 %v582, %v2637
        %v2639 = vpop.f32.mrf.mxu0
        %v2640 = vadd.f32 %v582, %v2639
        %2641 = vmatmul.bf16.gmra.mxu0 %v804
        %v2642 = vpop.f32.mrf.mxu0
        %v2643 = vadd.f32 %v582, %v2642
        %v2644 = vpop.f32.mrf.mxu0
        %v2645 = vadd.f32 %v582, %v2644
        %2646 = vmatmul.bf16.gmra.mxu0 %v807
        %v2647 = vpop.f32.mrf.mxu0
        %v2648 = vadd.f32 %v582, %v2647
        %v2649 = vpop.f32.mrf.mxu0
        %v2650 = vadd.f32 %v582, %v2649
        %2651 = vmatmul.bf16.gmra.mxu0 %v810
        %v2652 = vpop.f32.mrf.mxu0
        %v2653 = vadd.f32 %v582, %v2652
        %v2654 = vpop.f32.mrf.mxu0
        %v2655 = vadd.f32 %v582, %v2654
        %2656 = vdwg.mxu0
        %2657 = vmatpush.bf16.msra.mxu0 %v1906
        %2658 = vmatpush.bf16.msra.mxu0 %v1894
        %2659 = vmatpush.bf16.msra.mxu0 %v1882
        %2660 = vmatpush.bf16.msra.mxu0 %v1870
        %2661 = vmatpush.bf16.msra.mxu0 %v1858
        %2662 = vmatpush.bf16.msra.mxu0 %v1846
        %2663 = vmatpush.bf16.msra.mxu0 %v1834
        %2664 = vmatpush.bf16.msra.mxu0 %v1822
        %2665 = vmatmul.bf16.gmra.mxu0 %v766
        %v2666 = vpop.f32.mrf.mxu0
        %v2667 = vadd.f32 %v2578, %v2666
        %v2668 = vpop.f32.mrf.mxu0
        %v2669 = vadd.f32 %v2580, %v2668
        %2670 = vmatmul.bf16.gmra.mxu0 %v769
        %v2671 = vpop.f32.mrf.mxu0
        %v2672 = vadd.f32 %v2583, %v2671
        %v2673 = vpop.f32.mrf.mxu0
        %v2674 = vadd.f32 %v2585, %v2673
        %2675 = vmatmul.bf16.gmra.mxu0 %v772
        %v2676 = vpop.f32.mrf.mxu0
        %v2677 = vadd.f32 %v2588, %v2676
        %v2678 = vpop.f32.mrf.mxu0
        %v2679 = vadd.f32 %v2590, %v2678
        %2680 = vmatmul.bf16.gmra.mxu0 %v775
        %v2681 = vpop.f32.mrf.mxu0
        %v2682 = vadd.f32 %v2593, %v2681
        %v2683 = vpop.f32.mrf.mxu0
        %v2684 = vadd.f32 %v2595, %v2683
        %2685 = vmatmul.bf16.gmra.mxu0 %v778
        %v2686 = vpop.f32.mrf.mxu0
        %v2687 = vadd.f32 %v2598, %v2686
        %v2688 = vpop.f32.mrf.mxu0
        %v2689 = vadd.f32 %v2600, %v2688
        %2690 = vmatmul.bf16.gmra.mxu0 %v781
        %v2691 = vpop.f32.mrf.mxu0
        %v2692 = vadd.f32 %v2603, %v2691
        %v2693 = vpop.f32.mrf.mxu0
        %v2694 = vadd.f32 %v2605, %v2693
        %2695 = vmatmul.bf16.gmra.mxu0 %v784
        %v2696 = vpop.f32.mrf.mxu0
        %v2697 = vadd.f32 %v2608, %v2696
        %v2698 = vpop.f32.mrf.mxu0
        %v2699 = vadd.f32 %v2610, %v2698
        %2700 = vmatmul.bf16.gmra.mxu0 %v787
        %v2701 = vpop.f32.mrf.mxu0
        %v2702 = vadd.f32 %v2613, %v2701
        %v2703 = vpop.f32.mrf.mxu0
        %v2704 = vadd.f32 %v2615, %v2703
        %2705 = vmatmul.bf16.gmra.mxu0 %v790
        %v2706 = vpop.f32.mrf.mxu0
        %v2707 = vadd.f32 %v2618, %v2706
        %v2708 = vpop.f32.mrf.mxu0
        %v2709 = vadd.f32 %v2620, %v2708
        %2710 = vmatmul.bf16.gmra.mxu0 %v793
        %v2711 = vpop.f32.mrf.mxu0
        %v2712 = vadd.f32 %v2623, %v2711
        %v2713 = vpop.f32.mrf.mxu0
        %v2714 = vadd.f32 %v2625, %v2713
        %2715 = vmatmul.bf16.gmra.mxu0 %v796
        %v2716 = vpop.f32.mrf.mxu0
        %v2717 = vadd.f32 %v2628, %v2716
        %v2718 = vpop.f32.mrf.mxu0
        %v2719 = vadd.f32 %v2630, %v2718
        %2720 = vmatmul.bf16.gmra.mxu0 %v799
        %v2721 = vpop.f32.mrf.mxu0
        %v2722 = vadd.f32 %v2633, %v2721
        %v2723 = vpop.f32.mrf.mxu0
        %v2724 = vadd.f32 %v2635, %v2723
        %2725 = vmatmul.bf16.gmra.mxu0 %v802
        %v2726 = vpop.f32.mrf.mxu0
        %v2727 = vadd.f32 %v2638, %v2726
        %v2728 = vpop.f32.mrf.mxu0
        %v2729 = vadd.f32 %v2640, %v2728
        %2730 = vmatmul.bf16.gmra.mxu0 %v805
        %v2731 = vpop.f32.mrf.mxu0
        %v2732 = vadd.f32 %v2643, %v2731
        %v2733 = vpop.f32.mrf.mxu0
        %v2734 = vadd.f32 %v2645, %v2733
        %2735 = vmatmul.bf16.gmra.mxu0 %v808
        %v2736 = vpop.f32.mrf.mxu0
        %v2737 = vadd.f32 %v2648, %v2736
        %v2738 = vpop.f32.mrf.mxu0
        %v2739 = vadd.f32 %v2650, %v2738
        %2740 = vmatmul.bf16.gmra.mxu0 %v811
        %v2741 = vpop.f32.mrf.mxu0
        %v2742 = vadd.f32 %v2653, %v2741
        %v2743 = vpop.f32.mrf.mxu0
        %v2744 = vadd.f32 %v2655, %v2743
        %2745 = vdwg.mxu0
        %2746 = vmatpush.bf16.msra.mxu0 %v2002
        %2747 = vmatpush.bf16.msra.mxu0 %v1990
        %2748 = vmatpush.bf16.msra.mxu0 %v1978
        %2749 = vmatpush.bf16.msra.mxu0 %v1966
        %2750 = vmatpush.bf16.msra.mxu0 %v1954
        %2751 = vmatpush.bf16.msra.mxu0 %v1942
        %2752 = vmatpush.bf16.msra.mxu0 %v1930
        %2753 = vmatpush.bf16.msra.mxu0 %v1918
        %2754 = vmatmul.bf16.gmra.mxu0 %v767
        %v2755 = vpop.f32.mrf.mxu0
        %v2756 = vadd.f32 %v2667, %v2755
        %v2757 = vpop.f32.mrf.mxu0
        %v2758 = vadd.f32 %v2669, %v2757
        %2759 = vmatmul.bf16.gmra.mxu0 %v770
        %v2760 = vpop.f32.mrf.mxu0
        %v2761 = vadd.f32 %v2672, %v2760
        %v2762 = vpop.f32.mrf.mxu0
        %v2763 = vadd.f32 %v2674, %v2762
        %2764 = vmatmul.bf16.gmra.mxu0 %v773
        %v2765 = vpop.f32.mrf.mxu0
        %v2766 = vadd.f32 %v2677, %v2765
        %v2767 = vpop.f32.mrf.mxu0
        %v2768 = vadd.f32 %v2679, %v2767
        %2769 = vmatmul.bf16.gmra.mxu0 %v776
        %v2770 = vpop.f32.mrf.mxu0
        %v2771 = vadd.f32 %v2682, %v2770
        %v2772 = vpop.f32.mrf.mxu0
        %v2773 = vadd.f32 %v2684, %v2772
        %2774 = vmatmul.bf16.gmra.mxu0 %v779
        %v2775 = vpop.f32.mrf.mxu0
        %v2776 = vadd.f32 %v2687, %v2775
        %v2777 = vpop.f32.mrf.mxu0
        %v2778 = vadd.f32 %v2689, %v2777
        %2779 = vmatmul.bf16.gmra.mxu0 %v782
        %v2780 = vpop.f32.mrf.mxu0
        %v2781 = vadd.f32 %v2692, %v2780
        %v2782 = vpop.f32.mrf.mxu0
        %v2783 = vadd.f32 %v2694, %v2782
        %2784 = vmatmul.bf16.gmra.mxu0 %v785
        %v2785 = vpop.f32.mrf.mxu0
        %v2786 = vadd.f32 %v2697, %v2785
        %v2787 = vpop.f32.mrf.mxu0
        %v2788 = vadd.f32 %v2699, %v2787
        %2789 = vmatmul.bf16.gmra.mxu0 %v788
        %v2790 = vpop.f32.mrf.mxu0
        %v2791 = vadd.f32 %v2702, %v2790
        %v2792 = vpop.f32.mrf.mxu0
        %v2793 = vadd.f32 %v2704, %v2792
        %2794 = vmatmul.bf16.gmra.mxu0 %v791
        %v2795 = vpop.f32.mrf.mxu0
        %v2796 = vadd.f32 %v2707, %v2795
        %v2797 = vpop.f32.mrf.mxu0
        %v2798 = vadd.f32 %v2709, %v2797
        %2799 = vmatmul.bf16.gmra.mxu0 %v794
        %v2800 = vpop.f32.mrf.mxu0
        %v2801 = vadd.f32 %v2712, %v2800
        %v2802 = vpop.f32.mrf.mxu0
        %v2803 = vadd.f32 %v2714, %v2802
        %2804 = vmatmul.bf16.gmra.mxu0 %v797
        %v2805 = vpop.f32.mrf.mxu0
        %v2806 = vadd.f32 %v2717, %v2805
        %v2807 = vpop.f32.mrf.mxu0
        %v2808 = vadd.f32 %v2719, %v2807
        %2809 = vmatmul.bf16.gmra.mxu0 %v800
        %v2810 = vpop.f32.mrf.mxu0
        %v2811 = vadd.f32 %v2722, %v2810
        %v2812 = vpop.f32.mrf.mxu0
        %v2813 = vadd.f32 %v2724, %v2812
        %2814 = vmatmul.bf16.gmra.mxu0 %v803
        %v2815 = vpop.f32.mrf.mxu0
        %v2816 = vadd.f32 %v2727, %v2815
        %v2817 = vpop.f32.mrf.mxu0
        %v2818 = vadd.f32 %v2729, %v2817
        %2819 = vmatmul.bf16.gmra.mxu0 %v806
        %v2820 = vpop.f32.mrf.mxu0
        %v2821 = vadd.f32 %v2732, %v2820
        %v2822 = vpop.f32.mrf.mxu0
        %v2823 = vadd.f32 %v2734, %v2822
        %2824 = vmatmul.bf16.gmra.mxu0 %v809
        %v2825 = vpop.f32.mrf.mxu0
        %v2826 = vadd.f32 %v2737, %v2825
        %v2827 = vpop.f32.mrf.mxu0
        %v2828 = vadd.f32 %v2739, %v2827
        %2829 = vmatmul.bf16.gmra.mxu0 %v812
        %v2830 = vpop.f32.mrf.mxu0
        %v2831 = vadd.f32 %v2742, %v2830
        %v2832 = vpop.f32.mrf.mxu0
        %v2833 = vadd.f32 %v2744, %v2832
        %2834 = vdwg.mxu0
        %2835 = vmatpush.bf16.msra.mxu0 %v1811
        %2836 = vmatpush.bf16.msra.mxu0 %v1799
        %2837 = vmatpush.bf16.msra.mxu0 %v1787
        %2838 = vmatpush.bf16.msra.mxu0 %v1775
        %2839 = vmatpush.bf16.msra.mxu0 %v1763
        %2840 = vmatpush.bf16.msra.mxu0 %v1751
        %2841 = vmatpush.bf16.msra.mxu0 %v1739
        %2842 = vmatpush.bf16.msra.mxu0 %v1727
        %2843 = vmatmul.bf16.gmra.mxu0 %v765
        %v2844 = vpop.f32.mrf.mxu0
        %v2845 = vadd.f32 %v583, %v2844
        %v2846 = vpop.f32.mrf.mxu0
        %v2847 = vadd.f32 %v583, %v2846
        %2848 = vmatmul.bf16.gmra.mxu0 %v768
        %v2849 = vpop.f32.mrf.mxu0
        %v2850 = vadd.f32 %v583, %v2849
        %v2851 = vpop.f32.mrf.mxu0
        %v2852 = vadd.f32 %v583, %v2851
        %2853 = vmatmul.bf16.gmra.mxu0 %v771
        %v2854 = vpop.f32.mrf.mxu0
        %v2855 = vadd.f32 %v583, %v2854
        %v2856 = vpop.f32.mrf.mxu0
        %v2857 = vadd.f32 %v583, %v2856
        %2858 = vmatmul.bf16.gmra.mxu0 %v774
        %v2859 = vpop.f32.mrf.mxu0
        %v2860 = vadd.f32 %v583, %v2859
        %v2861 = vpop.f32.mrf.mxu0
        %v2862 = vadd.f32 %v583, %v2861
        %2863 = vmatmul.bf16.gmra.mxu0 %v777
        %v2864 = vpop.f32.mrf.mxu0
        %v2865 = vadd.f32 %v583, %v2864
        %v2866 = vpop.f32.mrf.mxu0
        %v2867 = vadd.f32 %v583, %v2866
        %2868 = vmatmul.bf16.gmra.mxu0 %v780
        %v2869 = vpop.f32.mrf.mxu0
        %v2870 = vadd.f32 %v583, %v2869
        %v2871 = vpop.f32.mrf.mxu0
        %v2872 = vadd.f32 %v583, %v2871
        %2873 = vmatmul.bf16.gmra.mxu0 %v783
        %v2874 = vpop.f32.mrf.mxu0
        %v2875 = vadd.f32 %v583, %v2874
        %v2876 = vpop.f32.mrf.mxu0
        %v2877 = vadd.f32 %v583, %v2876
        %2878 = vmatmul.bf16.gmra.mxu0 %v786
        %v2879 = vpop.f32.mrf.mxu0
        %v2880 = vadd.f32 %v583, %v2879
        %v2881 = vpop.f32.mrf.mxu0
        %v2882 = vadd.f32 %v583, %v2881
        %2883 = vmatmul.bf16.gmra.mxu0 %v789
        %v2884 = vpop.f32.mrf.mxu0
        %v2885 = vadd.f32 %v583, %v2884
        %v2886 = vpop.f32.mrf.mxu0
        %v2887 = vadd.f32 %v583, %v2886
        %2888 = vmatmul.bf16.gmra.mxu0 %v792
        %v2889 = vpop.f32.mrf.mxu0
        %v2890 = vadd.f32 %v583, %v2889
        %v2891 = vpop.f32.mrf.mxu0
        %v2892 = vadd.f32 %v583, %v2891
        %2893 = vmatmul.bf16.gmra.mxu0 %v795
        %v2894 = vpop.f32.mrf.mxu0
        %v2895 = vadd.f32 %v583, %v2894
        %v2896 = vpop.f32.mrf.mxu0
        %v2897 = vadd.f32 %v583, %v2896
        %2898 = vmatmul.bf16.gmra.mxu0 %v798
        %v2899 = vpop.f32.mrf.mxu0
        %v2900 = vadd.f32 %v583, %v2899
        %v2901 = vpop.f32.mrf.mxu0
        %v2902 = vadd.f32 %v583, %v2901
        %2903 = vmatmul.bf16.gmra.mxu0 %v801
        %v2904 = vpop.f32.mrf.mxu0
        %v2905 = vadd.f32 %v583, %v2904
        %v2906 = vpop.f32.mrf.mxu0
        %v2907 = vadd.f32 %v583, %v2906
        %2908 = vmatmul.bf16.gmra.mxu0 %v804
        %v2909 = vpop.f32.mrf.mxu0
        %v2910 = vadd.f32 %v583, %v2909
        %v2911 = vpop.f32.mrf.mxu0
        %v2912 = vadd.f32 %v583, %v2911
        %2913 = vmatmul.bf16.gmra.mxu0 %v807
        %v2914 = vpop.f32.mrf.mxu0
        %v2915 = vadd.f32 %v583, %v2914
        %v2916 = vpop.f32.mrf.mxu0
        %v2917 = vadd.f32 %v583, %v2916
        %2918 = vmatmul.bf16.gmra.mxu0 %v810
        %v2919 = vpop.f32.mrf.mxu0
        %v2920 = vadd.f32 %v583, %v2919
        %v2921 = vpop.f32.mrf.mxu0
        %v2922 = vadd.f32 %v583, %v2921
        %2923 = vdwg.mxu0
        %2924 = vmatpush.bf16.msra.mxu0 %v1907
        %2925 = vmatpush.bf16.msra.mxu0 %v1895
        %2926 = vmatpush.bf16.msra.mxu0 %v1883
        %2927 = vmatpush.bf16.msra.mxu0 %v1871
        %2928 = vmatpush.bf16.msra.mxu0 %v1859
        %2929 = vmatpush.bf16.msra.mxu0 %v1847
        %2930 = vmatpush.bf16.msra.mxu0 %v1835
        %2931 = vmatpush.bf16.msra.mxu0 %v1823
        %2932 = vmatmul.bf16.gmra.mxu0 %v766
        %v2933 = vpop.f32.mrf.mxu0
        %v2934 = vadd.f32 %v2845, %v2933
        %v2935 = vpop.f32.mrf.mxu0
        %v2936 = vadd.f32 %v2847, %v2935
        %2937 = vmatmul.bf16.gmra.mxu0 %v769
        %v2938 = vpop.f32.mrf.mxu0
        %v2939 = vadd.f32 %v2850, %v2938
        %v2940 = vpop.f32.mrf.mxu0
        %v2941 = vadd.f32 %v2852, %v2940
        %2942 = vmatmul.bf16.gmra.mxu0 %v772
        %v2943 = vpop.f32.mrf.mxu0
        %v2944 = vadd.f32 %v2855, %v2943
        %v2945 = vpop.f32.mrf.mxu0
        %v2946 = vadd.f32 %v2857, %v2945
        %2947 = vmatmul.bf16.gmra.mxu0 %v775
        %v2948 = vpop.f32.mrf.mxu0
        %v2949 = vadd.f32 %v2860, %v2948
        %v2950 = vpop.f32.mrf.mxu0
        %v2951 = vadd.f32 %v2862, %v2950
        %2952 = vmatmul.bf16.gmra.mxu0 %v778
        %v2953 = vpop.f32.mrf.mxu0
        %v2954 = vadd.f32 %v2865, %v2953
        %v2955 = vpop.f32.mrf.mxu0
        %v2956 = vadd.f32 %v2867, %v2955
        %2957 = vmatmul.bf16.gmra.mxu0 %v781
        %v2958 = vpop.f32.mrf.mxu0
        %v2959 = vadd.f32 %v2870, %v2958
        %v2960 = vpop.f32.mrf.mxu0
        %v2961 = vadd.f32 %v2872, %v2960
        %2962 = vmatmul.bf16.gmra.mxu0 %v784
        %v2963 = vpop.f32.mrf.mxu0
        %v2964 = vadd.f32 %v2875, %v2963
        %v2965 = vpop.f32.mrf.mxu0
        %v2966 = vadd.f32 %v2877, %v2965
        %2967 = vmatmul.bf16.gmra.mxu0 %v787
        %v2968 = vpop.f32.mrf.mxu0
        %v2969 = vadd.f32 %v2880, %v2968
        %v2970 = vpop.f32.mrf.mxu0
        %v2971 = vadd.f32 %v2882, %v2970
        %2972 = vmatmul.bf16.gmra.mxu0 %v790
        %v2973 = vpop.f32.mrf.mxu0
        %v2974 = vadd.f32 %v2885, %v2973
        %v2975 = vpop.f32.mrf.mxu0
        %v2976 = vadd.f32 %v2887, %v2975
        %2977 = vmatmul.bf16.gmra.mxu0 %v793
        %v2978 = vpop.f32.mrf.mxu0
        %v2979 = vadd.f32 %v2890, %v2978
        %v2980 = vpop.f32.mrf.mxu0
        %v2981 = vadd.f32 %v2892, %v2980
        %2982 = vmatmul.bf16.gmra.mxu0 %v796
        %v2983 = vpop.f32.mrf.mxu0
        %v2984 = vadd.f32 %v2895, %v2983
        %v2985 = vpop.f32.mrf.mxu0
        %v2986 = vadd.f32 %v2897, %v2985
        %2987 = vmatmul.bf16.gmra.mxu0 %v799
        %v2988 = vpop.f32.mrf.mxu0
        %v2989 = vadd.f32 %v2900, %v2988
        %v2990 = vpop.f32.mrf.mxu0
        %v2991 = vadd.f32 %v2902, %v2990
        %2992 = vmatmul.bf16.gmra.mxu0 %v802
        %v2993 = vpop.f32.mrf.mxu0
        %v2994 = vadd.f32 %v2905, %v2993
        %v2995 = vpop.f32.mrf.mxu0
        %v2996 = vadd.f32 %v2907, %v2995
        %2997 = vmatmul.bf16.gmra.mxu0 %v805
        %v2998 = vpop.f32.mrf.mxu0
        %v2999 = vadd.f32 %v2910, %v2998
        %v3000 = vpop.f32.mrf.mxu0
        %v3001 = vadd.f32 %v2912, %v3000
        %3002 = vmatmul.bf16.gmra.mxu0 %v808
        %v3003 = vpop.f32.mrf.mxu0
        %v3004 = vadd.f32 %v2915, %v3003
        %v3005 = vpop.f32.mrf.mxu0
        %v3006 = vadd.f32 %v2917, %v3005
        %3007 = vmatmul.bf16.gmra.mxu0 %v811
        %v3008 = vpop.f32.mrf.mxu0
        %v3009 = vadd.f32 %v2920, %v3008
        %v3010 = vpop.f32.mrf.mxu0
        %v3011 = vadd.f32 %v2922, %v3010
        %3012 = vdwg.mxu0
        %3013 = vmatpush.bf16.msra.mxu0 %v2003
        %3014 = vmatpush.bf16.msra.mxu0 %v1991
        %3015 = vmatpush.bf16.msra.mxu0 %v1979
        %3016 = vmatpush.bf16.msra.mxu0 %v1967
        %3017 = vmatpush.bf16.msra.mxu0 %v1955
        %3018 = vmatpush.bf16.msra.mxu0 %v1943
        %3019 = vmatpush.bf16.msra.mxu0 %v1931
        %3020 = vmatpush.bf16.msra.mxu0 %v1919
        %3021 = vmatmul.bf16.gmra.mxu0 %v767
        %v3022 = vpop.f32.mrf.mxu0
        %v3023 = vadd.f32 %v2934, %v3022
        %v3024 = vpop.f32.mrf.mxu0
        %v3025 = vadd.f32 %v2936, %v3024
        %3026 = vmatmul.bf16.gmra.mxu0 %v770
        %v3027 = vpop.f32.mrf.mxu0
        %v3028 = vadd.f32 %v2939, %v3027
        %v3029 = vpop.f32.mrf.mxu0
        %v3030 = vadd.f32 %v2941, %v3029
        %3031 = vmatmul.bf16.gmra.mxu0 %v773
        %v3032 = vpop.f32.mrf.mxu0
        %v3033 = vadd.f32 %v2944, %v3032
        %v3034 = vpop.f32.mrf.mxu0
        %v3035 = vadd.f32 %v2946, %v3034
        %3036 = vmatmul.bf16.gmra.mxu0 %v776
        %v3037 = vpop.f32.mrf.mxu0
        %v3038 = vadd.f32 %v2949, %v3037
        %v3039 = vpop.f32.mrf.mxu0
        %v3040 = vadd.f32 %v2951, %v3039
        %3041 = vmatmul.bf16.gmra.mxu0 %v779
        %v3042 = vpop.f32.mrf.mxu0
        %v3043 = vadd.f32 %v2954, %v3042
        %v3044 = vpop.f32.mrf.mxu0
        %v3045 = vadd.f32 %v2956, %v3044
        %3046 = vmatmul.bf16.gmra.mxu0 %v782
        %v3047 = vpop.f32.mrf.mxu0
        %v3048 = vadd.f32 %v2959, %v3047
        %v3049 = vpop.f32.mrf.mxu0
        %v3050 = vadd.f32 %v2961, %v3049
        %3051 = vmatmul.bf16.gmra.mxu0 %v785
        %v3052 = vpop.f32.mrf.mxu0
        %v3053 = vadd.f32 %v2964, %v3052
        %v3054 = vpop.f32.mrf.mxu0
        %v3055 = vadd.f32 %v2966, %v3054
        %3056 = vmatmul.bf16.gmra.mxu0 %v788
        %v3057 = vpop.f32.mrf.mxu0
        %v3058 = vadd.f32 %v2969, %v3057
        %v3059 = vpop.f32.mrf.mxu0
        %v3060 = vadd.f32 %v2971, %v3059
        %3061 = vmatmul.bf16.gmra.mxu0 %v791
        %v3062 = vpop.f32.mrf.mxu0
        %v3063 = vadd.f32 %v2974, %v3062
        %v3064 = vpop.f32.mrf.mxu0
        %v3065 = vadd.f32 %v2976, %v3064
        %3066 = vmatmul.bf16.gmra.mxu0 %v794
        %v3067 = vpop.f32.mrf.mxu0
        %v3068 = vadd.f32 %v2979, %v3067
        %v3069 = vpop.f32.mrf.mxu0
        %v3070 = vadd.f32 %v2981, %v3069
        %3071 = vmatmul.bf16.gmra.mxu0 %v797
        %v3072 = vpop.f32.mrf.mxu0
        %v3073 = vadd.f32 %v2984, %v3072
        %v3074 = vpop.f32.mrf.mxu0
        %v3075 = vadd.f32 %v2986, %v3074
        %3076 = vmatmul.bf16.gmra.mxu0 %v800
        %v3077 = vpop.f32.mrf.mxu0
        %v3078 = vadd.f32 %v2989, %v3077
        %v3079 = vpop.f32.mrf.mxu0
        %v3080 = vadd.f32 %v2991, %v3079
        %3081 = vmatmul.bf16.gmra.mxu0 %v803
        %v3082 = vpop.f32.mrf.mxu0
        %v3083 = vadd.f32 %v2994, %v3082
        %v3084 = vpop.f32.mrf.mxu0
        %v3085 = vadd.f32 %v2996, %v3084
        %3086 = vmatmul.bf16.gmra.mxu0 %v806
        %v3087 = vpop.f32.mrf.mxu0
        %v3088 = vadd.f32 %v2999, %v3087
        %v3089 = vpop.f32.mrf.mxu0
        %v3090 = vadd.f32 %v3001, %v3089
        %3091 = vmatmul.bf16.gmra.mxu0 %v809
        %v3092 = vpop.f32.mrf.mxu0
        %v3093 = vadd.f32 %v3004, %v3092
        %v3094 = vpop.f32.mrf.mxu0
        %v3095 = vadd.f32 %v3006, %v3094
        %3096 = vmatmul.bf16.gmra.mxu0 %v812
        %v3097 = vpop.f32.mrf.mxu0
        %v3098 = vadd.f32 %v3009, %v3097
        %v3099 = vpop.f32.mrf.mxu0
        %v3100 = vadd.f32 %v3011, %v3099
        %3101 = vdwg.mxu0
        %3102 = vmatpush.bf16.msra.mxu0 %v1812
        %3103 = vmatpush.bf16.msra.mxu0 %v1800
        %3104 = vmatpush.bf16.msra.mxu0 %v1788
        %3105 = vmatpush.bf16.msra.mxu0 %v1776
        %3106 = vmatpush.bf16.msra.mxu0 %v1764
        %3107 = vmatpush.bf16.msra.mxu0 %v1752
        %3108 = vmatpush.bf16.msra.mxu0 %v1740
        %3109 = vmatpush.bf16.msra.mxu0 %v1728
        %3110 = vmatmul.bf16.gmra.mxu0 %v765
        %v3111 = vpop.f32.mrf.mxu0
        %v3112 = vadd.f32 %v584, %v3111
        %v3113 = vpop.f32.mrf.mxu0
        %v3114 = vadd.f32 %v584, %v3113
        %3115 = vmatmul.bf16.gmra.mxu0 %v768
        %v3116 = vpop.f32.mrf.mxu0
        %v3117 = vadd.f32 %v584, %v3116
        %v3118 = vpop.f32.mrf.mxu0
        %v3119 = vadd.f32 %v584, %v3118
        %3120 = vmatmul.bf16.gmra.mxu0 %v771
        %v3121 = vpop.f32.mrf.mxu0
        %v3122 = vadd.f32 %v584, %v3121
        %v3123 = vpop.f32.mrf.mxu0
        %v3124 = vadd.f32 %v584, %v3123
        %3125 = vmatmul.bf16.gmra.mxu0 %v774
        %v3126 = vpop.f32.mrf.mxu0
        %v3127 = vadd.f32 %v584, %v3126
        %v3128 = vpop.f32.mrf.mxu0
        %v3129 = vadd.f32 %v584, %v3128
        %3130 = vmatmul.bf16.gmra.mxu0 %v777
        %v3131 = vpop.f32.mrf.mxu0
        %v3132 = vadd.f32 %v584, %v3131
        %v3133 = vpop.f32.mrf.mxu0
        %v3134 = vadd.f32 %v584, %v3133
        %3135 = vmatmul.bf16.gmra.mxu0 %v780
        %v3136 = vpop.f32.mrf.mxu0
        %v3137 = vadd.f32 %v584, %v3136
        %v3138 = vpop.f32.mrf.mxu0
        %v3139 = vadd.f32 %v584, %v3138
        %3140 = vmatmul.bf16.gmra.mxu0 %v783
        %v3141 = vpop.f32.mrf.mxu0
        %v3142 = vadd.f32 %v584, %v3141
        %v3143 = vpop.f32.mrf.mxu0
        %v3144 = vadd.f32 %v584, %v3143
        %3145 = vmatmul.bf16.gmra.mxu0 %v786
        %v3146 = vpop.f32.mrf.mxu0
        %v3147 = vadd.f32 %v584, %v3146
        %v3148 = vpop.f32.mrf.mxu0
        %v3149 = vadd.f32 %v584, %v3148
        %3150 = vmatmul.bf16.gmra.mxu0 %v789
        %v3151 = vpop.f32.mrf.mxu0
        %v3152 = vadd.f32 %v584, %v3151
        %v3153 = vpop.f32.mrf.mxu0
        %v3154 = vadd.f32 %v584, %v3153
        %3155 = vmatmul.bf16.gmra.mxu0 %v792
        %v3156 = vpop.f32.mrf.mxu0
        %v3157 = vadd.f32 %v584, %v3156
        %v3158 = vpop.f32.mrf.mxu0
        %v3159 = vadd.f32 %v584, %v3158
        %3160 = vmatmul.bf16.gmra.mxu0 %v795
        %v3161 = vpop.f32.mrf.mxu0
        %v3162 = vadd.f32 %v584, %v3161
        %v3163 = vpop.f32.mrf.mxu0
        %v3164 = vadd.f32 %v584, %v3163
        %3165 = vmatmul.bf16.gmra.mxu0 %v798
        %v3166 = vpop.f32.mrf.mxu0
        %v3167 = vadd.f32 %v584, %v3166
        %v3168 = vpop.f32.mrf.mxu0
        %v3169 = vadd.f32 %v584, %v3168
        %3170 = vmatmul.bf16.gmra.mxu0 %v801
        %v3171 = vpop.f32.mrf.mxu0
        %v3172 = vadd.f32 %v584, %v3171
        %v3173 = vpop.f32.mrf.mxu0
        %v3174 = vadd.f32 %v584, %v3173
        %3175 = vmatmul.bf16.gmra.mxu0 %v804
        %v3176 = vpop.f32.mrf.mxu0
        %v3177 = vadd.f32 %v584, %v3176
        %v3178 = vpop.f32.mrf.mxu0
        %v3179 = vadd.f32 %v584, %v3178
        %3180 = vmatmul.bf16.gmra.mxu0 %v807
        %v3181 = vpop.f32.mrf.mxu0
        %v3182 = vadd.f32 %v584, %v3181
        %v3183 = vpop.f32.mrf.mxu0
        %v3184 = vadd.f32 %v584, %v3183
        %3185 = vmatmul.bf16.gmra.mxu0 %v810
        %v3186 = vpop.f32.mrf.mxu0
        %v3187 = vadd.f32 %v584, %v3186
        %v3188 = vpop.f32.mrf.mxu0
        %v3189 = vadd.f32 %v584, %v3188
        %3190 = vdwg.mxu0
        %3191 = vmatpush.bf16.msra.mxu0 %v1908
        %3192 = vmatpush.bf16.msra.mxu0 %v1896
        %3193 = vmatpush.bf16.msra.mxu0 %v1884
        %3194 = vmatpush.bf16.msra.mxu0 %v1872
        %3195 = vmatpush.bf16.msra.mxu0 %v1860
        %3196 = vmatpush.bf16.msra.mxu0 %v1848
        %3197 = vmatpush.bf16.msra.mxu0 %v1836
        %3198 = vmatpush.bf16.msra.mxu0 %v1824
        %3199 = vmatmul.bf16.gmra.mxu0 %v766
        %v3200 = vpop.f32.mrf.mxu0
        %v3201 = vadd.f32 %v3112, %v3200
        %v3202 = vpop.f32.mrf.mxu0
        %v3203 = vadd.f32 %v3114, %v3202
        %3204 = vmatmul.bf16.gmra.mxu0 %v769
        %v3205 = vpop.f32.mrf.mxu0
        %v3206 = vadd.f32 %v3117, %v3205
        %v3207 = vpop.f32.mrf.mxu0
        %v3208 = vadd.f32 %v3119, %v3207
        %3209 = vmatmul.bf16.gmra.mxu0 %v772
        %v3210 = vpop.f32.mrf.mxu0
        %v3211 = vadd.f32 %v3122, %v3210
        %v3212 = vpop.f32.mrf.mxu0
        %v3213 = vadd.f32 %v3124, %v3212
        %3214 = vmatmul.bf16.gmra.mxu0 %v775
        %v3215 = vpop.f32.mrf.mxu0
        %v3216 = vadd.f32 %v3127, %v3215
        %v3217 = vpop.f32.mrf.mxu0
        %v3218 = vadd.f32 %v3129, %v3217
        %3219 = vmatmul.bf16.gmra.mxu0 %v778
        %v3220 = vpop.f32.mrf.mxu0
        %v3221 = vadd.f32 %v3132, %v3220
        %v3222 = vpop.f32.mrf.mxu0
        %v3223 = vadd.f32 %v3134, %v3222
        %3224 = vmatmul.bf16.gmra.mxu0 %v781
        %v3225 = vpop.f32.mrf.mxu0
        %v3226 = vadd.f32 %v3137, %v3225
        %v3227 = vpop.f32.mrf.mxu0
        %v3228 = vadd.f32 %v3139, %v3227
        %3229 = vmatmul.bf16.gmra.mxu0 %v784
        %v3230 = vpop.f32.mrf.mxu0
        %v3231 = vadd.f32 %v3142, %v3230
        %v3232 = vpop.f32.mrf.mxu0
        %v3233 = vadd.f32 %v3144, %v3232
        %3234 = vmatmul.bf16.gmra.mxu0 %v787
        %v3235 = vpop.f32.mrf.mxu0
        %v3236 = vadd.f32 %v3147, %v3235
        %v3237 = vpop.f32.mrf.mxu0
        %v3238 = vadd.f32 %v3149, %v3237
        %3239 = vmatmul.bf16.gmra.mxu0 %v790
        %v3240 = vpop.f32.mrf.mxu0
        %v3241 = vadd.f32 %v3152, %v3240
        %v3242 = vpop.f32.mrf.mxu0
        %v3243 = vadd.f32 %v3154, %v3242
        %3244 = vmatmul.bf16.gmra.mxu0 %v793
        %v3245 = vpop.f32.mrf.mxu0
        %v3246 = vadd.f32 %v3157, %v3245
        %v3247 = vpop.f32.mrf.mxu0
        %v3248 = vadd.f32 %v3159, %v3247
        %3249 = vmatmul.bf16.gmra.mxu0 %v796
        %v3250 = vpop.f32.mrf.mxu0
        %v3251 = vadd.f32 %v3162, %v3250
        %v3252 = vpop.f32.mrf.mxu0
        %v3253 = vadd.f32 %v3164, %v3252
        %3254 = vmatmul.bf16.gmra.mxu0 %v799
        %v3255 = vpop.f32.mrf.mxu0
        %v3256 = vadd.f32 %v3167, %v3255
        %v3257 = vpop.f32.mrf.mxu0
        %v3258 = vadd.f32 %v3169, %v3257
        %3259 = vmatmul.bf16.gmra.mxu0 %v802
        %v3260 = vpop.f32.mrf.mxu0
        %v3261 = vadd.f32 %v3172, %v3260
        %v3262 = vpop.f32.mrf.mxu0
        %v3263 = vadd.f32 %v3174, %v3262
        %3264 = vmatmul.bf16.gmra.mxu0 %v805
        %v3265 = vpop.f32.mrf.mxu0
        %v3266 = vadd.f32 %v3177, %v3265
        %v3267 = vpop.f32.mrf.mxu0
        %v3268 = vadd.f32 %v3179, %v3267
        %3269 = vmatmul.bf16.gmra.mxu0 %v808
        %v3270 = vpop.f32.mrf.mxu0
        %v3271 = vadd.f32 %v3182, %v3270
        %v3272 = vpop.f32.mrf.mxu0
        %v3273 = vadd.f32 %v3184, %v3272
        %3274 = vmatmul.bf16.gmra.mxu0 %v811
        %v3275 = vpop.f32.mrf.mxu0
        %v3276 = vadd.f32 %v3187, %v3275
        %v3277 = vpop.f32.mrf.mxu0
        %v3278 = vadd.f32 %v3189, %v3277
        %3279 = vdwg.mxu0
        %3280 = vmatpush.bf16.msra.mxu0 %v2004
        %3281 = vmatpush.bf16.msra.mxu0 %v1992
        %3282 = vmatpush.bf16.msra.mxu0 %v1980
        %3283 = vmatpush.bf16.msra.mxu0 %v1968
        %3284 = vmatpush.bf16.msra.mxu0 %v1956
        %3285 = vmatpush.bf16.msra.mxu0 %v1944
        %3286 = vmatpush.bf16.msra.mxu0 %v1932
        %3287 = vmatpush.bf16.msra.mxu0 %v1920
        %3288 = vmatmul.bf16.gmra.mxu0 %v767
        %v3289 = vpop.f32.mrf.mxu0
        %v3290 = vadd.f32 %v3201, %v3289
        %v3291 = vpop.f32.mrf.mxu0
        %v3292 = vadd.f32 %v3203, %v3291
        %3293 = vmatmul.bf16.gmra.mxu0 %v770
        %v3294 = vpop.f32.mrf.mxu0
        %v3295 = vadd.f32 %v3206, %v3294
        %v3296 = vpop.f32.mrf.mxu0
        %v3297 = vadd.f32 %v3208, %v3296
        %3298 = vmatmul.bf16.gmra.mxu0 %v773
        %v3299 = vpop.f32.mrf.mxu0
        %v3300 = vadd.f32 %v3211, %v3299
        %v3301 = vpop.f32.mrf.mxu0
        %v3302 = vadd.f32 %v3213, %v3301
        %3303 = vmatmul.bf16.gmra.mxu0 %v776
        %v3304 = vpop.f32.mrf.mxu0
        %v3305 = vadd.f32 %v3216, %v3304
        %v3306 = vpop.f32.mrf.mxu0
        %v3307 = vadd.f32 %v3218, %v3306
        %3308 = vmatmul.bf16.gmra.mxu0 %v779
        %v3309 = vpop.f32.mrf.mxu0
        %v3310 = vadd.f32 %v3221, %v3309
        %v3311 = vpop.f32.mrf.mxu0
        %v3312 = vadd.f32 %v3223, %v3311
        %3313 = vmatmul.bf16.gmra.mxu0 %v782
        %v3314 = vpop.f32.mrf.mxu0
        %v3315 = vadd.f32 %v3226, %v3314
        %v3316 = vpop.f32.mrf.mxu0
        %v3317 = vadd.f32 %v3228, %v3316
        %3318 = vmatmul.bf16.gmra.mxu0 %v785
        %v3319 = vpop.f32.mrf.mxu0
        %v3320 = vadd.f32 %v3231, %v3319
        %v3321 = vpop.f32.mrf.mxu0
        %v3322 = vadd.f32 %v3233, %v3321
        %3323 = vmatmul.bf16.gmra.mxu0 %v788
        %v3324 = vpop.f32.mrf.mxu0
        %v3325 = vadd.f32 %v3236, %v3324
        %v3326 = vpop.f32.mrf.mxu0
        %v3327 = vadd.f32 %v3238, %v3326
        %3328 = vmatmul.bf16.gmra.mxu0 %v791
        %v3329 = vpop.f32.mrf.mxu0
        %v3330 = vadd.f32 %v3241, %v3329
        %v3331 = vpop.f32.mrf.mxu0
        %v3332 = vadd.f32 %v3243, %v3331
        %3333 = vmatmul.bf16.gmra.mxu0 %v794
        %v3334 = vpop.f32.mrf.mxu0
        %v3335 = vadd.f32 %v3246, %v3334
        %v3336 = vpop.f32.mrf.mxu0
        %v3337 = vadd.f32 %v3248, %v3336
        %3338 = vmatmul.bf16.gmra.mxu0 %v797
        %v3339 = vpop.f32.mrf.mxu0
        %v3340 = vadd.f32 %v3251, %v3339
        %v3341 = vpop.f32.mrf.mxu0
        %v3342 = vadd.f32 %v3253, %v3341
        %3343 = vmatmul.bf16.gmra.mxu0 %v800
        %v3344 = vpop.f32.mrf.mxu0
        %v3345 = vadd.f32 %v3256, %v3344
        %v3346 = vpop.f32.mrf.mxu0
        %v3347 = vadd.f32 %v3258, %v3346
        %3348 = vmatmul.bf16.gmra.mxu0 %v803
        %v3349 = vpop.f32.mrf.mxu0
        %v3350 = vadd.f32 %v3261, %v3349
        %v3351 = vpop.f32.mrf.mxu0
        %v3352 = vadd.f32 %v3263, %v3351
        %3353 = vmatmul.bf16.gmra.mxu0 %v806
        %v3354 = vpop.f32.mrf.mxu0
        %v3355 = vadd.f32 %v3266, %v3354
        %v3356 = vpop.f32.mrf.mxu0
        %v3357 = vadd.f32 %v3268, %v3356
        %3358 = vmatmul.bf16.gmra.mxu0 %v809
        %v3359 = vpop.f32.mrf.mxu0
        %v3360 = vadd.f32 %v3271, %v3359
        %v3361 = vpop.f32.mrf.mxu0
        %v3362 = vadd.f32 %v3273, %v3361
        %3363 = vmatmul.bf16.gmra.mxu0 %v812
        %v3364 = vpop.f32.mrf.mxu0
        %v3365 = vadd.f32 %v3276, %v3364
        %v3366 = vpop.f32.mrf.mxu0
        %v3367 = vadd.f32 %v3278, %v3366
        %3368 = vdwg.mxu0
        %3369 = vmatpush.bf16.msra.mxu0 %v1813
        %3370 = vmatpush.bf16.msra.mxu0 %v1801
        %3371 = vmatpush.bf16.msra.mxu0 %v1789
        %3372 = vmatpush.bf16.msra.mxu0 %v1777
        %3373 = vmatpush.bf16.msra.mxu0 %v1765
        %3374 = vmatpush.bf16.msra.mxu0 %v1753
        %3375 = vmatpush.bf16.msra.mxu0 %v1741
        %3376 = vmatpush.bf16.msra.mxu0 %v1729
        %3377 = vmatmul.bf16.gmra.mxu0 %v765
        %v3378 = vpop.f32.mrf.mxu0
        %v3379 = vadd.f32 %v585, %v3378
        %v3380 = vpop.f32.mrf.mxu0
        %v3381 = vadd.f32 %v585, %v3380
        %3382 = vmatmul.bf16.gmra.mxu0 %v768
        %v3383 = vpop.f32.mrf.mxu0
        %v3384 = vadd.f32 %v585, %v3383
        %v3385 = vpop.f32.mrf.mxu0
        %v3386 = vadd.f32 %v585, %v3385
        %3387 = vmatmul.bf16.gmra.mxu0 %v771
        %v3388 = vpop.f32.mrf.mxu0
        %v3389 = vadd.f32 %v585, %v3388
        %v3390 = vpop.f32.mrf.mxu0
        %v3391 = vadd.f32 %v585, %v3390
        %3392 = vmatmul.bf16.gmra.mxu0 %v774
        %v3393 = vpop.f32.mrf.mxu0
        %v3394 = vadd.f32 %v585, %v3393
        %v3395 = vpop.f32.mrf.mxu0
        %v3396 = vadd.f32 %v585, %v3395
        %3397 = vmatmul.bf16.gmra.mxu0 %v777
        %v3398 = vpop.f32.mrf.mxu0
        %v3399 = vadd.f32 %v585, %v3398
        %v3400 = vpop.f32.mrf.mxu0
        %v3401 = vadd.f32 %v585, %v3400
        %3402 = vmatmul.bf16.gmra.mxu0 %v780
        %v3403 = vpop.f32.mrf.mxu0
        %v3404 = vadd.f32 %v585, %v3403
        %v3405 = vpop.f32.mrf.mxu0
        %v3406 = vadd.f32 %v585, %v3405
        %3407 = vmatmul.bf16.gmra.mxu0 %v783
        %v3408 = vpop.f32.mrf.mxu0
        %v3409 = vadd.f32 %v585, %v3408
        %v3410 = vpop.f32.mrf.mxu0
        %v3411 = vadd.f32 %v585, %v3410
        %3412 = vmatmul.bf16.gmra.mxu0 %v786
        %v3413 = vpop.f32.mrf.mxu0
        %v3414 = vadd.f32 %v585, %v3413
        %v3415 = vpop.f32.mrf.mxu0
        %v3416 = vadd.f32 %v585, %v3415
        %3417 = vmatmul.bf16.gmra.mxu0 %v789
        %v3418 = vpop.f32.mrf.mxu0
        %v3419 = vadd.f32 %v585, %v3418
        %v3420 = vpop.f32.mrf.mxu0
        %v3421 = vadd.f32 %v585, %v3420
        %3422 = vmatmul.bf16.gmra.mxu0 %v792
        %v3423 = vpop.f32.mrf.mxu0
        %v3424 = vadd.f32 %v585, %v3423
        %v3425 = vpop.f32.mrf.mxu0
        %v3426 = vadd.f32 %v585, %v3425
        %3427 = vmatmul.bf16.gmra.mxu0 %v795
        %v3428 = vpop.f32.mrf.mxu0
        %v3429 = vadd.f32 %v585, %v3428
        %v3430 = vpop.f32.mrf.mxu0
        %v3431 = vadd.f32 %v585, %v3430
        %3432 = vmatmul.bf16.gmra.mxu0 %v798
        %v3433 = vpop.f32.mrf.mxu0
        %v3434 = vadd.f32 %v585, %v3433
        %v3435 = vpop.f32.mrf.mxu0
        %v3436 = vadd.f32 %v585, %v3435
        %3437 = vmatmul.bf16.gmra.mxu0 %v801
        %v3438 = vpop.f32.mrf.mxu0
        %v3439 = vadd.f32 %v585, %v3438
        %v3440 = vpop.f32.mrf.mxu0
        %v3441 = vadd.f32 %v585, %v3440
        %3442 = vmatmul.bf16.gmra.mxu0 %v804
        %v3443 = vpop.f32.mrf.mxu0
        %v3444 = vadd.f32 %v585, %v3443
        %v3445 = vpop.f32.mrf.mxu0
        %v3446 = vadd.f32 %v585, %v3445
        %3447 = vmatmul.bf16.gmra.mxu0 %v807
        %v3448 = vpop.f32.mrf.mxu0
        %v3449 = vadd.f32 %v585, %v3448
        %v3450 = vpop.f32.mrf.mxu0
        %v3451 = vadd.f32 %v585, %v3450
        %3452 = vmatmul.bf16.gmra.mxu0 %v810
        %v3453 = vpop.f32.mrf.mxu0
        %v3454 = vadd.f32 %v585, %v3453
        %v3455 = vpop.f32.mrf.mxu0
        %v3456 = vadd.f32 %v585, %v3455
        %3457 = vdwg.mxu0
        %3458 = vmatpush.bf16.msra.mxu0 %v1909
        %3459 = vmatpush.bf16.msra.mxu0 %v1897
        %3460 = vmatpush.bf16.msra.mxu0 %v1885
        %3461 = vmatpush.bf16.msra.mxu0 %v1873
        %3462 = vmatpush.bf16.msra.mxu0 %v1861
        %3463 = vmatpush.bf16.msra.mxu0 %v1849
        %3464 = vmatpush.bf16.msra.mxu0 %v1837
        %3465 = vmatpush.bf16.msra.mxu0 %v1825
        %3466 = vmatmul.bf16.gmra.mxu0 %v766
        %v3467 = vpop.f32.mrf.mxu0
        %v3468 = vadd.f32 %v3379, %v3467
        %v3469 = vpop.f32.mrf.mxu0
        %v3470 = vadd.f32 %v3381, %v3469
        %3471 = vmatmul.bf16.gmra.mxu0 %v769
        %v3472 = vpop.f32.mrf.mxu0
        %v3473 = vadd.f32 %v3384, %v3472
        %v3474 = vpop.f32.mrf.mxu0
        %v3475 = vadd.f32 %v3386, %v3474
        %3476 = vmatmul.bf16.gmra.mxu0 %v772
        %v3477 = vpop.f32.mrf.mxu0
        %v3478 = vadd.f32 %v3389, %v3477
        %v3479 = vpop.f32.mrf.mxu0
        %v3480 = vadd.f32 %v3391, %v3479
        %3481 = vmatmul.bf16.gmra.mxu0 %v775
        %v3482 = vpop.f32.mrf.mxu0
        %v3483 = vadd.f32 %v3394, %v3482
        %v3484 = vpop.f32.mrf.mxu0
        %v3485 = vadd.f32 %v3396, %v3484
        %3486 = vmatmul.bf16.gmra.mxu0 %v778
        %v3487 = vpop.f32.mrf.mxu0
        %v3488 = vadd.f32 %v3399, %v3487
        %v3489 = vpop.f32.mrf.mxu0
        %v3490 = vadd.f32 %v3401, %v3489
        %3491 = vmatmul.bf16.gmra.mxu0 %v781
        %v3492 = vpop.f32.mrf.mxu0
        %v3493 = vadd.f32 %v3404, %v3492
        %v3494 = vpop.f32.mrf.mxu0
        %v3495 = vadd.f32 %v3406, %v3494
        %3496 = vmatmul.bf16.gmra.mxu0 %v784
        %v3497 = vpop.f32.mrf.mxu0
        %v3498 = vadd.f32 %v3409, %v3497
        %v3499 = vpop.f32.mrf.mxu0
        %v3500 = vadd.f32 %v3411, %v3499
        %3501 = vmatmul.bf16.gmra.mxu0 %v787
        %v3502 = vpop.f32.mrf.mxu0
        %v3503 = vadd.f32 %v3414, %v3502
        %v3504 = vpop.f32.mrf.mxu0
        %v3505 = vadd.f32 %v3416, %v3504
        %3506 = vmatmul.bf16.gmra.mxu0 %v790
        %v3507 = vpop.f32.mrf.mxu0
        %v3508 = vadd.f32 %v3419, %v3507
        %v3509 = vpop.f32.mrf.mxu0
        %v3510 = vadd.f32 %v3421, %v3509
        %3511 = vmatmul.bf16.gmra.mxu0 %v793
        %v3512 = vpop.f32.mrf.mxu0
        %v3513 = vadd.f32 %v3424, %v3512
        %v3514 = vpop.f32.mrf.mxu0
        %v3515 = vadd.f32 %v3426, %v3514
        %3516 = vmatmul.bf16.gmra.mxu0 %v796
        %v3517 = vpop.f32.mrf.mxu0
        %v3518 = vadd.f32 %v3429, %v3517
        %v3519 = vpop.f32.mrf.mxu0
        %v3520 = vadd.f32 %v3431, %v3519
        %3521 = vmatmul.bf16.gmra.mxu0 %v799
        %v3522 = vpop.f32.mrf.mxu0
        %v3523 = vadd.f32 %v3434, %v3522
        %v3524 = vpop.f32.mrf.mxu0
        %v3525 = vadd.f32 %v3436, %v3524
        %3526 = vmatmul.bf16.gmra.mxu0 %v802
        %v3527 = vpop.f32.mrf.mxu0
        %v3528 = vadd.f32 %v3439, %v3527
        %v3529 = vpop.f32.mrf.mxu0
        %v3530 = vadd.f32 %v3441, %v3529
        %3531 = vmatmul.bf16.gmra.mxu0 %v805
        %v3532 = vpop.f32.mrf.mxu0
        %v3533 = vadd.f32 %v3444, %v3532
        %v3534 = vpop.f32.mrf.mxu0
        %v3535 = vadd.f32 %v3446, %v3534
        %3536 = vmatmul.bf16.gmra.mxu0 %v808
        %v3537 = vpop.f32.mrf.mxu0
        %v3538 = vadd.f32 %v3449, %v3537
        %v3539 = vpop.f32.mrf.mxu0
        %v3540 = vadd.f32 %v3451, %v3539
        %3541 = vmatmul.bf16.gmra.mxu0 %v811
        %v3542 = vpop.f32.mrf.mxu0
        %v3543 = vadd.f32 %v3454, %v3542
        %v3544 = vpop.f32.mrf.mxu0
        %v3545 = vadd.f32 %v3456, %v3544
        %3546 = vdwg.mxu0
        %3547 = vmatpush.bf16.msra.mxu0 %v2005
        %3548 = vmatpush.bf16.msra.mxu0 %v1993
        %3549 = vmatpush.bf16.msra.mxu0 %v1981
        %3550 = vmatpush.bf16.msra.mxu0 %v1969
        %3551 = vmatpush.bf16.msra.mxu0 %v1957
        %3552 = vmatpush.bf16.msra.mxu0 %v1945
        %3553 = vmatpush.bf16.msra.mxu0 %v1933
        %3554 = vmatpush.bf16.msra.mxu0 %v1921
        %3555 = vmatmul.bf16.gmra.mxu0 %v767
        %v3556 = vpop.f32.mrf.mxu0
        %v3557 = vadd.f32 %v3468, %v3556
        %v3558 = vpop.f32.mrf.mxu0
        %v3559 = vadd.f32 %v3470, %v3558
        %3560 = vmatmul.bf16.gmra.mxu0 %v770
        %v3561 = vpop.f32.mrf.mxu0
        %v3562 = vadd.f32 %v3473, %v3561
        %v3563 = vpop.f32.mrf.mxu0
        %v3564 = vadd.f32 %v3475, %v3563
        %3565 = vmatmul.bf16.gmra.mxu0 %v773
        %v3566 = vpop.f32.mrf.mxu0
        %v3567 = vadd.f32 %v3478, %v3566
        %v3568 = vpop.f32.mrf.mxu0
        %v3569 = vadd.f32 %v3480, %v3568
        %3570 = vmatmul.bf16.gmra.mxu0 %v776
        %v3571 = vpop.f32.mrf.mxu0
        %v3572 = vadd.f32 %v3483, %v3571
        %v3573 = vpop.f32.mrf.mxu0
        %v3574 = vadd.f32 %v3485, %v3573
        %3575 = vmatmul.bf16.gmra.mxu0 %v779
        %v3576 = vpop.f32.mrf.mxu0
        %v3577 = vadd.f32 %v3488, %v3576
        %v3578 = vpop.f32.mrf.mxu0
        %v3579 = vadd.f32 %v3490, %v3578
        %3580 = vmatmul.bf16.gmra.mxu0 %v782
        %v3581 = vpop.f32.mrf.mxu0
        %v3582 = vadd.f32 %v3493, %v3581
        %v3583 = vpop.f32.mrf.mxu0
        %v3584 = vadd.f32 %v3495, %v3583
        %3585 = vmatmul.bf16.gmra.mxu0 %v785
        %v3586 = vpop.f32.mrf.mxu0
        %v3587 = vadd.f32 %v3498, %v3586
        %v3588 = vpop.f32.mrf.mxu0
        %v3589 = vadd.f32 %v3500, %v3588
        %3590 = vmatmul.bf16.gmra.mxu0 %v788
        %v3591 = vpop.f32.mrf.mxu0
        %v3592 = vadd.f32 %v3503, %v3591
        %v3593 = vpop.f32.mrf.mxu0
        %v3594 = vadd.f32 %v3505, %v3593
        %3595 = vmatmul.bf16.gmra.mxu0 %v791
        %v3596 = vpop.f32.mrf.mxu0
        %v3597 = vadd.f32 %v3508, %v3596
        %v3598 = vpop.f32.mrf.mxu0
        %v3599 = vadd.f32 %v3510, %v3598
        %3600 = vmatmul.bf16.gmra.mxu0 %v794
        %v3601 = vpop.f32.mrf.mxu0
        %v3602 = vadd.f32 %v3513, %v3601
        %v3603 = vpop.f32.mrf.mxu0
        %v3604 = vadd.f32 %v3515, %v3603
        %3605 = vmatmul.bf16.gmra.mxu0 %v797
        %v3606 = vpop.f32.mrf.mxu0
        %v3607 = vadd.f32 %v3518, %v3606
        %v3608 = vpop.f32.mrf.mxu0
        %v3609 = vadd.f32 %v3520, %v3608
        %3610 = vmatmul.bf16.gmra.mxu0 %v800
        %v3611 = vpop.f32.mrf.mxu0
        %v3612 = vadd.f32 %v3523, %v3611
        %v3613 = vpop.f32.mrf.mxu0
        %v3614 = vadd.f32 %v3525, %v3613
        %3615 = vmatmul.bf16.gmra.mxu0 %v803
        %v3616 = vpop.f32.mrf.mxu0
        %v3617 = vadd.f32 %v3528, %v3616
        %v3618 = vpop.f32.mrf.mxu0
        %v3619 = vadd.f32 %v3530, %v3618
        %3620 = vmatmul.bf16.gmra.mxu0 %v806
        %v3621 = vpop.f32.mrf.mxu0
        %v3622 = vadd.f32 %v3533, %v3621
        %v3623 = vpop.f32.mrf.mxu0
        %v3624 = vadd.f32 %v3535, %v3623
        %3625 = vmatmul.bf16.gmra.mxu0 %v809
        %v3626 = vpop.f32.mrf.mxu0
        %v3627 = vadd.f32 %v3538, %v3626
        %v3628 = vpop.f32.mrf.mxu0
        %v3629 = vadd.f32 %v3540, %v3628
        %3630 = vmatmul.bf16.gmra.mxu0 %v812
        %v3631 = vpop.f32.mrf.mxu0
        %v3632 = vadd.f32 %v3543, %v3631
        %v3633 = vpop.f32.mrf.mxu0
        %v3634 = vadd.f32 %v3545, %v3633
        %3635 = vdwg.mxu0
        %3636 = vmatpush.bf16.msra.mxu0 %v1814
        %3637 = vmatpush.bf16.msra.mxu0 %v1802
        %3638 = vmatpush.bf16.msra.mxu0 %v1790
        %3639 = vmatpush.bf16.msra.mxu0 %v1778
        %3640 = vmatpush.bf16.msra.mxu0 %v1766
        %3641 = vmatpush.bf16.msra.mxu0 %v1754
        %3642 = vmatpush.bf16.msra.mxu0 %v1742
        %3643 = vmatpush.bf16.msra.mxu0 %v1730
        %3644 = vmatmul.bf16.gmra.mxu0 %v765
        %v3645 = vpop.f32.mrf.mxu0
        %v3646 = vadd.f32 %v586, %v3645
        %v3647 = vpop.f32.mrf.mxu0
        %v3648 = vadd.f32 %v586, %v3647
        %3649 = vmatmul.bf16.gmra.mxu0 %v768
        %v3650 = vpop.f32.mrf.mxu0
        %v3651 = vadd.f32 %v586, %v3650
        %v3652 = vpop.f32.mrf.mxu0
        %v3653 = vadd.f32 %v586, %v3652
        %3654 = vmatmul.bf16.gmra.mxu0 %v771
        %v3655 = vpop.f32.mrf.mxu0
        %v3656 = vadd.f32 %v586, %v3655
        %v3657 = vpop.f32.mrf.mxu0
        %v3658 = vadd.f32 %v586, %v3657
        %3659 = vmatmul.bf16.gmra.mxu0 %v774
        %v3660 = vpop.f32.mrf.mxu0
        %v3661 = vadd.f32 %v586, %v3660
        %v3662 = vpop.f32.mrf.mxu0
        %v3663 = vadd.f32 %v586, %v3662
        %3664 = vmatmul.bf16.gmra.mxu0 %v777
        %v3665 = vpop.f32.mrf.mxu0
        %v3666 = vadd.f32 %v586, %v3665
        %v3667 = vpop.f32.mrf.mxu0
        %v3668 = vadd.f32 %v586, %v3667
        %3669 = vmatmul.bf16.gmra.mxu0 %v780
        %v3670 = vpop.f32.mrf.mxu0
        %v3671 = vadd.f32 %v586, %v3670
        %v3672 = vpop.f32.mrf.mxu0
        %v3673 = vadd.f32 %v586, %v3672
        %3674 = vmatmul.bf16.gmra.mxu0 %v783
        %v3675 = vpop.f32.mrf.mxu0
        %v3676 = vadd.f32 %v586, %v3675
        %v3677 = vpop.f32.mrf.mxu0
        %v3678 = vadd.f32 %v586, %v3677
        %3679 = vmatmul.bf16.gmra.mxu0 %v786
        %v3680 = vpop.f32.mrf.mxu0
        %v3681 = vadd.f32 %v586, %v3680
        %v3682 = vpop.f32.mrf.mxu0
        %v3683 = vadd.f32 %v586, %v3682
        %3684 = vmatmul.bf16.gmra.mxu0 %v789
        %v3685 = vpop.f32.mrf.mxu0
        %v3686 = vadd.f32 %v586, %v3685
        %v3687 = vpop.f32.mrf.mxu0
        %v3688 = vadd.f32 %v586, %v3687
        %3689 = vmatmul.bf16.gmra.mxu0 %v792
        %v3690 = vpop.f32.mrf.mxu0
        %v3691 = vadd.f32 %v586, %v3690
        %v3692 = vpop.f32.mrf.mxu0
        %v3693 = vadd.f32 %v586, %v3692
        %3694 = vmatmul.bf16.gmra.mxu0 %v795
        %v3695 = vpop.f32.mrf.mxu0
        %v3696 = vadd.f32 %v586, %v3695
        %v3697 = vpop.f32.mrf.mxu0
        %v3698 = vadd.f32 %v586, %v3697
        %3699 = vmatmul.bf16.gmra.mxu0 %v798
        %v3700 = vpop.f32.mrf.mxu0
        %v3701 = vadd.f32 %v586, %v3700
        %v3702 = vpop.f32.mrf.mxu0
        %v3703 = vadd.f32 %v586, %v3702
        %3704 = vmatmul.bf16.gmra.mxu0 %v801
        %v3705 = vpop.f32.mrf.mxu0
        %v3706 = vadd.f32 %v586, %v3705
        %v3707 = vpop.f32.mrf.mxu0
        %v3708 = vadd.f32 %v586, %v3707
        %3709 = vmatmul.bf16.gmra.mxu0 %v804
        %v3710 = vpop.f32.mrf.mxu0
        %v3711 = vadd.f32 %v586, %v3710
        %v3712 = vpop.f32.mrf.mxu0
        %v3713 = vadd.f32 %v586, %v3712
        %3714 = vmatmul.bf16.gmra.mxu0 %v807
        %v3715 = vpop.f32.mrf.mxu0
        %v3716 = vadd.f32 %v586, %v3715
        %v3717 = vpop.f32.mrf.mxu0
        %v3718 = vadd.f32 %v586, %v3717
        %3719 = vmatmul.bf16.gmra.mxu0 %v810
        %v3720 = vpop.f32.mrf.mxu0
        %v3721 = vadd.f32 %v586, %v3720
        %v3722 = vpop.f32.mrf.mxu0
        %v3723 = vadd.f32 %v586, %v3722
        %3724 = vdwg.mxu0
        %3725 = vmatpush.bf16.msra.mxu0 %v1910
        %3726 = vmatpush.bf16.msra.mxu0 %v1898
        %3727 = vmatpush.bf16.msra.mxu0 %v1886
        %3728 = vmatpush.bf16.msra.mxu0 %v1874
        %3729 = vmatpush.bf16.msra.mxu0 %v1862
        %3730 = vmatpush.bf16.msra.mxu0 %v1850
        %3731 = vmatpush.bf16.msra.mxu0 %v1838
        %3732 = vmatpush.bf16.msra.mxu0 %v1826
        %3733 = vmatmul.bf16.gmra.mxu0 %v766
        %v3734 = vpop.f32.mrf.mxu0
        %v3735 = vadd.f32 %v3646, %v3734
        %v3736 = vpop.f32.mrf.mxu0
        %v3737 = vadd.f32 %v3648, %v3736
        %3738 = vmatmul.bf16.gmra.mxu0 %v769
        %v3739 = vpop.f32.mrf.mxu0
        %v3740 = vadd.f32 %v3651, %v3739
        %v3741 = vpop.f32.mrf.mxu0
        %v3742 = vadd.f32 %v3653, %v3741
        %3743 = vmatmul.bf16.gmra.mxu0 %v772
        %v3744 = vpop.f32.mrf.mxu0
        %v3745 = vadd.f32 %v3656, %v3744
        %v3746 = vpop.f32.mrf.mxu0
        %v3747 = vadd.f32 %v3658, %v3746
        %3748 = vmatmul.bf16.gmra.mxu0 %v775
        %v3749 = vpop.f32.mrf.mxu0
        %v3750 = vadd.f32 %v3661, %v3749
        %v3751 = vpop.f32.mrf.mxu0
        %v3752 = vadd.f32 %v3663, %v3751
        %3753 = vmatmul.bf16.gmra.mxu0 %v778
        %v3754 = vpop.f32.mrf.mxu0
        %v3755 = vadd.f32 %v3666, %v3754
        %v3756 = vpop.f32.mrf.mxu0
        %v3757 = vadd.f32 %v3668, %v3756
        %3758 = vmatmul.bf16.gmra.mxu0 %v781
        %v3759 = vpop.f32.mrf.mxu0
        %v3760 = vadd.f32 %v3671, %v3759
        %v3761 = vpop.f32.mrf.mxu0
        %v3762 = vadd.f32 %v3673, %v3761
        %3763 = vmatmul.bf16.gmra.mxu0 %v784
        %v3764 = vpop.f32.mrf.mxu0
        %v3765 = vadd.f32 %v3676, %v3764
        %v3766 = vpop.f32.mrf.mxu0
        %v3767 = vadd.f32 %v3678, %v3766
        %3768 = vmatmul.bf16.gmra.mxu0 %v787
        %v3769 = vpop.f32.mrf.mxu0
        %v3770 = vadd.f32 %v3681, %v3769
        %v3771 = vpop.f32.mrf.mxu0
        %v3772 = vadd.f32 %v3683, %v3771
        %3773 = vmatmul.bf16.gmra.mxu0 %v790
        %v3774 = vpop.f32.mrf.mxu0
        %v3775 = vadd.f32 %v3686, %v3774
        %v3776 = vpop.f32.mrf.mxu0
        %v3777 = vadd.f32 %v3688, %v3776
        %3778 = vmatmul.bf16.gmra.mxu0 %v793
        %v3779 = vpop.f32.mrf.mxu0
        %v3780 = vadd.f32 %v3691, %v3779
        %v3781 = vpop.f32.mrf.mxu0
        %v3782 = vadd.f32 %v3693, %v3781
        %3783 = vmatmul.bf16.gmra.mxu0 %v796
        %v3784 = vpop.f32.mrf.mxu0
        %v3785 = vadd.f32 %v3696, %v3784
        %v3786 = vpop.f32.mrf.mxu0
        %v3787 = vadd.f32 %v3698, %v3786
        %3788 = vmatmul.bf16.gmra.mxu0 %v799
        %v3789 = vpop.f32.mrf.mxu0
        %v3790 = vadd.f32 %v3701, %v3789
        %v3791 = vpop.f32.mrf.mxu0
        %v3792 = vadd.f32 %v3703, %v3791
        %3793 = vmatmul.bf16.gmra.mxu0 %v802
        %v3794 = vpop.f32.mrf.mxu0
        %v3795 = vadd.f32 %v3706, %v3794
        %v3796 = vpop.f32.mrf.mxu0
        %v3797 = vadd.f32 %v3708, %v3796
        %3798 = vmatmul.bf16.gmra.mxu0 %v805
        %v3799 = vpop.f32.mrf.mxu0
        %v3800 = vadd.f32 %v3711, %v3799
        %v3801 = vpop.f32.mrf.mxu0
        %v3802 = vadd.f32 %v3713, %v3801
        %3803 = vmatmul.bf16.gmra.mxu0 %v808
        %v3804 = vpop.f32.mrf.mxu0
        %v3805 = vadd.f32 %v3716, %v3804
        %v3806 = vpop.f32.mrf.mxu0
        %v3807 = vadd.f32 %v3718, %v3806
        %3808 = vmatmul.bf16.gmra.mxu0 %v811
        %v3809 = vpop.f32.mrf.mxu0
        %v3810 = vadd.f32 %v3721, %v3809
        %v3811 = vpop.f32.mrf.mxu0
        %v3812 = vadd.f32 %v3723, %v3811
        %3813 = vdwg.mxu0
        %3814 = vmatpush.bf16.msra.mxu0 %v2006
        %3815 = vmatpush.bf16.msra.mxu0 %v1994
        %3816 = vmatpush.bf16.msra.mxu0 %v1982
        %3817 = vmatpush.bf16.msra.mxu0 %v1970
        %3818 = vmatpush.bf16.msra.mxu0 %v1958
        %3819 = vmatpush.bf16.msra.mxu0 %v1946
        %3820 = vmatpush.bf16.msra.mxu0 %v1934
        %3821 = vmatpush.bf16.msra.mxu0 %v1922
        %3822 = vmatmul.bf16.gmra.mxu0 %v767
        %v3823 = vpop.f32.mrf.mxu0
        %v3824 = vadd.f32 %v3735, %v3823
        %v3825 = vpop.f32.mrf.mxu0
        %v3826 = vadd.f32 %v3737, %v3825
        %3827 = vmatmul.bf16.gmra.mxu0 %v770
        %v3828 = vpop.f32.mrf.mxu0
        %v3829 = vadd.f32 %v3740, %v3828
        %v3830 = vpop.f32.mrf.mxu0
        %v3831 = vadd.f32 %v3742, %v3830
        %3832 = vmatmul.bf16.gmra.mxu0 %v773
        %v3833 = vpop.f32.mrf.mxu0
        %v3834 = vadd.f32 %v3745, %v3833
        %v3835 = vpop.f32.mrf.mxu0
        %v3836 = vadd.f32 %v3747, %v3835
        %3837 = vmatmul.bf16.gmra.mxu0 %v776
        %v3838 = vpop.f32.mrf.mxu0
        %v3839 = vadd.f32 %v3750, %v3838
        %v3840 = vpop.f32.mrf.mxu0
        %v3841 = vadd.f32 %v3752, %v3840
        %3842 = vmatmul.bf16.gmra.mxu0 %v779
        %v3843 = vpop.f32.mrf.mxu0
        %v3844 = vadd.f32 %v3755, %v3843
        %v3845 = vpop.f32.mrf.mxu0
        %v3846 = vadd.f32 %v3757, %v3845
        %3847 = vmatmul.bf16.gmra.mxu0 %v782
        %v3848 = vpop.f32.mrf.mxu0
        %v3849 = vadd.f32 %v3760, %v3848
        %v3850 = vpop.f32.mrf.mxu0
        %v3851 = vadd.f32 %v3762, %v3850
        %3852 = vmatmul.bf16.gmra.mxu0 %v785
        %v3853 = vpop.f32.mrf.mxu0
        %v3854 = vadd.f32 %v3765, %v3853
        %v3855 = vpop.f32.mrf.mxu0
        %v3856 = vadd.f32 %v3767, %v3855
        %3857 = vmatmul.bf16.gmra.mxu0 %v788
        %v3858 = vpop.f32.mrf.mxu0
        %v3859 = vadd.f32 %v3770, %v3858
        %v3860 = vpop.f32.mrf.mxu0
        %v3861 = vadd.f32 %v3772, %v3860
        %3862 = vmatmul.bf16.gmra.mxu0 %v791
        %v3863 = vpop.f32.mrf.mxu0
        %v3864 = vadd.f32 %v3775, %v3863
        %v3865 = vpop.f32.mrf.mxu0
        %v3866 = vadd.f32 %v3777, %v3865
        %3867 = vmatmul.bf16.gmra.mxu0 %v794
        %v3868 = vpop.f32.mrf.mxu0
        %v3869 = vadd.f32 %v3780, %v3868
        %v3870 = vpop.f32.mrf.mxu0
        %v3871 = vadd.f32 %v3782, %v3870
        %3872 = vmatmul.bf16.gmra.mxu0 %v797
        %v3873 = vpop.f32.mrf.mxu0
        %v3874 = vadd.f32 %v3785, %v3873
        %v3875 = vpop.f32.mrf.mxu0
        %v3876 = vadd.f32 %v3787, %v3875
        %3877 = vmatmul.bf16.gmra.mxu0 %v800
        %v3878 = vpop.f32.mrf.mxu0
        %v3879 = vadd.f32 %v3790, %v3878
        %v3880 = vpop.f32.mrf.mxu0
        %v3881 = vadd.f32 %v3792, %v3880
        %3882 = vmatmul.bf16.gmra.mxu0 %v803
        %v3883 = vpop.f32.mrf.mxu0
        %v3884 = vadd.f32 %v3795, %v3883
        %v3885 = vpop.f32.mrf.mxu0
        %v3886 = vadd.f32 %v3797, %v3885
        %3887 = vmatmul.bf16.gmra.mxu0 %v806
        %v3888 = vpop.f32.mrf.mxu0
        %v3889 = vadd.f32 %v3800, %v3888
        %v3890 = vpop.f32.mrf.mxu0
        %v3891 = vadd.f32 %v3802, %v3890
        %3892 = vmatmul.bf16.gmra.mxu0 %v809
        %v3893 = vpop.f32.mrf.mxu0
        %v3894 = vadd.f32 %v3805, %v3893
        %v3895 = vpop.f32.mrf.mxu0
        %v3896 = vadd.f32 %v3807, %v3895
        %3897 = vmatmul.bf16.gmra.mxu0 %v812
        %v3898 = vpop.f32.mrf.mxu0
        %v3899 = vadd.f32 %v3810, %v3898
        %v3900 = vpop.f32.mrf.mxu0
        %v3901 = vadd.f32 %v3812, %v3900
        %3902 = vdwg.mxu0
        %3903 = vmatpush.bf16.msra.mxu0 %v1815
        %3904 = vmatpush.bf16.msra.mxu0 %v1803
        %3905 = vmatpush.bf16.msra.mxu0 %v1791
        %3906 = vmatpush.bf16.msra.mxu0 %v1779
        %3907 = vmatpush.bf16.msra.mxu0 %v1767
        %3908 = vmatpush.bf16.msra.mxu0 %v1755
        %3909 = vmatpush.bf16.msra.mxu0 %v1743
        %3910 = vmatpush.bf16.msra.mxu0 %v1731
        %3911 = vmatmul.bf16.gmra.mxu0 %v765
        %v3912 = vpop.f32.mrf.mxu0
        %v3913 = vadd.f32 %v587, %v3912
        %v3914 = vpop.f32.mrf.mxu0
        %v3915 = vadd.f32 %v587, %v3914
        %3916 = vmatmul.bf16.gmra.mxu0 %v768
        %v3917 = vpop.f32.mrf.mxu0
        %v3918 = vadd.f32 %v587, %v3917
        %v3919 = vpop.f32.mrf.mxu0
        %v3920 = vadd.f32 %v587, %v3919
        %3921 = vmatmul.bf16.gmra.mxu0 %v771
        %v3922 = vpop.f32.mrf.mxu0
        %v3923 = vadd.f32 %v587, %v3922
        %v3924 = vpop.f32.mrf.mxu0
        %v3925 = vadd.f32 %v587, %v3924
        %3926 = vmatmul.bf16.gmra.mxu0 %v774
        %v3927 = vpop.f32.mrf.mxu0
        %v3928 = vadd.f32 %v587, %v3927
        %v3929 = vpop.f32.mrf.mxu0
        %v3930 = vadd.f32 %v587, %v3929
        %3931 = vmatmul.bf16.gmra.mxu0 %v777
        %v3932 = vpop.f32.mrf.mxu0
        %v3933 = vadd.f32 %v587, %v3932
        %v3934 = vpop.f32.mrf.mxu0
        %v3935 = vadd.f32 %v587, %v3934
        %3936 = vmatmul.bf16.gmra.mxu0 %v780
        %v3937 = vpop.f32.mrf.mxu0
        %v3938 = vadd.f32 %v587, %v3937
        %v3939 = vpop.f32.mrf.mxu0
        %v3940 = vadd.f32 %v587, %v3939
        %3941 = vmatmul.bf16.gmra.mxu0 %v783
        %v3942 = vpop.f32.mrf.mxu0
        %v3943 = vadd.f32 %v587, %v3942
        %v3944 = vpop.f32.mrf.mxu0
        %v3945 = vadd.f32 %v587, %v3944
        %3946 = vmatmul.bf16.gmra.mxu0 %v786
        %v3947 = vpop.f32.mrf.mxu0
        %v3948 = vadd.f32 %v587, %v3947
        %v3949 = vpop.f32.mrf.mxu0
        %v3950 = vadd.f32 %v587, %v3949
        %3951 = vmatmul.bf16.gmra.mxu0 %v789
        %v3952 = vpop.f32.mrf.mxu0
        %v3953 = vadd.f32 %v587, %v3952
        %v3954 = vpop.f32.mrf.mxu0
        %v3955 = vadd.f32 %v587, %v3954
        %3956 = vmatmul.bf16.gmra.mxu0 %v792
        %v3957 = vpop.f32.mrf.mxu0
        %v3958 = vadd.f32 %v587, %v3957
        %v3959 = vpop.f32.mrf.mxu0
        %v3960 = vadd.f32 %v587, %v3959
        %3961 = vmatmul.bf16.gmra.mxu0 %v795
        %v3962 = vpop.f32.mrf.mxu0
        %v3963 = vadd.f32 %v587, %v3962
        %v3964 = vpop.f32.mrf.mxu0
        %v3965 = vadd.f32 %v587, %v3964
        %3966 = vmatmul.bf16.gmra.mxu0 %v798
        %v3967 = vpop.f32.mrf.mxu0
        %v3968 = vadd.f32 %v587, %v3967
        %v3969 = vpop.f32.mrf.mxu0
        %v3970 = vadd.f32 %v587, %v3969
        %3971 = vmatmul.bf16.gmra.mxu0 %v801
        %v3972 = vpop.f32.mrf.mxu0
        %v3973 = vadd.f32 %v587, %v3972
        %v3974 = vpop.f32.mrf.mxu0
        %v3975 = vadd.f32 %v587, %v3974
        %3976 = vmatmul.bf16.gmra.mxu0 %v804
        %v3977 = vpop.f32.mrf.mxu0
        %v3978 = vadd.f32 %v587, %v3977
        %v3979 = vpop.f32.mrf.mxu0
        %v3980 = vadd.f32 %v587, %v3979
        %3981 = vmatmul.bf16.gmra.mxu0 %v807
        %v3982 = vpop.f32.mrf.mxu0
        %v3983 = vadd.f32 %v587, %v3982
        %v3984 = vpop.f32.mrf.mxu0
        %v3985 = vadd.f32 %v587, %v3984
        %3986 = vmatmul.bf16.gmra.mxu0 %v810
        %v3987 = vpop.f32.mrf.mxu0
        %v3988 = vadd.f32 %v587, %v3987
        %v3989 = vpop.f32.mrf.mxu0
        %v3990 = vadd.f32 %v587, %v3989
        %3991 = vdwg.mxu0
        %3992 = vmatpush.bf16.msra.mxu0 %v1911
        %3993 = vmatpush.bf16.msra.mxu0 %v1899
        %3994 = vmatpush.bf16.msra.mxu0 %v1887
        %3995 = vmatpush.bf16.msra.mxu0 %v1875
        %3996 = vmatpush.bf16.msra.mxu0 %v1863
        %3997 = vmatpush.bf16.msra.mxu0 %v1851
        %3998 = vmatpush.bf16.msra.mxu0 %v1839
        %3999 = vmatpush.bf16.msra.mxu0 %v1827
        %4000 = vmatmul.bf16.gmra.mxu0 %v766
        %v4001 = vpop.f32.mrf.mxu0
        %v4002 = vadd.f32 %v3913, %v4001
        %v4003 = vpop.f32.mrf.mxu0
        %v4004 = vadd.f32 %v3915, %v4003
        %4005 = vmatmul.bf16.gmra.mxu0 %v769
        %v4006 = vpop.f32.mrf.mxu0
        %v4007 = vadd.f32 %v3918, %v4006
        %v4008 = vpop.f32.mrf.mxu0
        %v4009 = vadd.f32 %v3920, %v4008
        %4010 = vmatmul.bf16.gmra.mxu0 %v772
        %v4011 = vpop.f32.mrf.mxu0
        %v4012 = vadd.f32 %v3923, %v4011
        %v4013 = vpop.f32.mrf.mxu0
        %v4014 = vadd.f32 %v3925, %v4013
        %4015 = vmatmul.bf16.gmra.mxu0 %v775
        %v4016 = vpop.f32.mrf.mxu0
        %v4017 = vadd.f32 %v3928, %v4016
        %v4018 = vpop.f32.mrf.mxu0
        %v4019 = vadd.f32 %v3930, %v4018
        %4020 = vmatmul.bf16.gmra.mxu0 %v778
        %v4021 = vpop.f32.mrf.mxu0
        %v4022 = vadd.f32 %v3933, %v4021
        %v4023 = vpop.f32.mrf.mxu0
        %v4024 = vadd.f32 %v3935, %v4023
        %4025 = vmatmul.bf16.gmra.mxu0 %v781
        %v4026 = vpop.f32.mrf.mxu0
        %v4027 = vadd.f32 %v3938, %v4026
        %v4028 = vpop.f32.mrf.mxu0
        %v4029 = vadd.f32 %v3940, %v4028
        %4030 = vmatmul.bf16.gmra.mxu0 %v784
        %v4031 = vpop.f32.mrf.mxu0
        %v4032 = vadd.f32 %v3943, %v4031
        %v4033 = vpop.f32.mrf.mxu0
        %v4034 = vadd.f32 %v3945, %v4033
        %4035 = vmatmul.bf16.gmra.mxu0 %v787
        %v4036 = vpop.f32.mrf.mxu0
        %v4037 = vadd.f32 %v3948, %v4036
        %v4038 = vpop.f32.mrf.mxu0
        %v4039 = vadd.f32 %v3950, %v4038
        %4040 = vmatmul.bf16.gmra.mxu0 %v790
        %v4041 = vpop.f32.mrf.mxu0
        %v4042 = vadd.f32 %v3953, %v4041
        %v4043 = vpop.f32.mrf.mxu0
        %v4044 = vadd.f32 %v3955, %v4043
        %4045 = vmatmul.bf16.gmra.mxu0 %v793
        %v4046 = vpop.f32.mrf.mxu0
        %v4047 = vadd.f32 %v3958, %v4046
        %v4048 = vpop.f32.mrf.mxu0
        %v4049 = vadd.f32 %v3960, %v4048
        %4050 = vmatmul.bf16.gmra.mxu0 %v796
        %v4051 = vpop.f32.mrf.mxu0
        %v4052 = vadd.f32 %v3963, %v4051
        %v4053 = vpop.f32.mrf.mxu0
        %v4054 = vadd.f32 %v3965, %v4053
        %4055 = vmatmul.bf16.gmra.mxu0 %v799
        %v4056 = vpop.f32.mrf.mxu0
        %v4057 = vadd.f32 %v3968, %v4056
        %v4058 = vpop.f32.mrf.mxu0
        %v4059 = vadd.f32 %v3970, %v4058
        %4060 = vmatmul.bf16.gmra.mxu0 %v802
        %v4061 = vpop.f32.mrf.mxu0
        %v4062 = vadd.f32 %v3973, %v4061
        %v4063 = vpop.f32.mrf.mxu0
        %v4064 = vadd.f32 %v3975, %v4063
        %4065 = vmatmul.bf16.gmra.mxu0 %v805
        %v4066 = vpop.f32.mrf.mxu0
        %v4067 = vadd.f32 %v3978, %v4066
        %v4068 = vpop.f32.mrf.mxu0
        %v4069 = vadd.f32 %v3980, %v4068
        %4070 = vmatmul.bf16.gmra.mxu0 %v808
        %v4071 = vpop.f32.mrf.mxu0
        %v4072 = vadd.f32 %v3983, %v4071
        %v4073 = vpop.f32.mrf.mxu0
        %v4074 = vadd.f32 %v3985, %v4073
        %4075 = vmatmul.bf16.gmra.mxu0 %v811
        %v4076 = vpop.f32.mrf.mxu0
        %v4077 = vadd.f32 %v3988, %v4076
        %v4078 = vpop.f32.mrf.mxu0
        %v4079 = vadd.f32 %v3990, %v4078
        %4080 = vdwg.mxu0
        %4081 = vmatpush.bf16.msra.mxu0 %v2007
        %4082 = vmatpush.bf16.msra.mxu0 %v1995
        %4083 = vmatpush.bf16.msra.mxu0 %v1983
        %4084 = vmatpush.bf16.msra.mxu0 %v1971
        %4085 = vmatpush.bf16.msra.mxu0 %v1959
        %4086 = vmatpush.bf16.msra.mxu0 %v1947
        %4087 = vmatpush.bf16.msra.mxu0 %v1935
        %4088 = vmatpush.bf16.msra.mxu0 %v1923
        %4089 = vmatmul.bf16.gmra.mxu0 %v767
        %v4090 = vpop.f32.mrf.mxu0
        %v4091 = vadd.f32 %v4002, %v4090
        %v4092 = vpop.f32.mrf.mxu0
        %v4093 = vadd.f32 %v4004, %v4092
        %4094 = vmatmul.bf16.gmra.mxu0 %v770
        %v4095 = vpop.f32.mrf.mxu0
        %v4096 = vadd.f32 %v4007, %v4095
        %v4097 = vpop.f32.mrf.mxu0
        %v4098 = vadd.f32 %v4009, %v4097
        %4099 = vmatmul.bf16.gmra.mxu0 %v773
        %v4100 = vpop.f32.mrf.mxu0
        %v4101 = vadd.f32 %v4012, %v4100
        %v4102 = vpop.f32.mrf.mxu0
        %v4103 = vadd.f32 %v4014, %v4102
        %4104 = vmatmul.bf16.gmra.mxu0 %v776
        %v4105 = vpop.f32.mrf.mxu0
        %v4106 = vadd.f32 %v4017, %v4105
        %v4107 = vpop.f32.mrf.mxu0
        %v4108 = vadd.f32 %v4019, %v4107
        %4109 = vmatmul.bf16.gmra.mxu0 %v779
        %v4110 = vpop.f32.mrf.mxu0
        %v4111 = vadd.f32 %v4022, %v4110
        %v4112 = vpop.f32.mrf.mxu0
        %v4113 = vadd.f32 %v4024, %v4112
        %4114 = vmatmul.bf16.gmra.mxu0 %v782
        %v4115 = vpop.f32.mrf.mxu0
        %v4116 = vadd.f32 %v4027, %v4115
        %v4117 = vpop.f32.mrf.mxu0
        %v4118 = vadd.f32 %v4029, %v4117
        %4119 = vmatmul.bf16.gmra.mxu0 %v785
        %v4120 = vpop.f32.mrf.mxu0
        %v4121 = vadd.f32 %v4032, %v4120
        %v4122 = vpop.f32.mrf.mxu0
        %v4123 = vadd.f32 %v4034, %v4122
        %4124 = vmatmul.bf16.gmra.mxu0 %v788
        %v4125 = vpop.f32.mrf.mxu0
        %v4126 = vadd.f32 %v4037, %v4125
        %v4127 = vpop.f32.mrf.mxu0
        %v4128 = vadd.f32 %v4039, %v4127
        %4129 = vmatmul.bf16.gmra.mxu0 %v791
        %v4130 = vpop.f32.mrf.mxu0
        %v4131 = vadd.f32 %v4042, %v4130
        %v4132 = vpop.f32.mrf.mxu0
        %v4133 = vadd.f32 %v4044, %v4132
        %4134 = vmatmul.bf16.gmra.mxu0 %v794
        %v4135 = vpop.f32.mrf.mxu0
        %v4136 = vadd.f32 %v4047, %v4135
        %v4137 = vpop.f32.mrf.mxu0
        %v4138 = vadd.f32 %v4049, %v4137
        %4139 = vmatmul.bf16.gmra.mxu0 %v797
        %v4140 = vpop.f32.mrf.mxu0
        %v4141 = vadd.f32 %v4052, %v4140
        %v4142 = vpop.f32.mrf.mxu0
        %v4143 = vadd.f32 %v4054, %v4142
        %4144 = vmatmul.bf16.gmra.mxu0 %v800
        %v4145 = vpop.f32.mrf.mxu0
        %v4146 = vadd.f32 %v4057, %v4145
        %v4147 = vpop.f32.mrf.mxu0
        %v4148 = vadd.f32 %v4059, %v4147
        %4149 = vmatmul.bf16.gmra.mxu0 %v803
        %v4150 = vpop.f32.mrf.mxu0
        %v4151 = vadd.f32 %v4062, %v4150
        %v4152 = vpop.f32.mrf.mxu0
        %v4153 = vadd.f32 %v4064, %v4152
        %4154 = vmatmul.bf16.gmra.mxu0 %v806
        %v4155 = vpop.f32.mrf.mxu0
        %v4156 = vadd.f32 %v4067, %v4155
        %v4157 = vpop.f32.mrf.mxu0
        %v4158 = vadd.f32 %v4069, %v4157
        %4159 = vmatmul.bf16.gmra.mxu0 %v809
        %v4160 = vpop.f32.mrf.mxu0
        %v4161 = vadd.f32 %v4072, %v4160
        %v4162 = vpop.f32.mrf.mxu0
        %v4163 = vadd.f32 %v4074, %v4162
        %4164 = vmatmul.bf16.gmra.mxu0 %v812
        %v4165 = vpop.f32.mrf.mxu0
        %v4166 = vadd.f32 %v4077, %v4165
        %v4167 = vpop.f32.mrf.mxu0
        %v4168 = vadd.f32 %v4079, %v4167
        %4169 = vdwg.mxu0
        %4170 = vmatpush.bf16.msra.mxu0 %v1816
        %4171 = vmatpush.bf16.msra.mxu0 %v1804
        %4172 = vmatpush.bf16.msra.mxu0 %v1792
        %4173 = vmatpush.bf16.msra.mxu0 %v1780
        %4174 = vmatpush.bf16.msra.mxu0 %v1768
        %4175 = vmatpush.bf16.msra.mxu0 %v1756
        %4176 = vmatpush.bf16.msra.mxu0 %v1744
        %4177 = vmatpush.bf16.msra.mxu0 %v1732
        %4178 = vmatmul.bf16.gmra.mxu0 %v765
        %v4179 = vpop.f32.mrf.mxu0
        %v4180 = vadd.f32 %v588, %v4179
        %v4181 = vpop.f32.mrf.mxu0
        %v4182 = vadd.f32 %v588, %v4181
        %4183 = vmatmul.bf16.gmra.mxu0 %v768
        %v4184 = vpop.f32.mrf.mxu0
        %v4185 = vadd.f32 %v588, %v4184
        %v4186 = vpop.f32.mrf.mxu0
        %v4187 = vadd.f32 %v588, %v4186
        %4188 = vmatmul.bf16.gmra.mxu0 %v771
        %v4189 = vpop.f32.mrf.mxu0
        %v4190 = vadd.f32 %v588, %v4189
        %v4191 = vpop.f32.mrf.mxu0
        %v4192 = vadd.f32 %v588, %v4191
        %4193 = vmatmul.bf16.gmra.mxu0 %v774
        %v4194 = vpop.f32.mrf.mxu0
        %v4195 = vadd.f32 %v588, %v4194
        %v4196 = vpop.f32.mrf.mxu0
        %v4197 = vadd.f32 %v588, %v4196
        %4198 = vmatmul.bf16.gmra.mxu0 %v777
        %v4199 = vpop.f32.mrf.mxu0
        %v4200 = vadd.f32 %v588, %v4199
        %v4201 = vpop.f32.mrf.mxu0
        %v4202 = vadd.f32 %v588, %v4201
        %4203 = vmatmul.bf16.gmra.mxu0 %v780
        %v4204 = vpop.f32.mrf.mxu0
        %v4205 = vadd.f32 %v588, %v4204
        %v4206 = vpop.f32.mrf.mxu0
        %v4207 = vadd.f32 %v588, %v4206
        %4208 = vmatmul.bf16.gmra.mxu0 %v783
        %v4209 = vpop.f32.mrf.mxu0
        %v4210 = vadd.f32 %v588, %v4209
        %v4211 = vpop.f32.mrf.mxu0
        %v4212 = vadd.f32 %v588, %v4211
        %4213 = vmatmul.bf16.gmra.mxu0 %v786
        %v4214 = vpop.f32.mrf.mxu0
        %v4215 = vadd.f32 %v588, %v4214
        %v4216 = vpop.f32.mrf.mxu0
        %v4217 = vadd.f32 %v588, %v4216
        %4218 = vmatmul.bf16.gmra.mxu0 %v789
        %v4219 = vpop.f32.mrf.mxu0
        %v4220 = vadd.f32 %v588, %v4219
        %v4221 = vpop.f32.mrf.mxu0
        %v4222 = vadd.f32 %v588, %v4221
        %4223 = vmatmul.bf16.gmra.mxu0 %v792
        %v4224 = vpop.f32.mrf.mxu0
        %v4225 = vadd.f32 %v588, %v4224
        %v4226 = vpop.f32.mrf.mxu0
        %v4227 = vadd.f32 %v588, %v4226
        %4228 = vmatmul.bf16.gmra.mxu0 %v795
        %v4229 = vpop.f32.mrf.mxu0
        %v4230 = vadd.f32 %v588, %v4229
        %v4231 = vpop.f32.mrf.mxu0
        %v4232 = vadd.f32 %v588, %v4231
        %4233 = vmatmul.bf16.gmra.mxu0 %v798
        %v4234 = vpop.f32.mrf.mxu0
        %v4235 = vadd.f32 %v588, %v4234
        %v4236 = vpop.f32.mrf.mxu0
        %v4237 = vadd.f32 %v588, %v4236
        %4238 = vmatmul.bf16.gmra.mxu0 %v801
        %v4239 = vpop.f32.mrf.mxu0
        %v4240 = vadd.f32 %v588, %v4239
        %v4241 = vpop.f32.mrf.mxu0
        %v4242 = vadd.f32 %v588, %v4241
        %4243 = vmatmul.bf16.gmra.mxu0 %v804
        %v4244 = vpop.f32.mrf.mxu0
        %v4245 = vadd.f32 %v588, %v4244
        %v4246 = vpop.f32.mrf.mxu0
        %v4247 = vadd.f32 %v588, %v4246
        %4248 = vmatmul.bf16.gmra.mxu0 %v807
        %v4249 = vpop.f32.mrf.mxu0
        %v4250 = vadd.f32 %v588, %v4249
        %v4251 = vpop.f32.mrf.mxu0
        %v4252 = vadd.f32 %v588, %v4251
        %4253 = vmatmul.bf16.gmra.mxu0 %v810
        %v4254 = vpop.f32.mrf.mxu0
        %v4255 = vadd.f32 %v588, %v4254
        %v4256 = vpop.f32.mrf.mxu0
        %v4257 = vadd.f32 %v588, %v4256
        %4258 = vdwg.mxu0
        %4259 = vmatpush.bf16.msra.mxu0 %v1912
        %4260 = vmatpush.bf16.msra.mxu0 %v1900
        %4261 = vmatpush.bf16.msra.mxu0 %v1888
        %4262 = vmatpush.bf16.msra.mxu0 %v1876
        %4263 = vmatpush.bf16.msra.mxu0 %v1864
        %4264 = vmatpush.bf16.msra.mxu0 %v1852
        %4265 = vmatpush.bf16.msra.mxu0 %v1840
        %4266 = vmatpush.bf16.msra.mxu0 %v1828
        %4267 = vmatmul.bf16.gmra.mxu0 %v766
        %v4268 = vpop.f32.mrf.mxu0
        %v4269 = vadd.f32 %v4180, %v4268
        %v4270 = vpop.f32.mrf.mxu0
        %v4271 = vadd.f32 %v4182, %v4270
        %4272 = vmatmul.bf16.gmra.mxu0 %v769
        %v4273 = vpop.f32.mrf.mxu0
        %v4274 = vadd.f32 %v4185, %v4273
        %v4275 = vpop.f32.mrf.mxu0
        %v4276 = vadd.f32 %v4187, %v4275
        %4277 = vmatmul.bf16.gmra.mxu0 %v772
        %v4278 = vpop.f32.mrf.mxu0
        %v4279 = vadd.f32 %v4190, %v4278
        %v4280 = vpop.f32.mrf.mxu0
        %v4281 = vadd.f32 %v4192, %v4280
        %4282 = vmatmul.bf16.gmra.mxu0 %v775
        %v4283 = vpop.f32.mrf.mxu0
        %v4284 = vadd.f32 %v4195, %v4283
        %v4285 = vpop.f32.mrf.mxu0
        %v4286 = vadd.f32 %v4197, %v4285
        %4287 = vmatmul.bf16.gmra.mxu0 %v778
        %v4288 = vpop.f32.mrf.mxu0
        %v4289 = vadd.f32 %v4200, %v4288
        %v4290 = vpop.f32.mrf.mxu0
        %v4291 = vadd.f32 %v4202, %v4290
        %4292 = vmatmul.bf16.gmra.mxu0 %v781
        %v4293 = vpop.f32.mrf.mxu0
        %v4294 = vadd.f32 %v4205, %v4293
        %v4295 = vpop.f32.mrf.mxu0
        %v4296 = vadd.f32 %v4207, %v4295
        %4297 = vmatmul.bf16.gmra.mxu0 %v784
        %v4298 = vpop.f32.mrf.mxu0
        %v4299 = vadd.f32 %v4210, %v4298
        %v4300 = vpop.f32.mrf.mxu0
        %v4301 = vadd.f32 %v4212, %v4300
        %4302 = vmatmul.bf16.gmra.mxu0 %v787
        %v4303 = vpop.f32.mrf.mxu0
        %v4304 = vadd.f32 %v4215, %v4303
        %v4305 = vpop.f32.mrf.mxu0
        %v4306 = vadd.f32 %v4217, %v4305
        %4307 = vmatmul.bf16.gmra.mxu0 %v790
        %v4308 = vpop.f32.mrf.mxu0
        %v4309 = vadd.f32 %v4220, %v4308
        %v4310 = vpop.f32.mrf.mxu0
        %v4311 = vadd.f32 %v4222, %v4310
        %4312 = vmatmul.bf16.gmra.mxu0 %v793
        %v4313 = vpop.f32.mrf.mxu0
        %v4314 = vadd.f32 %v4225, %v4313
        %v4315 = vpop.f32.mrf.mxu0
        %v4316 = vadd.f32 %v4227, %v4315
        %4317 = vmatmul.bf16.gmra.mxu0 %v796
        %v4318 = vpop.f32.mrf.mxu0
        %v4319 = vadd.f32 %v4230, %v4318
        %v4320 = vpop.f32.mrf.mxu0
        %v4321 = vadd.f32 %v4232, %v4320
        %4322 = vmatmul.bf16.gmra.mxu0 %v799
        %v4323 = vpop.f32.mrf.mxu0
        %v4324 = vadd.f32 %v4235, %v4323
        %v4325 = vpop.f32.mrf.mxu0
        %v4326 = vadd.f32 %v4237, %v4325
        %4327 = vmatmul.bf16.gmra.mxu0 %v802
        %v4328 = vpop.f32.mrf.mxu0
        %v4329 = vadd.f32 %v4240, %v4328
        %v4330 = vpop.f32.mrf.mxu0
        %v4331 = vadd.f32 %v4242, %v4330
        %4332 = vmatmul.bf16.gmra.mxu0 %v805
        %v4333 = vpop.f32.mrf.mxu0
        %v4334 = vadd.f32 %v4245, %v4333
        %v4335 = vpop.f32.mrf.mxu0
        %v4336 = vadd.f32 %v4247, %v4335
        %4337 = vmatmul.bf16.gmra.mxu0 %v808
        %v4338 = vpop.f32.mrf.mxu0
        %v4339 = vadd.f32 %v4250, %v4338
        %v4340 = vpop.f32.mrf.mxu0
        %v4341 = vadd.f32 %v4252, %v4340
        %4342 = vmatmul.bf16.gmra.mxu0 %v811
        %v4343 = vpop.f32.mrf.mxu0
        %v4344 = vadd.f32 %v4255, %v4343
        %v4345 = vpop.f32.mrf.mxu0
        %v4346 = vadd.f32 %v4257, %v4345
        %4347 = vdwg.mxu0
        %4348 = vmatpush.bf16.msra.mxu0 %v2008
        %4349 = vmatpush.bf16.msra.mxu0 %v1996
        %4350 = vmatpush.bf16.msra.mxu0 %v1984
        %4351 = vmatpush.bf16.msra.mxu0 %v1972
        %4352 = vmatpush.bf16.msra.mxu0 %v1960
        %4353 = vmatpush.bf16.msra.mxu0 %v1948
        %4354 = vmatpush.bf16.msra.mxu0 %v1936
        %4355 = vmatpush.bf16.msra.mxu0 %v1924
        %4356 = vmatmul.bf16.gmra.mxu0 %v767
        %v4357 = vpop.f32.mrf.mxu0
        %v4358 = vadd.f32 %v4269, %v4357
        %v4359 = vpop.f32.mrf.mxu0
        %v4360 = vadd.f32 %v4271, %v4359
        %4361 = vmatmul.bf16.gmra.mxu0 %v770
        %v4362 = vpop.f32.mrf.mxu0
        %v4363 = vadd.f32 %v4274, %v4362
        %v4364 = vpop.f32.mrf.mxu0
        %v4365 = vadd.f32 %v4276, %v4364
        %4366 = vmatmul.bf16.gmra.mxu0 %v773
        %v4367 = vpop.f32.mrf.mxu0
        %v4368 = vadd.f32 %v4279, %v4367
        %v4369 = vpop.f32.mrf.mxu0
        %v4370 = vadd.f32 %v4281, %v4369
        %4371 = vmatmul.bf16.gmra.mxu0 %v776
        %v4372 = vpop.f32.mrf.mxu0
        %v4373 = vadd.f32 %v4284, %v4372
        %v4374 = vpop.f32.mrf.mxu0
        %v4375 = vadd.f32 %v4286, %v4374
        %4376 = vmatmul.bf16.gmra.mxu0 %v779
        %v4377 = vpop.f32.mrf.mxu0
        %v4378 = vadd.f32 %v4289, %v4377
        %v4379 = vpop.f32.mrf.mxu0
        %v4380 = vadd.f32 %v4291, %v4379
        %4381 = vmatmul.bf16.gmra.mxu0 %v782
        %v4382 = vpop.f32.mrf.mxu0
        %v4383 = vadd.f32 %v4294, %v4382
        %v4384 = vpop.f32.mrf.mxu0
        %v4385 = vadd.f32 %v4296, %v4384
        %4386 = vmatmul.bf16.gmra.mxu0 %v785
        %v4387 = vpop.f32.mrf.mxu0
        %v4388 = vadd.f32 %v4299, %v4387
        %v4389 = vpop.f32.mrf.mxu0
        %v4390 = vadd.f32 %v4301, %v4389
        %4391 = vmatmul.bf16.gmra.mxu0 %v788
        %v4392 = vpop.f32.mrf.mxu0
        %v4393 = vadd.f32 %v4304, %v4392
        %v4394 = vpop.f32.mrf.mxu0
        %v4395 = vadd.f32 %v4306, %v4394
        %4396 = vmatmul.bf16.gmra.mxu0 %v791
        %v4397 = vpop.f32.mrf.mxu0
        %v4398 = vadd.f32 %v4309, %v4397
        %v4399 = vpop.f32.mrf.mxu0
        %v4400 = vadd.f32 %v4311, %v4399
        %4401 = vmatmul.bf16.gmra.mxu0 %v794
        %v4402 = vpop.f32.mrf.mxu0
        %v4403 = vadd.f32 %v4314, %v4402
        %v4404 = vpop.f32.mrf.mxu0
        %v4405 = vadd.f32 %v4316, %v4404
        %4406 = vmatmul.bf16.gmra.mxu0 %v797
        %v4407 = vpop.f32.mrf.mxu0
        %v4408 = vadd.f32 %v4319, %v4407
        %v4409 = vpop.f32.mrf.mxu0
        %v4410 = vadd.f32 %v4321, %v4409
        %4411 = vmatmul.bf16.gmra.mxu0 %v800
        %v4412 = vpop.f32.mrf.mxu0
        %v4413 = vadd.f32 %v4324, %v4412
        %v4414 = vpop.f32.mrf.mxu0
        %v4415 = vadd.f32 %v4326, %v4414
        %4416 = vmatmul.bf16.gmra.mxu0 %v803
        %v4417 = vpop.f32.mrf.mxu0
        %v4418 = vadd.f32 %v4329, %v4417
        %v4419 = vpop.f32.mrf.mxu0
        %v4420 = vadd.f32 %v4331, %v4419
        %4421 = vmatmul.bf16.gmra.mxu0 %v806
        %v4422 = vpop.f32.mrf.mxu0
        %v4423 = vadd.f32 %v4334, %v4422
        %v4424 = vpop.f32.mrf.mxu0
        %v4425 = vadd.f32 %v4336, %v4424
        %4426 = vmatmul.bf16.gmra.mxu0 %v809
        %v4427 = vpop.f32.mrf.mxu0
        %v4428 = vadd.f32 %v4339, %v4427
        %v4429 = vpop.f32.mrf.mxu0
        %v4430 = vadd.f32 %v4341, %v4429
        %4431 = vmatmul.bf16.gmra.mxu0 %v812
        %v4432 = vpop.f32.mrf.mxu0
        %v4433 = vadd.f32 %v4344, %v4432
        %v4434 = vpop.f32.mrf.mxu0
        %v4435 = vadd.f32 %v4346, %v4434
        %4436 = vdwg.mxu0
        %4437 = vmatpush.bf16.msra.mxu0 %v1817
        %4438 = vmatpush.bf16.msra.mxu0 %v1805
        %4439 = vmatpush.bf16.msra.mxu0 %v1793
        %4440 = vmatpush.bf16.msra.mxu0 %v1781
        %4441 = vmatpush.bf16.msra.mxu0 %v1769
        %4442 = vmatpush.bf16.msra.mxu0 %v1757
        %4443 = vmatpush.bf16.msra.mxu0 %v1745
        %4444 = vmatpush.bf16.msra.mxu0 %v1733
        %4445 = vmatmul.bf16.gmra.mxu0 %v765
        %v4446 = vpop.f32.mrf.mxu0
        %v4447 = vadd.f32 %v589, %v4446
        %v4448 = vpop.f32.mrf.mxu0
        %v4449 = vadd.f32 %v589, %v4448
        %4450 = vmatmul.bf16.gmra.mxu0 %v768
        %v4451 = vpop.f32.mrf.mxu0
        %v4452 = vadd.f32 %v589, %v4451
        %v4453 = vpop.f32.mrf.mxu0
        %v4454 = vadd.f32 %v589, %v4453
        %4455 = vmatmul.bf16.gmra.mxu0 %v771
        %v4456 = vpop.f32.mrf.mxu0
        %v4457 = vadd.f32 %v589, %v4456
        %v4458 = vpop.f32.mrf.mxu0
        %v4459 = vadd.f32 %v589, %v4458
        %4460 = vmatmul.bf16.gmra.mxu0 %v774
        %v4461 = vpop.f32.mrf.mxu0
        %v4462 = vadd.f32 %v589, %v4461
        %v4463 = vpop.f32.mrf.mxu0
        %v4464 = vadd.f32 %v589, %v4463
        %4465 = vmatmul.bf16.gmra.mxu0 %v777
        %v4466 = vpop.f32.mrf.mxu0
        %v4467 = vadd.f32 %v589, %v4466
        %v4468 = vpop.f32.mrf.mxu0
        %v4469 = vadd.f32 %v589, %v4468
        %4470 = vmatmul.bf16.gmra.mxu0 %v780
        %v4471 = vpop.f32.mrf.mxu0
        %v4472 = vadd.f32 %v589, %v4471
        %v4473 = vpop.f32.mrf.mxu0
        %v4474 = vadd.f32 %v589, %v4473
        %4475 = vmatmul.bf16.gmra.mxu0 %v783
        %v4476 = vpop.f32.mrf.mxu0
        %v4477 = vadd.f32 %v589, %v4476
        %v4478 = vpop.f32.mrf.mxu0
        %v4479 = vadd.f32 %v589, %v4478
        %4480 = vmatmul.bf16.gmra.mxu0 %v786
        %v4481 = vpop.f32.mrf.mxu0
        %v4482 = vadd.f32 %v589, %v4481
        %v4483 = vpop.f32.mrf.mxu0
        %v4484 = vadd.f32 %v589, %v4483
        %4485 = vmatmul.bf16.gmra.mxu0 %v789
        %v4486 = vpop.f32.mrf.mxu0
        %v4487 = vadd.f32 %v589, %v4486
        %v4488 = vpop.f32.mrf.mxu0
        %v4489 = vadd.f32 %v589, %v4488
        %4490 = vmatmul.bf16.gmra.mxu0 %v792
        %v4491 = vpop.f32.mrf.mxu0
        %v4492 = vadd.f32 %v589, %v4491
        %v4493 = vpop.f32.mrf.mxu0
        %v4494 = vadd.f32 %v589, %v4493
        %4495 = vmatmul.bf16.gmra.mxu0 %v795
        %v4496 = vpop.f32.mrf.mxu0
        %v4497 = vadd.f32 %v589, %v4496
        %v4498 = vpop.f32.mrf.mxu0
        %v4499 = vadd.f32 %v589, %v4498
        %4500 = vmatmul.bf16.gmra.mxu0 %v798
        %v4501 = vpop.f32.mrf.mxu0
        %v4502 = vadd.f32 %v589, %v4501
        %v4503 = vpop.f32.mrf.mxu0
        %v4504 = vadd.f32 %v589, %v4503
        %4505 = vmatmul.bf16.gmra.mxu0 %v801
        %v4506 = vpop.f32.mrf.mxu0
        %v4507 = vadd.f32 %v589, %v4506
        %v4508 = vpop.f32.mrf.mxu0
        %v4509 = vadd.f32 %v589, %v4508
        %4510 = vmatmul.bf16.gmra.mxu0 %v804
        %v4511 = vpop.f32.mrf.mxu0
        %v4512 = vadd.f32 %v589, %v4511
        %v4513 = vpop.f32.mrf.mxu0
        %v4514 = vadd.f32 %v589, %v4513
        %4515 = vmatmul.bf16.gmra.mxu0 %v807
        %v4516 = vpop.f32.mrf.mxu0
        %v4517 = vadd.f32 %v589, %v4516
        %v4518 = vpop.f32.mrf.mxu0
        %v4519 = vadd.f32 %v589, %v4518
        %4520 = vmatmul.bf16.gmra.mxu0 %v810
        %v4521 = vpop.f32.mrf.mxu0
        %v4522 = vadd.f32 %v589, %v4521
        %v4523 = vpop.f32.mrf.mxu0
        %v4524 = vadd.f32 %v589, %v4523
        %4525 = vdwg.mxu0
        %4526 = vmatpush.bf16.msra.mxu0 %v1913
        %4527 = vmatpush.bf16.msra.mxu0 %v1901
        %4528 = vmatpush.bf16.msra.mxu0 %v1889
        %4529 = vmatpush.bf16.msra.mxu0 %v1877
        %4530 = vmatpush.bf16.msra.mxu0 %v1865
        %4531 = vmatpush.bf16.msra.mxu0 %v1853
        %4532 = vmatpush.bf16.msra.mxu0 %v1841
        %4533 = vmatpush.bf16.msra.mxu0 %v1829
        %4534 = vmatmul.bf16.gmra.mxu0 %v766
        %v4535 = vpop.f32.mrf.mxu0
        %v4536 = vadd.f32 %v4447, %v4535
        %v4537 = vpop.f32.mrf.mxu0
        %v4538 = vadd.f32 %v4449, %v4537
        %4539 = vmatmul.bf16.gmra.mxu0 %v769
        %v4540 = vpop.f32.mrf.mxu0
        %v4541 = vadd.f32 %v4452, %v4540
        %v4542 = vpop.f32.mrf.mxu0
        %v4543 = vadd.f32 %v4454, %v4542
        %4544 = vmatmul.bf16.gmra.mxu0 %v772
        %v4545 = vpop.f32.mrf.mxu0
        %v4546 = vadd.f32 %v4457, %v4545
        %v4547 = vpop.f32.mrf.mxu0
        %v4548 = vadd.f32 %v4459, %v4547
        %4549 = vmatmul.bf16.gmra.mxu0 %v775
        %v4550 = vpop.f32.mrf.mxu0
        %v4551 = vadd.f32 %v4462, %v4550
        %v4552 = vpop.f32.mrf.mxu0
        %v4553 = vadd.f32 %v4464, %v4552
        %4554 = vmatmul.bf16.gmra.mxu0 %v778
        %v4555 = vpop.f32.mrf.mxu0
        %v4556 = vadd.f32 %v4467, %v4555
        %v4557 = vpop.f32.mrf.mxu0
        %v4558 = vadd.f32 %v4469, %v4557
        %4559 = vmatmul.bf16.gmra.mxu0 %v781
        %v4560 = vpop.f32.mrf.mxu0
        %v4561 = vadd.f32 %v4472, %v4560
        %v4562 = vpop.f32.mrf.mxu0
        %v4563 = vadd.f32 %v4474, %v4562
        %4564 = vmatmul.bf16.gmra.mxu0 %v784
        %v4565 = vpop.f32.mrf.mxu0
        %v4566 = vadd.f32 %v4477, %v4565
        %v4567 = vpop.f32.mrf.mxu0
        %v4568 = vadd.f32 %v4479, %v4567
        %4569 = vmatmul.bf16.gmra.mxu0 %v787
        %v4570 = vpop.f32.mrf.mxu0
        %v4571 = vadd.f32 %v4482, %v4570
        %v4572 = vpop.f32.mrf.mxu0
        %v4573 = vadd.f32 %v4484, %v4572
        %4574 = vmatmul.bf16.gmra.mxu0 %v790
        %v4575 = vpop.f32.mrf.mxu0
        %v4576 = vadd.f32 %v4487, %v4575
        %v4577 = vpop.f32.mrf.mxu0
        %v4578 = vadd.f32 %v4489, %v4577
        %4579 = vmatmul.bf16.gmra.mxu0 %v793
        %v4580 = vpop.f32.mrf.mxu0
        %v4581 = vadd.f32 %v4492, %v4580
        %v4582 = vpop.f32.mrf.mxu0
        %v4583 = vadd.f32 %v4494, %v4582
        %4584 = vmatmul.bf16.gmra.mxu0 %v796
        %v4585 = vpop.f32.mrf.mxu0
        %v4586 = vadd.f32 %v4497, %v4585
        %v4587 = vpop.f32.mrf.mxu0
        %v4588 = vadd.f32 %v4499, %v4587
        %4589 = vmatmul.bf16.gmra.mxu0 %v799
        %v4590 = vpop.f32.mrf.mxu0
        %v4591 = vadd.f32 %v4502, %v4590
        %v4592 = vpop.f32.mrf.mxu0
        %v4593 = vadd.f32 %v4504, %v4592
        %4594 = vmatmul.bf16.gmra.mxu0 %v802
        %v4595 = vpop.f32.mrf.mxu0
        %v4596 = vadd.f32 %v4507, %v4595
        %v4597 = vpop.f32.mrf.mxu0
        %v4598 = vadd.f32 %v4509, %v4597
        %4599 = vmatmul.bf16.gmra.mxu0 %v805
        %v4600 = vpop.f32.mrf.mxu0
        %v4601 = vadd.f32 %v4512, %v4600
        %v4602 = vpop.f32.mrf.mxu0
        %v4603 = vadd.f32 %v4514, %v4602
        %4604 = vmatmul.bf16.gmra.mxu0 %v808
        %v4605 = vpop.f32.mrf.mxu0
        %v4606 = vadd.f32 %v4517, %v4605
        %v4607 = vpop.f32.mrf.mxu0
        %v4608 = vadd.f32 %v4519, %v4607
        %4609 = vmatmul.bf16.gmra.mxu0 %v811
        %v4610 = vpop.f32.mrf.mxu0
        %v4611 = vadd.f32 %v4522, %v4610
        %v4612 = vpop.f32.mrf.mxu0
        %v4613 = vadd.f32 %v4524, %v4612
        %4614 = vdwg.mxu0
        %4615 = vmatpush.bf16.msra.mxu0 %v2009
        %4616 = vmatpush.bf16.msra.mxu0 %v1997
        %4617 = vmatpush.bf16.msra.mxu0 %v1985
        %4618 = vmatpush.bf16.msra.mxu0 %v1973
        %4619 = vmatpush.bf16.msra.mxu0 %v1961
        %4620 = vmatpush.bf16.msra.mxu0 %v1949
        %4621 = vmatpush.bf16.msra.mxu0 %v1937
        %4622 = vmatpush.bf16.msra.mxu0 %v1925
        %4623 = vmatmul.bf16.gmra.mxu0 %v767
        %v4624 = vpop.f32.mrf.mxu0
        %v4625 = vadd.f32 %v4536, %v4624
        %v4626 = vpop.f32.mrf.mxu0
        %v4627 = vadd.f32 %v4538, %v4626
        %4628 = vmatmul.bf16.gmra.mxu0 %v770
        %v4629 = vpop.f32.mrf.mxu0
        %v4630 = vadd.f32 %v4541, %v4629
        %v4631 = vpop.f32.mrf.mxu0
        %v4632 = vadd.f32 %v4543, %v4631
        %4633 = vmatmul.bf16.gmra.mxu0 %v773
        %v4634 = vpop.f32.mrf.mxu0
        %v4635 = vadd.f32 %v4546, %v4634
        %v4636 = vpop.f32.mrf.mxu0
        %v4637 = vadd.f32 %v4548, %v4636
        %4638 = vmatmul.bf16.gmra.mxu0 %v776
        %v4639 = vpop.f32.mrf.mxu0
        %v4640 = vadd.f32 %v4551, %v4639
        %v4641 = vpop.f32.mrf.mxu0
        %v4642 = vadd.f32 %v4553, %v4641
        %4643 = vmatmul.bf16.gmra.mxu0 %v779
        %v4644 = vpop.f32.mrf.mxu0
        %v4645 = vadd.f32 %v4556, %v4644
        %v4646 = vpop.f32.mrf.mxu0
        %v4647 = vadd.f32 %v4558, %v4646
        %4648 = vmatmul.bf16.gmra.mxu0 %v782
        %v4649 = vpop.f32.mrf.mxu0
        %v4650 = vadd.f32 %v4561, %v4649
        %v4651 = vpop.f32.mrf.mxu0
        %v4652 = vadd.f32 %v4563, %v4651
        %4653 = vmatmul.bf16.gmra.mxu0 %v785
        %v4654 = vpop.f32.mrf.mxu0
        %v4655 = vadd.f32 %v4566, %v4654
        %v4656 = vpop.f32.mrf.mxu0
        %v4657 = vadd.f32 %v4568, %v4656
        %4658 = vmatmul.bf16.gmra.mxu0 %v788
        %v4659 = vpop.f32.mrf.mxu0
        %v4660 = vadd.f32 %v4571, %v4659
        %v4661 = vpop.f32.mrf.mxu0
        %v4662 = vadd.f32 %v4573, %v4661
        %4663 = vmatmul.bf16.gmra.mxu0 %v791
        %v4664 = vpop.f32.mrf.mxu0
        %v4665 = vadd.f32 %v4576, %v4664
        %v4666 = vpop.f32.mrf.mxu0
        %v4667 = vadd.f32 %v4578, %v4666
        %4668 = vmatmul.bf16.gmra.mxu0 %v794
        %v4669 = vpop.f32.mrf.mxu0
        %v4670 = vadd.f32 %v4581, %v4669
        %v4671 = vpop.f32.mrf.mxu0
        %v4672 = vadd.f32 %v4583, %v4671
        %4673 = vmatmul.bf16.gmra.mxu0 %v797
        %v4674 = vpop.f32.mrf.mxu0
        %v4675 = vadd.f32 %v4586, %v4674
        %v4676 = vpop.f32.mrf.mxu0
        %v4677 = vadd.f32 %v4588, %v4676
        %4678 = vmatmul.bf16.gmra.mxu0 %v800
        %v4679 = vpop.f32.mrf.mxu0
        %v4680 = vadd.f32 %v4591, %v4679
        %v4681 = vpop.f32.mrf.mxu0
        %v4682 = vadd.f32 %v4593, %v4681
        %4683 = vmatmul.bf16.gmra.mxu0 %v803
        %v4684 = vpop.f32.mrf.mxu0
        %v4685 = vadd.f32 %v4596, %v4684
        %v4686 = vpop.f32.mrf.mxu0
        %v4687 = vadd.f32 %v4598, %v4686
        %4688 = vmatmul.bf16.gmra.mxu0 %v806
        %v4689 = vpop.f32.mrf.mxu0
        %v4690 = vadd.f32 %v4601, %v4689
        %v4691 = vpop.f32.mrf.mxu0
        %v4692 = vadd.f32 %v4603, %v4691
        %4693 = vmatmul.bf16.gmra.mxu0 %v809
        %v4694 = vpop.f32.mrf.mxu0
        %v4695 = vadd.f32 %v4606, %v4694
        %v4696 = vpop.f32.mrf.mxu0
        %v4697 = vadd.f32 %v4608, %v4696
        %4698 = vmatmul.bf16.gmra.mxu0 %v812
        %v4699 = vpop.f32.mrf.mxu0
        %v4700 = vadd.f32 %v4611, %v4699
        %v4701 = vpop.f32.mrf.mxu0
        %v4702 = vadd.f32 %v4613, %v4701
        %4703 = vdwg.mxu0
        %4704 = vmatpush.bf16.msra.mxu0 %v1818
        %4705 = vmatpush.bf16.msra.mxu0 %v1806
        %4706 = vmatpush.bf16.msra.mxu0 %v1794
        %4707 = vmatpush.bf16.msra.mxu0 %v1782
        %4708 = vmatpush.bf16.msra.mxu0 %v1770
        %4709 = vmatpush.bf16.msra.mxu0 %v1758
        %4710 = vmatpush.bf16.msra.mxu0 %v1746
        %4711 = vmatpush.bf16.msra.mxu0 %v1734
        %4712 = vmatmul.bf16.gmra.mxu0 %v765
        %v4713 = vpop.f32.mrf.mxu0
        %v4714 = vadd.f32 %v590, %v4713
        %v4715 = vpop.f32.mrf.mxu0
        %v4716 = vadd.f32 %v590, %v4715
        %4717 = vmatmul.bf16.gmra.mxu0 %v768
        %v4718 = vpop.f32.mrf.mxu0
        %v4719 = vadd.f32 %v590, %v4718
        %v4720 = vpop.f32.mrf.mxu0
        %v4721 = vadd.f32 %v590, %v4720
        %4722 = vmatmul.bf16.gmra.mxu0 %v771
        %v4723 = vpop.f32.mrf.mxu0
        %v4724 = vadd.f32 %v590, %v4723
        %v4725 = vpop.f32.mrf.mxu0
        %v4726 = vadd.f32 %v590, %v4725
        %4727 = vmatmul.bf16.gmra.mxu0 %v774
        %v4728 = vpop.f32.mrf.mxu0
        %v4729 = vadd.f32 %v590, %v4728
        %v4730 = vpop.f32.mrf.mxu0
        %v4731 = vadd.f32 %v590, %v4730
        %4732 = vmatmul.bf16.gmra.mxu0 %v777
        %v4733 = vpop.f32.mrf.mxu0
        %v4734 = vadd.f32 %v590, %v4733
        %v4735 = vpop.f32.mrf.mxu0
        %v4736 = vadd.f32 %v590, %v4735
        %4737 = vmatmul.bf16.gmra.mxu0 %v780
        %v4738 = vpop.f32.mrf.mxu0
        %v4739 = vadd.f32 %v590, %v4738
        %v4740 = vpop.f32.mrf.mxu0
        %v4741 = vadd.f32 %v590, %v4740
        %4742 = vmatmul.bf16.gmra.mxu0 %v783
        %v4743 = vpop.f32.mrf.mxu0
        %v4744 = vadd.f32 %v590, %v4743
        %v4745 = vpop.f32.mrf.mxu0
        %v4746 = vadd.f32 %v590, %v4745
        %4747 = vmatmul.bf16.gmra.mxu0 %v786
        %v4748 = vpop.f32.mrf.mxu0
        %v4749 = vadd.f32 %v590, %v4748
        %v4750 = vpop.f32.mrf.mxu0
        %v4751 = vadd.f32 %v590, %v4750
        %4752 = vmatmul.bf16.gmra.mxu0 %v789
        %v4753 = vpop.f32.mrf.mxu0
        %v4754 = vadd.f32 %v590, %v4753
        %v4755 = vpop.f32.mrf.mxu0
        %v4756 = vadd.f32 %v590, %v4755
        %4757 = vmatmul.bf16.gmra.mxu0 %v792
        %v4758 = vpop.f32.mrf.mxu0
        %v4759 = vadd.f32 %v590, %v4758
        %v4760 = vpop.f32.mrf.mxu0
        %v4761 = vadd.f32 %v590, %v4760
        %4762 = vmatmul.bf16.gmra.mxu0 %v795
        %v4763 = vpop.f32.mrf.mxu0
        %v4764 = vadd.f32 %v590, %v4763
        %v4765 = vpop.f32.mrf.mxu0
        %v4766 = vadd.f32 %v590, %v4765
        %4767 = vmatmul.bf16.gmra.mxu0 %v798
        %v4768 = vpop.f32.mrf.mxu0
        %v4769 = vadd.f32 %v590, %v4768
        %v4770 = vpop.f32.mrf.mxu0
        %v4771 = vadd.f32 %v590, %v4770
        %4772 = vmatmul.bf16.gmra.mxu0 %v801
        %v4773 = vpop.f32.mrf.mxu0
        %v4774 = vadd.f32 %v590, %v4773
        %v4775 = vpop.f32.mrf.mxu0
        %v4776 = vadd.f32 %v590, %v4775
        %4777 = vmatmul.bf16.gmra.mxu0 %v804
        %v4778 = vpop.f32.mrf.mxu0
        %v4779 = vadd.f32 %v590, %v4778
        %v4780 = vpop.f32.mrf.mxu0
        %v4781 = vadd.f32 %v590, %v4780
        %4782 = vmatmul.bf16.gmra.mxu0 %v807
        %v4783 = vpop.f32.mrf.mxu0
        %v4784 = vadd.f32 %v590, %v4783
        %v4785 = vpop.f32.mrf.mxu0
        %v4786 = vadd.f32 %v590, %v4785
        %4787 = vmatmul.bf16.gmra.mxu0 %v810
        %v4788 = vpop.f32.mrf.mxu0
        %v4789 = vadd.f32 %v590, %v4788
        %v4790 = vpop.f32.mrf.mxu0
        %v4791 = vadd.f32 %v590, %v4790
        %4792 = vdwg.mxu0
        %4793 = vmatpush.bf16.msra.mxu0 %v1914
        %4794 = vmatpush.bf16.msra.mxu0 %v1902
        %4795 = vmatpush.bf16.msra.mxu0 %v1890
        %4796 = vmatpush.bf16.msra.mxu0 %v1878
        %4797 = vmatpush.bf16.msra.mxu0 %v1866
        %4798 = vmatpush.bf16.msra.mxu0 %v1854
        %4799 = vmatpush.bf16.msra.mxu0 %v1842
        %4800 = vmatpush.bf16.msra.mxu0 %v1830
        %4801 = vmatmul.bf16.gmra.mxu0 %v766
        %v4802 = vpop.f32.mrf.mxu0
        %v4803 = vadd.f32 %v4714, %v4802
        %v4804 = vpop.f32.mrf.mxu0
        %v4805 = vadd.f32 %v4716, %v4804
        %4806 = vmatmul.bf16.gmra.mxu0 %v769
        %v4807 = vpop.f32.mrf.mxu0
        %v4808 = vadd.f32 %v4719, %v4807
        %v4809 = vpop.f32.mrf.mxu0
        %v4810 = vadd.f32 %v4721, %v4809
        %4811 = vmatmul.bf16.gmra.mxu0 %v772
        %v4812 = vpop.f32.mrf.mxu0
        %v4813 = vadd.f32 %v4724, %v4812
        %v4814 = vpop.f32.mrf.mxu0
        %v4815 = vadd.f32 %v4726, %v4814
        %4816 = vmatmul.bf16.gmra.mxu0 %v775
        %v4817 = vpop.f32.mrf.mxu0
        %v4818 = vadd.f32 %v4729, %v4817
        %v4819 = vpop.f32.mrf.mxu0
        %v4820 = vadd.f32 %v4731, %v4819
        %4821 = vmatmul.bf16.gmra.mxu0 %v778
        %v4822 = vpop.f32.mrf.mxu0
        %v4823 = vadd.f32 %v4734, %v4822
        %v4824 = vpop.f32.mrf.mxu0
        %v4825 = vadd.f32 %v4736, %v4824
        %4826 = vmatmul.bf16.gmra.mxu0 %v781
        %v4827 = vpop.f32.mrf.mxu0
        %v4828 = vadd.f32 %v4739, %v4827
        %v4829 = vpop.f32.mrf.mxu0
        %v4830 = vadd.f32 %v4741, %v4829
        %4831 = vmatmul.bf16.gmra.mxu0 %v784
        %v4832 = vpop.f32.mrf.mxu0
        %v4833 = vadd.f32 %v4744, %v4832
        %v4834 = vpop.f32.mrf.mxu0
        %v4835 = vadd.f32 %v4746, %v4834
        %4836 = vmatmul.bf16.gmra.mxu0 %v787
        %v4837 = vpop.f32.mrf.mxu0
        %v4838 = vadd.f32 %v4749, %v4837
        %v4839 = vpop.f32.mrf.mxu0
        %v4840 = vadd.f32 %v4751, %v4839
        %4841 = vmatmul.bf16.gmra.mxu0 %v790
        %v4842 = vpop.f32.mrf.mxu0
        %v4843 = vadd.f32 %v4754, %v4842
        %v4844 = vpop.f32.mrf.mxu0
        %v4845 = vadd.f32 %v4756, %v4844
        %4846 = vmatmul.bf16.gmra.mxu0 %v793
        %v4847 = vpop.f32.mrf.mxu0
        %v4848 = vadd.f32 %v4759, %v4847
        %v4849 = vpop.f32.mrf.mxu0
        %v4850 = vadd.f32 %v4761, %v4849
        %4851 = vmatmul.bf16.gmra.mxu0 %v796
        %v4852 = vpop.f32.mrf.mxu0
        %v4853 = vadd.f32 %v4764, %v4852
        %v4854 = vpop.f32.mrf.mxu0
        %v4855 = vadd.f32 %v4766, %v4854
        %4856 = vmatmul.bf16.gmra.mxu0 %v799
        %v4857 = vpop.f32.mrf.mxu0
        %v4858 = vadd.f32 %v4769, %v4857
        %v4859 = vpop.f32.mrf.mxu0
        %v4860 = vadd.f32 %v4771, %v4859
        %4861 = vmatmul.bf16.gmra.mxu0 %v802
        %v4862 = vpop.f32.mrf.mxu0
        %v4863 = vadd.f32 %v4774, %v4862
        %v4864 = vpop.f32.mrf.mxu0
        %v4865 = vadd.f32 %v4776, %v4864
        %4866 = vmatmul.bf16.gmra.mxu0 %v805
        %v4867 = vpop.f32.mrf.mxu0
        %v4868 = vadd.f32 %v4779, %v4867
        %v4869 = vpop.f32.mrf.mxu0
        %v4870 = vadd.f32 %v4781, %v4869
        %4871 = vmatmul.bf16.gmra.mxu0 %v808
        %v4872 = vpop.f32.mrf.mxu0
        %v4873 = vadd.f32 %v4784, %v4872
        %v4874 = vpop.f32.mrf.mxu0
        %v4875 = vadd.f32 %v4786, %v4874
        %4876 = vmatmul.bf16.gmra.mxu0 %v811
        %v4877 = vpop.f32.mrf.mxu0
        %v4878 = vadd.f32 %v4789, %v4877
        %v4879 = vpop.f32.mrf.mxu0
        %v4880 = vadd.f32 %v4791, %v4879
        %4881 = vdwg.mxu0
        %4882 = vmatpush.bf16.msra.mxu0 %v2010
        %4883 = vmatpush.bf16.msra.mxu0 %v1998
        %4884 = vmatpush.bf16.msra.mxu0 %v1986
        %4885 = vmatpush.bf16.msra.mxu0 %v1974
        %4886 = vmatpush.bf16.msra.mxu0 %v1962
        %4887 = vmatpush.bf16.msra.mxu0 %v1950
        %4888 = vmatpush.bf16.msra.mxu0 %v1938
        %4889 = vmatpush.bf16.msra.mxu0 %v1926
        %4890 = vmatmul.bf16.gmra.mxu0 %v767
        %v4891 = vpop.f32.mrf.mxu0
        %v4892 = vadd.f32 %v4803, %v4891
        %v4893 = vpop.f32.mrf.mxu0
        %v4894 = vadd.f32 %v4805, %v4893
        %4895 = vmatmul.bf16.gmra.mxu0 %v770
        %v4896 = vpop.f32.mrf.mxu0
        %v4897 = vadd.f32 %v4808, %v4896
        %v4898 = vpop.f32.mrf.mxu0
        %v4899 = vadd.f32 %v4810, %v4898
        %4900 = vmatmul.bf16.gmra.mxu0 %v773
        %v4901 = vpop.f32.mrf.mxu0
        %v4902 = vadd.f32 %v4813, %v4901
        %v4903 = vpop.f32.mrf.mxu0
        %v4904 = vadd.f32 %v4815, %v4903
        %4905 = vmatmul.bf16.gmra.mxu0 %v776
        %v4906 = vpop.f32.mrf.mxu0
        %v4907 = vadd.f32 %v4818, %v4906
        %v4908 = vpop.f32.mrf.mxu0
        %v4909 = vadd.f32 %v4820, %v4908
        %4910 = vmatmul.bf16.gmra.mxu0 %v779
        %v4911 = vpop.f32.mrf.mxu0
        %v4912 = vadd.f32 %v4823, %v4911
        %v4913 = vpop.f32.mrf.mxu0
        %v4914 = vadd.f32 %v4825, %v4913
        %4915 = vmatmul.bf16.gmra.mxu0 %v782
        %v4916 = vpop.f32.mrf.mxu0
        %v4917 = vadd.f32 %v4828, %v4916
        %v4918 = vpop.f32.mrf.mxu0
        %v4919 = vadd.f32 %v4830, %v4918
        %4920 = vmatmul.bf16.gmra.mxu0 %v785
        %v4921 = vpop.f32.mrf.mxu0
        %v4922 = vadd.f32 %v4833, %v4921
        %v4923 = vpop.f32.mrf.mxu0
        %v4924 = vadd.f32 %v4835, %v4923
        %4925 = vmatmul.bf16.gmra.mxu0 %v788
        %v4926 = vpop.f32.mrf.mxu0
        %v4927 = vadd.f32 %v4838, %v4926
        %v4928 = vpop.f32.mrf.mxu0
        %v4929 = vadd.f32 %v4840, %v4928
        %4930 = vmatmul.bf16.gmra.mxu0 %v791
        %v4931 = vpop.f32.mrf.mxu0
        %v4932 = vadd.f32 %v4843, %v4931
        %v4933 = vpop.f32.mrf.mxu0
        %v4934 = vadd.f32 %v4845, %v4933
        %4935 = vmatmul.bf16.gmra.mxu0 %v794
        %v4936 = vpop.f32.mrf.mxu0
        %v4937 = vadd.f32 %v4848, %v4936
        %v4938 = vpop.f32.mrf.mxu0
        %v4939 = vadd.f32 %v4850, %v4938
        %4940 = vmatmul.bf16.gmra.mxu0 %v797
        %v4941 = vpop.f32.mrf.mxu0
        %v4942 = vadd.f32 %v4853, %v4941
        %v4943 = vpop.f32.mrf.mxu0
        %v4944 = vadd.f32 %v4855, %v4943
        %4945 = vmatmul.bf16.gmra.mxu0 %v800
        %v4946 = vpop.f32.mrf.mxu0
        %v4947 = vadd.f32 %v4858, %v4946
        %v4948 = vpop.f32.mrf.mxu0
        %v4949 = vadd.f32 %v4860, %v4948
        %4950 = vmatmul.bf16.gmra.mxu0 %v803
        %v4951 = vpop.f32.mrf.mxu0
        %v4952 = vadd.f32 %v4863, %v4951
        %v4953 = vpop.f32.mrf.mxu0
        %v4954 = vadd.f32 %v4865, %v4953
        %4955 = vmatmul.bf16.gmra.mxu0 %v806
        %v4956 = vpop.f32.mrf.mxu0
        %v4957 = vadd.f32 %v4868, %v4956
        %v4958 = vpop.f32.mrf.mxu0
        %v4959 = vadd.f32 %v4870, %v4958
        %4960 = vmatmul.bf16.gmra.mxu0 %v809
        %v4961 = vpop.f32.mrf.mxu0
        %v4962 = vadd.f32 %v4873, %v4961
        %v4963 = vpop.f32.mrf.mxu0
        %v4964 = vadd.f32 %v4875, %v4963
        %4965 = vmatmul.bf16.gmra.mxu0 %v812
        %v4966 = vpop.f32.mrf.mxu0
        %v4967 = vadd.f32 %v4878, %v4966
        %v4968 = vpop.f32.mrf.mxu0
        %v4969 = vadd.f32 %v4880, %v4968
        %4970 = vdwg.mxu0
        %4971 = vmatpush.bf16.msra.mxu0 %v1819
        %4972 = vmatpush.bf16.msra.mxu0 %v1807
        %4973 = vmatpush.bf16.msra.mxu0 %v1795
        %4974 = vmatpush.bf16.msra.mxu0 %v1783
        %4975 = vmatpush.bf16.msra.mxu0 %v1771
        %4976 = vmatpush.bf16.msra.mxu0 %v1759
        %4977 = vmatpush.bf16.msra.mxu0 %v1747
        %4978 = vmatpush.bf16.msra.mxu0 %v1735
        %4979 = vmatmul.bf16.gmra.mxu0 %v765
        %v4980 = vpop.f32.mrf.mxu0
        %v4981 = vadd.f32 %v591, %v4980
        %v4982 = vpop.f32.mrf.mxu0
        %v4983 = vadd.f32 %v591, %v4982
        %4984 = vmatmul.bf16.gmra.mxu0 %v768
        %v4985 = vpop.f32.mrf.mxu0
        %v4986 = vadd.f32 %v591, %v4985
        %v4987 = vpop.f32.mrf.mxu0
        %v4988 = vadd.f32 %v591, %v4987
        %4989 = vmatmul.bf16.gmra.mxu0 %v771
        %v4990 = vpop.f32.mrf.mxu0
        %v4991 = vadd.f32 %v591, %v4990
        %v4992 = vpop.f32.mrf.mxu0
        %v4993 = vadd.f32 %v591, %v4992
        %4994 = vmatmul.bf16.gmra.mxu0 %v774
        %v4995 = vpop.f32.mrf.mxu0
        %v4996 = vadd.f32 %v591, %v4995
        %v4997 = vpop.f32.mrf.mxu0
        %v4998 = vadd.f32 %v591, %v4997
        %4999 = vmatmul.bf16.gmra.mxu0 %v777
        %v5000 = vpop.f32.mrf.mxu0
        %v5001 = vadd.f32 %v591, %v5000
        %v5002 = vpop.f32.mrf.mxu0
        %v5003 = vadd.f32 %v591, %v5002
        %5004 = vmatmul.bf16.gmra.mxu0 %v780
        %v5005 = vpop.f32.mrf.mxu0
        %v5006 = vadd.f32 %v591, %v5005
        %v5007 = vpop.f32.mrf.mxu0
        %v5008 = vadd.f32 %v591, %v5007
        %5009 = vmatmul.bf16.gmra.mxu0 %v783
        %v5010 = vpop.f32.mrf.mxu0
        %v5011 = vadd.f32 %v591, %v5010
        %v5012 = vpop.f32.mrf.mxu0
        %v5013 = vadd.f32 %v591, %v5012
        %5014 = vmatmul.bf16.gmra.mxu0 %v786
        %v5015 = vpop.f32.mrf.mxu0
        %v5016 = vadd.f32 %v591, %v5015
        %v5017 = vpop.f32.mrf.mxu0
        %v5018 = vadd.f32 %v591, %v5017
        %5019 = vmatmul.bf16.gmra.mxu0 %v789
        %v5020 = vpop.f32.mrf.mxu0
        %v5021 = vadd.f32 %v591, %v5020
        %v5022 = vpop.f32.mrf.mxu0
        %v5023 = vadd.f32 %v591, %v5022
        %5024 = vmatmul.bf16.gmra.mxu0 %v792
        %v5025 = vpop.f32.mrf.mxu0
        %v5026 = vadd.f32 %v591, %v5025
        %v5027 = vpop.f32.mrf.mxu0
        %v5028 = vadd.f32 %v591, %v5027
        %5029 = vmatmul.bf16.gmra.mxu0 %v795
        %v5030 = vpop.f32.mrf.mxu0
        %v5031 = vadd.f32 %v591, %v5030
        %v5032 = vpop.f32.mrf.mxu0
        %v5033 = vadd.f32 %v591, %v5032
        %5034 = vmatmul.bf16.gmra.mxu0 %v798
        %v5035 = vpop.f32.mrf.mxu0
        %v5036 = vadd.f32 %v591, %v5035
        %v5037 = vpop.f32.mrf.mxu0
        %v5038 = vadd.f32 %v591, %v5037
        %5039 = vmatmul.bf16.gmra.mxu0 %v801
        %v5040 = vpop.f32.mrf.mxu0
        %v5041 = vadd.f32 %v591, %v5040
        %v5042 = vpop.f32.mrf.mxu0
        %v5043 = vadd.f32 %v591, %v5042
        %5044 = vmatmul.bf16.gmra.mxu0 %v804
        %v5045 = vpop.f32.mrf.mxu0
        %v5046 = vadd.f32 %v591, %v5045
        %v5047 = vpop.f32.mrf.mxu0
        %v5048 = vadd.f32 %v591, %v5047
        %5049 = vmatmul.bf16.gmra.mxu0 %v807
        %v5050 = vpop.f32.mrf.mxu0
        %v5051 = vadd.f32 %v591, %v5050
        %v5052 = vpop.f32.mrf.mxu0
        %v5053 = vadd.f32 %v591, %v5052
        %5054 = vmatmul.bf16.gmra.mxu0 %v810
        %v5055 = vpop.f32.mrf.mxu0
        %v5056 = vadd.f32 %v591, %v5055
        %v5057 = vpop.f32.mrf.mxu0
        %v5058 = vadd.f32 %v591, %v5057
        %5059 = vdwg.mxu0
        %5060 = vmatpush.bf16.msra.mxu0 %v1915
        %5061 = vmatpush.bf16.msra.mxu0 %v1903
        %5062 = vmatpush.bf16.msra.mxu0 %v1891
        %5063 = vmatpush.bf16.msra.mxu0 %v1879
        %5064 = vmatpush.bf16.msra.mxu0 %v1867
        %5065 = vmatpush.bf16.msra.mxu0 %v1855
        %5066 = vmatpush.bf16.msra.mxu0 %v1843
        %5067 = vmatpush.bf16.msra.mxu0 %v1831
        %5068 = vmatmul.bf16.gmra.mxu0 %v766
        %v5069 = vpop.f32.mrf.mxu0
        %v5070 = vadd.f32 %v4981, %v5069
        %v5071 = vpop.f32.mrf.mxu0
        %v5072 = vadd.f32 %v4983, %v5071
        %5073 = vmatmul.bf16.gmra.mxu0 %v769
        %v5074 = vpop.f32.mrf.mxu0
        %v5075 = vadd.f32 %v4986, %v5074
        %v5076 = vpop.f32.mrf.mxu0
        %v5077 = vadd.f32 %v4988, %v5076
        %5078 = vmatmul.bf16.gmra.mxu0 %v772
        %v5079 = vpop.f32.mrf.mxu0
        %v5080 = vadd.f32 %v4991, %v5079
        %v5081 = vpop.f32.mrf.mxu0
        %v5082 = vadd.f32 %v4993, %v5081
        %5083 = vmatmul.bf16.gmra.mxu0 %v775
        %v5084 = vpop.f32.mrf.mxu0
        %v5085 = vadd.f32 %v4996, %v5084
        %v5086 = vpop.f32.mrf.mxu0
        %v5087 = vadd.f32 %v4998, %v5086
        %5088 = vmatmul.bf16.gmra.mxu0 %v778
        %v5089 = vpop.f32.mrf.mxu0
        %v5090 = vadd.f32 %v5001, %v5089
        %v5091 = vpop.f32.mrf.mxu0
        %v5092 = vadd.f32 %v5003, %v5091
        %5093 = vmatmul.bf16.gmra.mxu0 %v781
        %v5094 = vpop.f32.mrf.mxu0
        %v5095 = vadd.f32 %v5006, %v5094
        %v5096 = vpop.f32.mrf.mxu0
        %v5097 = vadd.f32 %v5008, %v5096
        %5098 = vmatmul.bf16.gmra.mxu0 %v784
        %v5099 = vpop.f32.mrf.mxu0
        %v5100 = vadd.f32 %v5011, %v5099
        %v5101 = vpop.f32.mrf.mxu0
        %v5102 = vadd.f32 %v5013, %v5101
        %5103 = vmatmul.bf16.gmra.mxu0 %v787
        %v5104 = vpop.f32.mrf.mxu0
        %v5105 = vadd.f32 %v5016, %v5104
        %v5106 = vpop.f32.mrf.mxu0
        %v5107 = vadd.f32 %v5018, %v5106
        %5108 = vmatmul.bf16.gmra.mxu0 %v790
        %v5109 = vpop.f32.mrf.mxu0
        %v5110 = vadd.f32 %v5021, %v5109
        %v5111 = vpop.f32.mrf.mxu0
        %v5112 = vadd.f32 %v5023, %v5111
        %5113 = vmatmul.bf16.gmra.mxu0 %v793
        %v5114 = vpop.f32.mrf.mxu0
        %v5115 = vadd.f32 %v5026, %v5114
        %v5116 = vpop.f32.mrf.mxu0
        %v5117 = vadd.f32 %v5028, %v5116
        %5118 = vmatmul.bf16.gmra.mxu0 %v796
        %v5119 = vpop.f32.mrf.mxu0
        %v5120 = vadd.f32 %v5031, %v5119
        %v5121 = vpop.f32.mrf.mxu0
        %v5122 = vadd.f32 %v5033, %v5121
        %5123 = vmatmul.bf16.gmra.mxu0 %v799
        %v5124 = vpop.f32.mrf.mxu0
        %v5125 = vadd.f32 %v5036, %v5124
        %v5126 = vpop.f32.mrf.mxu0
        %v5127 = vadd.f32 %v5038, %v5126
        %5128 = vmatmul.bf16.gmra.mxu0 %v802
        %v5129 = vpop.f32.mrf.mxu0
        %v5130 = vadd.f32 %v5041, %v5129
        %v5131 = vpop.f32.mrf.mxu0
        %v5132 = vadd.f32 %v5043, %v5131
        %5133 = vmatmul.bf16.gmra.mxu0 %v805
        %v5134 = vpop.f32.mrf.mxu0
        %v5135 = vadd.f32 %v5046, %v5134
        %v5136 = vpop.f32.mrf.mxu0
        %v5137 = vadd.f32 %v5048, %v5136
        %5138 = vmatmul.bf16.gmra.mxu0 %v808
        %v5139 = vpop.f32.mrf.mxu0
        %v5140 = vadd.f32 %v5051, %v5139
        %v5141 = vpop.f32.mrf.mxu0
        %v5142 = vadd.f32 %v5053, %v5141
        %5143 = vmatmul.bf16.gmra.mxu0 %v811
        %v5144 = vpop.f32.mrf.mxu0
        %v5145 = vadd.f32 %v5056, %v5144
        %v5146 = vpop.f32.mrf.mxu0
        %v5147 = vadd.f32 %v5058, %v5146
        %5148 = vdwg.mxu0
        %5149 = vmatpush.bf16.msra.mxu0 %v2011
        %5150 = vmatpush.bf16.msra.mxu0 %v1999
        %5151 = vmatpush.bf16.msra.mxu0 %v1987
        %5152 = vmatpush.bf16.msra.mxu0 %v1975
        %5153 = vmatpush.bf16.msra.mxu0 %v1963
        %5154 = vmatpush.bf16.msra.mxu0 %v1951
        %5155 = vmatpush.bf16.msra.mxu0 %v1939
        %5156 = vmatpush.bf16.msra.mxu0 %v1927
        %5157 = vmatmul.bf16.gmra.mxu0 %v767
        %v5158 = vpop.f32.mrf.mxu0
        %v5159 = vadd.f32 %v5070, %v5158
        %v5160 = vpop.f32.mrf.mxu0
        %v5161 = vadd.f32 %v5072, %v5160
        %5162 = vmatmul.bf16.gmra.mxu0 %v770
        %v5163 = vpop.f32.mrf.mxu0
        %v5164 = vadd.f32 %v5075, %v5163
        %v5165 = vpop.f32.mrf.mxu0
        %v5166 = vadd.f32 %v5077, %v5165
        %5167 = vmatmul.bf16.gmra.mxu0 %v773
        %v5168 = vpop.f32.mrf.mxu0
        %v5169 = vadd.f32 %v5080, %v5168
        %v5170 = vpop.f32.mrf.mxu0
        %v5171 = vadd.f32 %v5082, %v5170
        %5172 = vmatmul.bf16.gmra.mxu0 %v776
        %v5173 = vpop.f32.mrf.mxu0
        %v5174 = vadd.f32 %v5085, %v5173
        %v5175 = vpop.f32.mrf.mxu0
        %v5176 = vadd.f32 %v5087, %v5175
        %5177 = vmatmul.bf16.gmra.mxu0 %v779
        %v5178 = vpop.f32.mrf.mxu0
        %v5179 = vadd.f32 %v5090, %v5178
        %v5180 = vpop.f32.mrf.mxu0
        %v5181 = vadd.f32 %v5092, %v5180
        %5182 = vmatmul.bf16.gmra.mxu0 %v782
        %v5183 = vpop.f32.mrf.mxu0
        %v5184 = vadd.f32 %v5095, %v5183
        %v5185 = vpop.f32.mrf.mxu0
        %v5186 = vadd.f32 %v5097, %v5185
        %5187 = vmatmul.bf16.gmra.mxu0 %v785
        %v5188 = vpop.f32.mrf.mxu0
        %v5189 = vadd.f32 %v5100, %v5188
        %v5190 = vpop.f32.mrf.mxu0
        %v5191 = vadd.f32 %v5102, %v5190
        %5192 = vmatmul.bf16.gmra.mxu0 %v788
        %v5193 = vpop.f32.mrf.mxu0
        %v5194 = vadd.f32 %v5105, %v5193
        %v5195 = vpop.f32.mrf.mxu0
        %v5196 = vadd.f32 %v5107, %v5195
        %5197 = vmatmul.bf16.gmra.mxu0 %v791
        %v5198 = vpop.f32.mrf.mxu0
        %v5199 = vadd.f32 %v5110, %v5198
        %v5200 = vpop.f32.mrf.mxu0
        %v5201 = vadd.f32 %v5112, %v5200
        %5202 = vmatmul.bf16.gmra.mxu0 %v794
        %v5203 = vpop.f32.mrf.mxu0
        %v5204 = vadd.f32 %v5115, %v5203
        %v5205 = vpop.f32.mrf.mxu0
        %v5206 = vadd.f32 %v5117, %v5205
        %5207 = vmatmul.bf16.gmra.mxu0 %v797
        %v5208 = vpop.f32.mrf.mxu0
        %v5209 = vadd.f32 %v5120, %v5208
        %v5210 = vpop.f32.mrf.mxu0
        %v5211 = vadd.f32 %v5122, %v5210
        %5212 = vmatmul.bf16.gmra.mxu0 %v800
        %v5213 = vpop.f32.mrf.mxu0
        %v5214 = vadd.f32 %v5125, %v5213
        %v5215 = vpop.f32.mrf.mxu0
        %v5216 = vadd.f32 %v5127, %v5215
        %5217 = vmatmul.bf16.gmra.mxu0 %v803
        %v5218 = vpop.f32.mrf.mxu0
        %v5219 = vadd.f32 %v5130, %v5218
        %v5220 = vpop.f32.mrf.mxu0
        %v5221 = vadd.f32 %v5132, %v5220
        %5222 = vmatmul.bf16.gmra.mxu0 %v806
        %v5223 = vpop.f32.mrf.mxu0
        %v5224 = vadd.f32 %v5135, %v5223
        %v5225 = vpop.f32.mrf.mxu0
        %v5226 = vadd.f32 %v5137, %v5225
        %5227 = vmatmul.bf16.gmra.mxu0 %v809
        %v5228 = vpop.f32.mrf.mxu0
        %v5229 = vadd.f32 %v5140, %v5228
        %v5230 = vpop.f32.mrf.mxu0
        %v5231 = vadd.f32 %v5142, %v5230
        %5232 = vmatmul.bf16.gmra.mxu0 %v812
        %v5233 = vpop.f32.mrf.mxu0
        %v5234 = vadd.f32 %v5145, %v5233
        %v5235 = vpop.f32.mrf.mxu0
        %v5236 = vadd.f32 %v5147, %v5235
        %5237 = vdwg.mxu0
        %5238 = vmatpush.bf16.msra.mxu0 %v1820
        %5239 = vmatpush.bf16.msra.mxu0 %v1808
        %5240 = vmatpush.bf16.msra.mxu0 %v1796
        %5241 = vmatpush.bf16.msra.mxu0 %v1784
        %5242 = vmatpush.bf16.msra.mxu0 %v1772
        %5243 = vmatpush.bf16.msra.mxu0 %v1760
        %5244 = vmatpush.bf16.msra.mxu0 %v1748
        %5245 = vmatpush.bf16.msra.mxu0 %v1736
        %5246 = vmatmul.bf16.gmra.mxu0 %v765
        %v5247 = vpop.f32.mrf.mxu0
        %v5248 = vadd.f32 %v592, %v5247
        %v5249 = vpop.f32.mrf.mxu0
        %v5250 = vadd.f32 %v592, %v5249
        %5251 = vmatmul.bf16.gmra.mxu0 %v768
        %v5252 = vpop.f32.mrf.mxu0
        %v5253 = vadd.f32 %v592, %v5252
        %v5254 = vpop.f32.mrf.mxu0
        %v5255 = vadd.f32 %v592, %v5254
        %5256 = vmatmul.bf16.gmra.mxu0 %v771
        %v5257 = vpop.f32.mrf.mxu0
        %v5258 = vadd.f32 %v592, %v5257
        %v5259 = vpop.f32.mrf.mxu0
        %v5260 = vadd.f32 %v592, %v5259
        %5261 = vmatmul.bf16.gmra.mxu0 %v774
        %v5262 = vpop.f32.mrf.mxu0
        %v5263 = vadd.f32 %v592, %v5262
        %v5264 = vpop.f32.mrf.mxu0
        %v5265 = vadd.f32 %v592, %v5264
        %5266 = vmatmul.bf16.gmra.mxu0 %v777
        %v5267 = vpop.f32.mrf.mxu0
        %v5268 = vadd.f32 %v592, %v5267
        %v5269 = vpop.f32.mrf.mxu0
        %v5270 = vadd.f32 %v592, %v5269
        %5271 = vmatmul.bf16.gmra.mxu0 %v780
        %v5272 = vpop.f32.mrf.mxu0
        %v5273 = vadd.f32 %v592, %v5272
        %v5274 = vpop.f32.mrf.mxu0
        %v5275 = vadd.f32 %v592, %v5274
        %5276 = vmatmul.bf16.gmra.mxu0 %v783
        %v5277 = vpop.f32.mrf.mxu0
        %v5278 = vadd.f32 %v592, %v5277
        %v5279 = vpop.f32.mrf.mxu0
        %v5280 = vadd.f32 %v592, %v5279
        %5281 = vmatmul.bf16.gmra.mxu0 %v786
        %v5282 = vpop.f32.mrf.mxu0
        %v5283 = vadd.f32 %v592, %v5282
        %v5284 = vpop.f32.mrf.mxu0
        %v5285 = vadd.f32 %v592, %v5284
        %5286 = vmatmul.bf16.gmra.mxu0 %v789
        %v5287 = vpop.f32.mrf.mxu0
        %v5288 = vadd.f32 %v592, %v5287
        %v5289 = vpop.f32.mrf.mxu0
        %v5290 = vadd.f32 %v592, %v5289
        %5291 = vmatmul.bf16.gmra.mxu0 %v792
        %v5292 = vpop.f32.mrf.mxu0
        %v5293 = vadd.f32 %v592, %v5292
        %v5294 = vpop.f32.mrf.mxu0
        %v5295 = vadd.f32 %v592, %v5294
        %5296 = vmatmul.bf16.gmra.mxu0 %v795
        %v5297 = vpop.f32.mrf.mxu0
        %v5298 = vadd.f32 %v592, %v5297
        %v5299 = vpop.f32.mrf.mxu0
        %v5300 = vadd.f32 %v592, %v5299
        %5301 = vmatmul.bf16.gmra.mxu0 %v798
        %v5302 = vpop.f32.mrf.mxu0
        %v5303 = vadd.f32 %v592, %v5302
        %v5304 = vpop.f32.mrf.mxu0
        %v5305 = vadd.f32 %v592, %v5304
        %5306 = vmatmul.bf16.gmra.mxu0 %v801
        %v5307 = vpop.f32.mrf.mxu0
        %v5308 = vadd.f32 %v592, %v5307
        %v5309 = vpop.f32.mrf.mxu0
        %v5310 = vadd.f32 %v592, %v5309
        %5311 = vmatmul.bf16.gmra.mxu0 %v804
        %v5312 = vpop.f32.mrf.mxu0
        %v5313 = vadd.f32 %v592, %v5312
        %v5314 = vpop.f32.mrf.mxu0
        %v5315 = vadd.f32 %v592, %v5314
        %5316 = vmatmul.bf16.gmra.mxu0 %v807
        %v5317 = vpop.f32.mrf.mxu0
        %v5318 = vadd.f32 %v592, %v5317
        %v5319 = vpop.f32.mrf.mxu0
        %v5320 = vadd.f32 %v592, %v5319
        %5321 = vmatmul.bf16.gmra.mxu0 %v810
        %v5322 = vpop.f32.mrf.mxu0
        %v5323 = vadd.f32 %v592, %v5322
        %v5324 = vpop.f32.mrf.mxu0
        %v5325 = vadd.f32 %v592, %v5324
        %5326 = vdwg.mxu0
        %5327 = vmatpush.bf16.msra.mxu0 %v1916
        %5328 = vmatpush.bf16.msra.mxu0 %v1904
        %5329 = vmatpush.bf16.msra.mxu0 %v1892
        %5330 = vmatpush.bf16.msra.mxu0 %v1880
        %5331 = vmatpush.bf16.msra.mxu0 %v1868
        %5332 = vmatpush.bf16.msra.mxu0 %v1856
        %5333 = vmatpush.bf16.msra.mxu0 %v1844
        %5334 = vmatpush.bf16.msra.mxu0 %v1832
        %5335 = vmatmul.bf16.gmra.mxu0 %v766
        %v5336 = vpop.f32.mrf.mxu0
        %v5337 = vadd.f32 %v5248, %v5336
        %v5338 = vpop.f32.mrf.mxu0
        %v5339 = vadd.f32 %v5250, %v5338
        %5340 = vmatmul.bf16.gmra.mxu0 %v769
        %v5341 = vpop.f32.mrf.mxu0
        %v5342 = vadd.f32 %v5253, %v5341
        %v5343 = vpop.f32.mrf.mxu0
        %v5344 = vadd.f32 %v5255, %v5343
        %5345 = vmatmul.bf16.gmra.mxu0 %v772
        %v5346 = vpop.f32.mrf.mxu0
        %v5347 = vadd.f32 %v5258, %v5346
        %v5348 = vpop.f32.mrf.mxu0
        %v5349 = vadd.f32 %v5260, %v5348
        %5350 = vmatmul.bf16.gmra.mxu0 %v775
        %v5351 = vpop.f32.mrf.mxu0
        %v5352 = vadd.f32 %v5263, %v5351
        %v5353 = vpop.f32.mrf.mxu0
        %v5354 = vadd.f32 %v5265, %v5353
        %5355 = vmatmul.bf16.gmra.mxu0 %v778
        %v5356 = vpop.f32.mrf.mxu0
        %v5357 = vadd.f32 %v5268, %v5356
        %v5358 = vpop.f32.mrf.mxu0
        %v5359 = vadd.f32 %v5270, %v5358
        %5360 = vmatmul.bf16.gmra.mxu0 %v781
        %v5361 = vpop.f32.mrf.mxu0
        %v5362 = vadd.f32 %v5273, %v5361
        %v5363 = vpop.f32.mrf.mxu0
        %v5364 = vadd.f32 %v5275, %v5363
        %5365 = vmatmul.bf16.gmra.mxu0 %v784
        %v5366 = vpop.f32.mrf.mxu0
        %v5367 = vadd.f32 %v5278, %v5366
        %v5368 = vpop.f32.mrf.mxu0
        %v5369 = vadd.f32 %v5280, %v5368
        %5370 = vmatmul.bf16.gmra.mxu0 %v787
        %v5371 = vpop.f32.mrf.mxu0
        %v5372 = vadd.f32 %v5283, %v5371
        %v5373 = vpop.f32.mrf.mxu0
        %v5374 = vadd.f32 %v5285, %v5373
        %5375 = vmatmul.bf16.gmra.mxu0 %v790
        %v5376 = vpop.f32.mrf.mxu0
        %v5377 = vadd.f32 %v5288, %v5376
        %v5378 = vpop.f32.mrf.mxu0
        %v5379 = vadd.f32 %v5290, %v5378
        %5380 = vmatmul.bf16.gmra.mxu0 %v793
        %v5381 = vpop.f32.mrf.mxu0
        %v5382 = vadd.f32 %v5293, %v5381
        %v5383 = vpop.f32.mrf.mxu0
        %v5384 = vadd.f32 %v5295, %v5383
        %5385 = vmatmul.bf16.gmra.mxu0 %v796
        %v5386 = vpop.f32.mrf.mxu0
        %v5387 = vadd.f32 %v5298, %v5386
        %v5388 = vpop.f32.mrf.mxu0
        %v5389 = vadd.f32 %v5300, %v5388
        %5390 = vmatmul.bf16.gmra.mxu0 %v799
        %v5391 = vpop.f32.mrf.mxu0
        %v5392 = vadd.f32 %v5303, %v5391
        %v5393 = vpop.f32.mrf.mxu0
        %v5394 = vadd.f32 %v5305, %v5393
        %5395 = vmatmul.bf16.gmra.mxu0 %v802
        %v5396 = vpop.f32.mrf.mxu0
        %v5397 = vadd.f32 %v5308, %v5396
        %v5398 = vpop.f32.mrf.mxu0
        %v5399 = vadd.f32 %v5310, %v5398
        %5400 = vmatmul.bf16.gmra.mxu0 %v805
        %v5401 = vpop.f32.mrf.mxu0
        %v5402 = vadd.f32 %v5313, %v5401
        %v5403 = vpop.f32.mrf.mxu0
        %v5404 = vadd.f32 %v5315, %v5403
        %5405 = vmatmul.bf16.gmra.mxu0 %v808
        %v5406 = vpop.f32.mrf.mxu0
        %v5407 = vadd.f32 %v5318, %v5406
        %v5408 = vpop.f32.mrf.mxu0
        %v5409 = vadd.f32 %v5320, %v5408
        %5410 = vmatmul.bf16.gmra.mxu0 %v811
        %v5411 = vpop.f32.mrf.mxu0
        %v5412 = vadd.f32 %v5323, %v5411
        %v5413 = vpop.f32.mrf.mxu0
        %v5414 = vadd.f32 %v5325, %v5413
        %5415 = vdwg.mxu0
        %5416 = vmatpush.bf16.msra.mxu0 %v2012
        %5417 = vmatpush.bf16.msra.mxu0 %v2000
        %5418 = vmatpush.bf16.msra.mxu0 %v1988
        %5419 = vmatpush.bf16.msra.mxu0 %v1976
        %5420 = vmatpush.bf16.msra.mxu0 %v1964
        %5421 = vmatpush.bf16.msra.mxu0 %v1952
        %5422 = vmatpush.bf16.msra.mxu0 %v1940
        %5423 = vmatpush.bf16.msra.mxu0 %v1928
        %5424 = vmatmul.bf16.gmra.mxu0 %v767
        %v5425 = vpop.f32.mrf.mxu0
        %v5426 = vadd.f32 %v5337, %v5425
        %v5427 = vpop.f32.mrf.mxu0
        %v5428 = vadd.f32 %v5339, %v5427
        %5429 = vmatmul.bf16.gmra.mxu0 %v770
        %v5430 = vpop.f32.mrf.mxu0
        %v5431 = vadd.f32 %v5342, %v5430
        %v5432 = vpop.f32.mrf.mxu0
        %v5433 = vadd.f32 %v5344, %v5432
        %5434 = vmatmul.bf16.gmra.mxu0 %v773
        %v5435 = vpop.f32.mrf.mxu0
        %v5436 = vadd.f32 %v5347, %v5435
        %v5437 = vpop.f32.mrf.mxu0
        %v5438 = vadd.f32 %v5349, %v5437
        %5439 = vmatmul.bf16.gmra.mxu0 %v776
        %v5440 = vpop.f32.mrf.mxu0
        %v5441 = vadd.f32 %v5352, %v5440
        %v5442 = vpop.f32.mrf.mxu0
        %v5443 = vadd.f32 %v5354, %v5442
        %5444 = vmatmul.bf16.gmra.mxu0 %v779
        %v5445 = vpop.f32.mrf.mxu0
        %v5446 = vadd.f32 %v5357, %v5445
        %v5447 = vpop.f32.mrf.mxu0
        %v5448 = vadd.f32 %v5359, %v5447
        %5449 = vmatmul.bf16.gmra.mxu0 %v782
        %v5450 = vpop.f32.mrf.mxu0
        %v5451 = vadd.f32 %v5362, %v5450
        %v5452 = vpop.f32.mrf.mxu0
        %v5453 = vadd.f32 %v5364, %v5452
        %5454 = vmatmul.bf16.gmra.mxu0 %v785
        %v5455 = vpop.f32.mrf.mxu0
        %v5456 = vadd.f32 %v5367, %v5455
        %v5457 = vpop.f32.mrf.mxu0
        %v5458 = vadd.f32 %v5369, %v5457
        %5459 = vmatmul.bf16.gmra.mxu0 %v788
        %v5460 = vpop.f32.mrf.mxu0
        %v5461 = vadd.f32 %v5372, %v5460
        %v5462 = vpop.f32.mrf.mxu0
        %v5463 = vadd.f32 %v5374, %v5462
        %5464 = vmatmul.bf16.gmra.mxu0 %v791
        %v5465 = vpop.f32.mrf.mxu0
        %v5466 = vadd.f32 %v5377, %v5465
        %v5467 = vpop.f32.mrf.mxu0
        %v5468 = vadd.f32 %v5379, %v5467
        %5469 = vmatmul.bf16.gmra.mxu0 %v794
        %v5470 = vpop.f32.mrf.mxu0
        %v5471 = vadd.f32 %v5382, %v5470
        %v5472 = vpop.f32.mrf.mxu0
        %v5473 = vadd.f32 %v5384, %v5472
        %5474 = vmatmul.bf16.gmra.mxu0 %v797
        %v5475 = vpop.f32.mrf.mxu0
        %v5476 = vadd.f32 %v5387, %v5475
        %v5477 = vpop.f32.mrf.mxu0
        %v5478 = vadd.f32 %v5389, %v5477
        %5479 = vmatmul.bf16.gmra.mxu0 %v800
        %v5480 = vpop.f32.mrf.mxu0
        %v5481 = vadd.f32 %v5392, %v5480
        %v5482 = vpop.f32.mrf.mxu0
        %v5483 = vadd.f32 %v5394, %v5482
        %5484 = vmatmul.bf16.gmra.mxu0 %v803
        %v5485 = vpop.f32.mrf.mxu0
        %v5486 = vadd.f32 %v5397, %v5485
        %v5487 = vpop.f32.mrf.mxu0
        %v5488 = vadd.f32 %v5399, %v5487
        %5489 = vmatmul.bf16.gmra.mxu0 %v806
        %v5490 = vpop.f32.mrf.mxu0
        %v5491 = vadd.f32 %v5402, %v5490
        %v5492 = vpop.f32.mrf.mxu0
        %v5493 = vadd.f32 %v5404, %v5492
        %5494 = vmatmul.bf16.gmra.mxu0 %v809
        %v5495 = vpop.f32.mrf.mxu0
        %v5496 = vadd.f32 %v5407, %v5495
        %v5497 = vpop.f32.mrf.mxu0
        %v5498 = vadd.f32 %v5409, %v5497
        %5499 = vmatmul.bf16.gmra.mxu0 %v812
        %v5500 = vpop.f32.mrf.mxu0
        %v5501 = vadd.f32 %v5412, %v5500
        %v5502 = vpop.f32.mrf.mxu0
        %v5503 = vadd.f32 %v5414, %v5502
        %5504 = vdwg.mxu0
        %v5505 = vpack.c.bf16 %v2756, %v2489
        %v5506 = vpack.c.bf16 %v3290, %v3023
        %v5507 = vpack.c.bf16 %v3824, %v3557
        %v5508 = vpack.c.bf16 %v4358, %v4091
        %v5509 = vpack.c.bf16 %v4892, %v4625
        %v5510 = vpack.c.bf16 %v5426, %v5159
        %v5511 = vpack.c.bf16 %v2758, %v2491
        %v5512 = vpack.c.bf16 %v3292, %v3025
        %v5513 = vpack.c.bf16 %v3826, %v3559
        %v5514 = vpack.c.bf16 %v4360, %v4093
        %v5515 = vpack.c.bf16 %v4894, %v4627
        %v5516 = vpack.c.bf16 %v5428, %v5161
        %v5517 = vpack.c.bf16 %v2761, %v2494
        %v5518 = vpack.c.bf16 %v3295, %v3028
        %v5519 = vpack.c.bf16 %v3829, %v3562
        %v5520 = vpack.c.bf16 %v4363, %v4096
        %v5521 = vpack.c.bf16 %v4897, %v4630
        %v5522 = vpack.c.bf16 %v5431, %v5164
        %v5523 = vpack.c.bf16 %v2763, %v2496
        %v5524 = vpack.c.bf16 %v3297, %v3030
        %v5525 = vpack.c.bf16 %v3831, %v3564
        %v5526 = vpack.c.bf16 %v4365, %v4098
        %v5527 = vpack.c.bf16 %v4899, %v4632
        %v5528 = vpack.c.bf16 %v5433, %v5166
        %v5529 = vpack.c.bf16 %v2766, %v2499
        %v5530 = vpack.c.bf16 %v3300, %v3033
        %v5531 = vpack.c.bf16 %v3834, %v3567
        %v5532 = vpack.c.bf16 %v4368, %v4101
        %v5533 = vpack.c.bf16 %v4902, %v4635
        %v5534 = vpack.c.bf16 %v5436, %v5169
        %v5535 = vpack.c.bf16 %v2768, %v2501
        %v5536 = vpack.c.bf16 %v3302, %v3035
        %v5537 = vpack.c.bf16 %v3836, %v3569
        %v5538 = vpack.c.bf16 %v4370, %v4103
        %v5539 = vpack.c.bf16 %v4904, %v4637
        %v5540 = vpack.c.bf16 %v5438, %v5171
        %v5541 = vpack.c.bf16 %v2771, %v2504
        %v5542 = vpack.c.bf16 %v3305, %v3038
        %v5543 = vpack.c.bf16 %v3839, %v3572
        %v5544 = vpack.c.bf16 %v4373, %v4106
        %v5545 = vpack.c.bf16 %v4907, %v4640
        %v5546 = vpack.c.bf16 %v5441, %v5174
        %v5547 = vpack.c.bf16 %v2773, %v2506
        %v5548 = vpack.c.bf16 %v3307, %v3040
        %v5549 = vpack.c.bf16 %v3841, %v3574
        %v5550 = vpack.c.bf16 %v4375, %v4108
        %v5551 = vpack.c.bf16 %v4909, %v4642
        %v5552 = vpack.c.bf16 %v5443, %v5176
        %v5553 = vpack.c.bf16 %v2776, %v2509
        %v5554 = vpack.c.bf16 %v3310, %v3043
        %v5555 = vpack.c.bf16 %v3844, %v3577
        %v5556 = vpack.c.bf16 %v4378, %v4111
        %v5557 = vpack.c.bf16 %v4912, %v4645
        %v5558 = vpack.c.bf16 %v5446, %v5179
        %v5559 = vpack.c.bf16 %v2778, %v2511
        %v5560 = vpack.c.bf16 %v3312, %v3045
        %v5561 = vpack.c.bf16 %v3846, %v3579
        %v5562 = vpack.c.bf16 %v4380, %v4113
        %v5563 = vpack.c.bf16 %v4914, %v4647
        %v5564 = vpack.c.bf16 %v5448, %v5181
        %v5565 = vpack.c.bf16 %v2781, %v2514
        %v5566 = vpack.c.bf16 %v3315, %v3048
        %v5567 = vpack.c.bf16 %v3849, %v3582
        %v5568 = vpack.c.bf16 %v4383, %v4116
        %v5569 = vpack.c.bf16 %v4917, %v4650
        %v5570 = vpack.c.bf16 %v5451, %v5184
        %v5571 = vpack.c.bf16 %v2783, %v2516
        %v5572 = vpack.c.bf16 %v3317, %v3050
        %v5573 = vpack.c.bf16 %v3851, %v3584
        %v5574 = vpack.c.bf16 %v4385, %v4118
        %v5575 = vpack.c.bf16 %v4919, %v4652
        %v5576 = vpack.c.bf16 %v5453, %v5186
        %v5577 = vpack.c.bf16 %v2786, %v2519
        %v5578 = vpack.c.bf16 %v3320, %v3053
        %v5579 = vpack.c.bf16 %v3854, %v3587
        %v5580 = vpack.c.bf16 %v4388, %v4121
        %v5581 = vpack.c.bf16 %v4922, %v4655
        %v5582 = vpack.c.bf16 %v5456, %v5189
        %v5583 = vpack.c.bf16 %v2788, %v2521
        %v5584 = vpack.c.bf16 %v3322, %v3055
        %v5585 = vpack.c.bf16 %v3856, %v3589
        %v5586 = vpack.c.bf16 %v4390, %v4123
        %v5587 = vpack.c.bf16 %v4924, %v4657
        %v5588 = vpack.c.bf16 %v5458, %v5191
        %v5589 = vpack.c.bf16 %v2791, %v2524
        %v5590 = vpack.c.bf16 %v3325, %v3058
        %v5591 = vpack.c.bf16 %v3859, %v3592
        %v5592 = vpack.c.bf16 %v4393, %v4126
        %v5593 = vpack.c.bf16 %v4927, %v4660
        %v5594 = vpack.c.bf16 %v5461, %v5194
        %v5595 = vpack.c.bf16 %v2793, %v2526
        %v5596 = vpack.c.bf16 %v3327, %v3060
        %v5597 = vpack.c.bf16 %v3861, %v3594
        %v5598 = vpack.c.bf16 %v4395, %v4128
        %v5599 = vpack.c.bf16 %v4929, %v4662
        %v5600 = vpack.c.bf16 %v5463, %v5196
        %v5601 = vpack.c.bf16 %v2796, %v2529
        %v5602 = vpack.c.bf16 %v3330, %v3063
        %v5603 = vpack.c.bf16 %v3864, %v3597
        %v5604 = vpack.c.bf16 %v4398, %v4131
        %v5605 = vpack.c.bf16 %v4932, %v4665
        %v5606 = vpack.c.bf16 %v5466, %v5199
        %v5607 = vpack.c.bf16 %v2798, %v2531
        %v5608 = vpack.c.bf16 %v3332, %v3065
        %v5609 = vpack.c.bf16 %v3866, %v3599
        %v5610 = vpack.c.bf16 %v4400, %v4133
        %v5611 = vpack.c.bf16 %v4934, %v4667
        %v5612 = vpack.c.bf16 %v5468, %v5201
        %v5613 = vpack.c.bf16 %v2801, %v2534
        %v5614 = vpack.c.bf16 %v3335, %v3068
        %v5615 = vpack.c.bf16 %v3869, %v3602
        %v5616 = vpack.c.bf16 %v4403, %v4136
        %v5617 = vpack.c.bf16 %v4937, %v4670
        %v5618 = vpack.c.bf16 %v5471, %v5204
        %v5619 = vpack.c.bf16 %v2803, %v2536
        %v5620 = vpack.c.bf16 %v3337, %v3070
        %v5621 = vpack.c.bf16 %v3871, %v3604
        %v5622 = vpack.c.bf16 %v4405, %v4138
        %v5623 = vpack.c.bf16 %v4939, %v4672
        %v5624 = vpack.c.bf16 %v5473, %v5206
        %v5625 = vpack.c.bf16 %v2806, %v2539
        %v5626 = vpack.c.bf16 %v3340, %v3073
        %v5627 = vpack.c.bf16 %v3874, %v3607
        %v5628 = vpack.c.bf16 %v4408, %v4141
        %v5629 = vpack.c.bf16 %v4942, %v4675
        %v5630 = vpack.c.bf16 %v5476, %v5209
        %v5631 = vpack.c.bf16 %v2808, %v2541
        %v5632 = vpack.c.bf16 %v3342, %v3075
        %v5633 = vpack.c.bf16 %v3876, %v3609
        %v5634 = vpack.c.bf16 %v4410, %v4143
        %v5635 = vpack.c.bf16 %v4944, %v4677
        %v5636 = vpack.c.bf16 %v5478, %v5211
        %v5637 = vpack.c.bf16 %v2811, %v2544
        %v5638 = vpack.c.bf16 %v3345, %v3078
        %v5639 = vpack.c.bf16 %v3879, %v3612
        %v5640 = vpack.c.bf16 %v4413, %v4146
        %v5641 = vpack.c.bf16 %v4947, %v4680
        %v5642 = vpack.c.bf16 %v5481, %v5214
        %v5643 = vpack.c.bf16 %v2813, %v2546
        %v5644 = vpack.c.bf16 %v3347, %v3080
        %v5645 = vpack.c.bf16 %v3881, %v3614
        %v5646 = vpack.c.bf16 %v4415, %v4148
        %v5647 = vpack.c.bf16 %v4949, %v4682
        %v5648 = vpack.c.bf16 %v5483, %v5216
        %v5649 = vpack.c.bf16 %v2816, %v2549
        %v5650 = vpack.c.bf16 %v3350, %v3083
        %v5651 = vpack.c.bf16 %v3884, %v3617
        %v5652 = vpack.c.bf16 %v4418, %v4151
        %v5653 = vpack.c.bf16 %v4952, %v4685
        %v5654 = vpack.c.bf16 %v5486, %v5219
        %v5655 = vpack.c.bf16 %v2818, %v2551
        %v5656 = vpack.c.bf16 %v3352, %v3085
        %v5657 = vpack.c.bf16 %v3886, %v3619
        %v5658 = vpack.c.bf16 %v4420, %v4153
        %v5659 = vpack.c.bf16 %v4954, %v4687
        %v5660 = vpack.c.bf16 %v5488, %v5221
        %v5661 = vpack.c.bf16 %v2821, %v2554
        %v5662 = vpack.c.bf16 %v3355, %v3088
        %v5663 = vpack.c.bf16 %v3889, %v3622
        %v5664 = vpack.c.bf16 %v4423, %v4156
        %v5665 = vpack.c.bf16 %v4957, %v4690
        %v5666 = vpack.c.bf16 %v5491, %v5224
        %v5667 = vpack.c.bf16 %v2823, %v2556
        %v5668 = vpack.c.bf16 %v3357, %v3090
        %v5669 = vpack.c.bf16 %v3891, %v3624
        %v5670 = vpack.c.bf16 %v4425, %v4158
        %v5671 = vpack.c.bf16 %v4959, %v4692
        %v5672 = vpack.c.bf16 %v5493, %v5226
        %v5673 = vpack.c.bf16 %v2826, %v2559
        %v5674 = vpack.c.bf16 %v3360, %v3093
        %v5675 = vpack.c.bf16 %v3894, %v3627
        %v5676 = vpack.c.bf16 %v4428, %v4161
        %v5677 = vpack.c.bf16 %v4962, %v4695
        %v5678 = vpack.c.bf16 %v5496, %v5229
        %v5679 = vpack.c.bf16 %v2828, %v2561
        %v5680 = vpack.c.bf16 %v3362, %v3095
        %v5681 = vpack.c.bf16 %v3896, %v3629
        %v5682 = vpack.c.bf16 %v4430, %v4163
        %v5683 = vpack.c.bf16 %v4964, %v4697
        %v5684 = vpack.c.bf16 %v5498, %v5231
        %v5685 = vpack.c.bf16 %v2831, %v2564
        %v5686 = vpack.c.bf16 %v3365, %v3098
        %v5687 = vpack.c.bf16 %v3899, %v3632
        %v5688 = vpack.c.bf16 %v4433, %v4166
        %v5689 = vpack.c.bf16 %v4967, %v4700
        %v5690 = vpack.c.bf16 %v5501, %v5234
        %v5691 = vpack.c.bf16 %v2833, %v2566
        %v5692 = vpack.c.bf16 %v3367, %v3100
        %v5693 = vpack.c.bf16 %v3901, %v3634
        %v5694 = vpack.c.bf16 %v4435, %v4168
        %v5695 = vpack.c.bf16 %v4969, %v4702
        %v5696 = vpack.c.bf16 %v5503, %v5236
        %5697 = vst [vmem:[%s222] sm:$0xff] %v5505
        %5698 = vst [vmem:[%s222 + $0x8] sm:$0xff] %v5506
        %5699 = vst [vmem:[%s222 + $0x10] sm:$0xff] %v5507
        %5700 = vst [vmem:[%s222 + $0x18] sm:$0xff] %v5508
        %5701 = vst [vmem:[%s222 + $0x20] sm:$0xff] %v5509
        %5702 = vst [vmem:[%s222 + $0x28] sm:$0xff] %v5510
        %5703 = vst [vmem:[%s222 + $0x30] sm:$0xff] %v5511
        %5704 = vst [vmem:[%s222 + $0x38] sm:$0xff] %v5512
        %5705 = vst [vmem:[%s222 + $0x40] sm:$0xff] %v5513
        %5706 = vst [vmem:[%s222 + $0x48] sm:$0xff] %v5514
        %5707 = vst [vmem:[%s222 + $0x50] sm:$0xff] %v5515
        %5708 = vst [vmem:[%s222 + $0x58] sm:$0xff] %v5516
        %5709 = vst [vmem:[%s222 + $0x60] sm:$0xff] %v5517
        %5710 = vst [vmem:[%s222 + $0x68] sm:$0xff] %v5518
        %5711 = vst [vmem:[%s222 + $0x70] sm:$0xff] %v5519
        %5712 = vst [vmem:[%s222 + $0x78] sm:$0xff] %v5520
        %5713 = vst [vmem:[%s222 + $0x80] sm:$0xff] %v5521
        %5714 = vst [vmem:[%s222 + $0x88] sm:$0xff] %v5522
        %5715 = vst [vmem:[%s222 + $0x90] sm:$0xff] %v5523
        %5716 = vst [vmem:[%s222 + $0x98] sm:$0xff] %v5524
        %5717 = vst [vmem:[%s222 + $0xa0] sm:$0xff] %v5525
        %5718 = vst [vmem:[%s222 + $0xa8] sm:$0xff] %v5526
        %5719 = vst [vmem:[%s222 + $0xb0] sm:$0xff] %v5527
        %5720 = vst [vmem:[%s222 + $0xb8] sm:$0xff] %v5528
        %5721 = vst [vmem:[%s222 + $0xc0] sm:$0xff] %v5529
        %5722 = vst [vmem:[%s222 + $0xc8] sm:$0xff] %v5530
        %5723 = vst [vmem:[%s222 + $0xd0] sm:$0xff] %v5531
        %5724 = vst [vmem:[%s222 + $0xd8] sm:$0xff] %v5532
        %5725 = vst [vmem:[%s222 + $0xe0] sm:$0xff] %v5533
        %5726 = vst [vmem:[%s222 + $0xe8] sm:$0xff] %v5534
        %5727 = vst [vmem:[%s222 + $0xf0] sm:$0xff] %v5535
        %5728 = vst [vmem:[%s222 + $0xf8] sm:$0xff] %v5536
        %5729 = vst [vmem:[%s222 + $0x100] sm:$0xff] %v5537
        %5730 = vst [vmem:[%s222 + $0x108] sm:$0xff] %v5538
        %5731 = vst [vmem:[%s222 + $0x110] sm:$0xff] %v5539
        %5732 = vst [vmem:[%s222 + $0x118] sm:$0xff] %v5540
        %5733 = vst [vmem:[%s222 + $0x120] sm:$0xff] %v5541
        %5734 = vst [vmem:[%s222 + $0x128] sm:$0xff] %v5542
        %5735 = vst [vmem:[%s222 + $0x130] sm:$0xff] %v5543
        %5736 = vst [vmem:[%s222 + $0x138] sm:$0xff] %v5544
        %5737 = vst [vmem:[%s222 + $0x140] sm:$0xff] %v5545
        %5738 = vst [vmem:[%s222 + $0x148] sm:$0xff] %v5546
        %5739 = vst [vmem:[%s222 + $0x150] sm:$0xff] %v5547
        %5740 = vst [vmem:[%s222 + $0x158] sm:$0xff] %v5548
        %5741 = vst [vmem:[%s222 + $0x160] sm:$0xff] %v5549
        %5742 = vst [vmem:[%s222 + $0x168] sm:$0xff] %v5550
        %5743 = vst [vmem:[%s222 + $0x170] sm:$0xff] %v5551
        %5744 = vst [vmem:[%s222 + $0x178] sm:$0xff] %v5552
        %5745 = vst [vmem:[%s222 + $0x180] sm:$0xff] %v5553
        %5746 = vst [vmem:[%s222 + $0x188] sm:$0xff] %v5554
        %5747 = vst [vmem:[%s222 + $0x190] sm:$0xff] %v5555
        %5748 = vst [vmem:[%s222 + $0x198] sm:$0xff] %v5556
        %5749 = vst [vmem:[%s222 + $0x1a0] sm:$0xff] %v5557
        %5750 = vst [vmem:[%s222 + $0x1a8] sm:$0xff] %v5558
        %5751 = vst [vmem:[%s222 + $0x1b0] sm:$0xff] %v5559
        %5752 = vst [vmem:[%s222 + $0x1b8] sm:$0xff] %v5560
        %5753 = vst [vmem:[%s222 + $0x1c0] sm:$0xff] %v5561
        %5754 = vst [vmem:[%s222 + $0x1c8] sm:$0xff] %v5562
        %5755 = vst [vmem:[%s222 + $0x1d0] sm:$0xff] %v5563
        %5756 = vst [vmem:[%s222 + $0x1d8] sm:$0xff] %v5564
        %5757 = vst [vmem:[%s222 + $0x1e0] sm:$0xff] %v5565
        %5758 = vst [vmem:[%s222 + $0x1e8] sm:$0xff] %v5566
        %5759 = vst [vmem:[%s222 + $0x1f0] sm:$0xff] %v5567
        %5760 = vst [vmem:[%s222 + $0x1f8] sm:$0xff] %v5568
        %5761 = vst [vmem:[%s222 + $0x200] sm:$0xff] %v5569
        %5762 = vst [vmem:[%s222 + $0x208] sm:$0xff] %v5570
        %5763 = vst [vmem:[%s222 + $0x210] sm:$0xff] %v5571
        %5764 = vst [vmem:[%s222 + $0x218] sm:$0xff] %v5572
        %5765 = vst [vmem:[%s222 + $0x220] sm:$0xff] %v5573
        %5766 = vst [vmem:[%s222 + $0x228] sm:$0xff] %v5574
        %5767 = vst [vmem:[%s222 + $0x230] sm:$0xff] %v5575
        %5768 = vst [vmem:[%s222 + $0x238] sm:$0xff] %v5576
        %5769 = vst [vmem:[%s222 + $0x240] sm:$0xff] %v5577
        %5770 = vst [vmem:[%s222 + $0x248] sm:$0xff] %v5578
        %5771 = vst [vmem:[%s222 + $0x250] sm:$0xff] %v5579
        %5772 = vst [vmem:[%s222 + $0x258] sm:$0xff] %v5580
        %5773 = vst [vmem:[%s222 + $0x260] sm:$0xff] %v5581
        %5774 = vst [vmem:[%s222 + $0x268] sm:$0xff] %v5582
        %5775 = vst [vmem:[%s222 + $0x270] sm:$0xff] %v5583
        %5776 = vst [vmem:[%s222 + $0x278] sm:$0xff] %v5584
        %5777 = vst [vmem:[%s222 + $0x280] sm:$0xff] %v5585
        %5778 = vst [vmem:[%s222 + $0x288] sm:$0xff] %v5586
        %5779 = vst [vmem:[%s222 + $0x290] sm:$0xff] %v5587
        %5780 = vst [vmem:[%s222 + $0x298] sm:$0xff] %v5588
        %5781 = vst [vmem:[%s222 + $0x2a0] sm:$0xff] %v5589
        %5782 = vst [vmem:[%s222 + $0x2a8] sm:$0xff] %v5590
        %5783 = vst [vmem:[%s222 + $0x2b0] sm:$0xff] %v5591
        %5784 = vst [vmem:[%s222 + $0x2b8] sm:$0xff] %v5592
        %5785 = vst [vmem:[%s222 + $0x2c0] sm:$0xff] %v5593
        %5786 = vst [vmem:[%s222 + $0x2c8] sm:$0xff] %v5594
        %5787 = vst [vmem:[%s222 + $0x2d0] sm:$0xff] %v5595
        %5788 = vst [vmem:[%s222 + $0x2d8] sm:$0xff] %v5596
        %5789 = vst [vmem:[%s222 + $0x2e0] sm:$0xff] %v5597
        %5790 = vst [vmem:[%s222 + $0x2e8] sm:$0xff] %v5598
        %5791 = vst [vmem:[%s222 + $0x2f0] sm:$0xff] %v5599
        %5792 = vst [vmem:[%s222 + $0x2f8] sm:$0xff] %v5600
        %5793 = vst [vmem:[%s222 + $0x300] sm:$0xff] %v5601
        %5794 = vst [vmem:[%s222 + $0x308] sm:$0xff] %v5602
        %5795 = vst [vmem:[%s222 + $0x310] sm:$0xff] %v5603
        %5796 = vst [vmem:[%s222 + $0x318] sm:$0xff] %v5604
        %5797 = vst [vmem:[%s222 + $0x320] sm:$0xff] %v5605
        %5798 = vst [vmem:[%s222 + $0x328] sm:$0xff] %v5606
        %5799 = vst [vmem:[%s222 + $0x330] sm:$0xff] %v5607
        %5800 = vst [vmem:[%s222 + $0x338] sm:$0xff] %v5608
        %5801 = vst [vmem:[%s222 + $0x340] sm:$0xff] %v5609
        %5802 = vst [vmem:[%s222 + $0x348] sm:$0xff] %v5610
        %5803 = vst [vmem:[%s222 + $0x350] sm:$0xff] %v5611
        %5804 = vst [vmem:[%s222 + $0x358] sm:$0xff] %v5612
        %5805 = vst [vmem:[%s222 + $0x360] sm:$0xff] %v5613
        %5806 = vst [vmem:[%s222 + $0x368] sm:$0xff] %v5614
        %5807 = vst [vmem:[%s222 + $0x370] sm:$0xff] %v5615
        %5808 = vst [vmem:[%s222 + $0x378] sm:$0xff] %v5616
        %5809 = vst [vmem:[%s222 + $0x380] sm:$0xff] %v5617
        %5810 = vst [vmem:[%s222 + $0x388] sm:$0xff] %v5618
        %5811 = vst [vmem:[%s222 + $0x390] sm:$0xff] %v5619
        %5812 = vst [vmem:[%s222 + $0x398] sm:$0xff] %v5620
        %5813 = vst [vmem:[%s222 + $0x3a0] sm:$0xff] %v5621
        %5814 = vst [vmem:[%s222 + $0x3a8] sm:$0xff] %v5622
        %5815 = vst [vmem:[%s222 + $0x3b0] sm:$0xff] %v5623
        %5816 = vst [vmem:[%s222 + $0x3b8] sm:$0xff] %v5624
        %5817 = vst [vmem:[%s222 + $0x3c0] sm:$0xff] %v5625
        %5818 = vst [vmem:[%s222 + $0x3c8] sm:$0xff] %v5626
        %5819 = vst [vmem:[%s222 + $0x3d0] sm:$0xff] %v5627
        %5820 = vst [vmem:[%s222 + $0x3d8] sm:$0xff] %v5628
        %5821 = vst [vmem:[%s222 + $0x3e0] sm:$0xff] %v5629
        %5822 = vst [vmem:[%s222 + $0x3e8] sm:$0xff] %v5630
        %5823 = vst [vmem:[%s222 + $0x3f0] sm:$0xff] %v5631
        %5824 = vst [vmem:[%s222 + $0x3f8] sm:$0xff] %v5632
        %5825 = vst [vmem:[%s222 + $0x400] sm:$0xff] %v5633
        %5826 = vst [vmem:[%s222 + $0x408] sm:$0xff] %v5634
        %5827 = vst [vmem:[%s222 + $0x410] sm:$0xff] %v5635
        %5828 = vst [vmem:[%s222 + $0x418] sm:$0xff] %v5636
        %5829 = vst [vmem:[%s222 + $0x420] sm:$0xff] %v5637
        %5830 = vst [vmem:[%s222 + $0x428] sm:$0xff] %v5638
        %5831 = vst [vmem:[%s222 + $0x430] sm:$0xff] %v5639
        %5832 = vst [vmem:[%s222 + $0x438] sm:$0xff] %v5640
        %5833 = vst [vmem:[%s222 + $0x440] sm:$0xff] %v5641
        %5834 = vst [vmem:[%s222 + $0x448] sm:$0xff] %v5642
        %5835 = vst [vmem:[%s222 + $0x450] sm:$0xff] %v5643
        %5836 = vst [vmem:[%s222 + $0x458] sm:$0xff] %v5644
        %5837 = vst [vmem:[%s222 + $0x460] sm:$0xff] %v5645
        %5838 = vst [vmem:[%s222 + $0x468] sm:$0xff] %v5646
        %5839 = vst [vmem:[%s222 + $0x470] sm:$0xff] %v5647
        %5840 = vst [vmem:[%s222 + $0x478] sm:$0xff] %v5648
        %5841 = vst [vmem:[%s222 + $0x480] sm:$0xff] %v5649
        %5842 = vst [vmem:[%s222 + $0x488] sm:$0xff] %v5650
        %5843 = vst [vmem:[%s222 + $0x490] sm:$0xff] %v5651
        %5844 = vst [vmem:[%s222 + $0x498] sm:$0xff] %v5652
        %5845 = vst [vmem:[%s222 + $0x4a0] sm:$0xff] %v5653
        %5846 = vst [vmem:[%s222 + $0x4a8] sm:$0xff] %v5654
        %5847 = vst [vmem:[%s222 + $0x4b0] sm:$0xff] %v5655
        %5848 = vst [vmem:[%s222 + $0x4b8] sm:$0xff] %v5656
        %5849 = vst [vmem:[%s222 + $0x4c0] sm:$0xff] %v5657
        %5850 = vst [vmem:[%s222 + $0x4c8] sm:$0xff] %v5658
        %5851 = vst [vmem:[%s222 + $0x4d0] sm:$0xff] %v5659
        %5852 = vst [vmem:[%s222 + $0x4d8] sm:$0xff] %v5660
        %5853 = vst [vmem:[%s222 + $0x4e0] sm:$0xff] %v5661
        %5854 = vst [vmem:[%s222 + $0x4e8] sm:$0xff] %v5662
        %5855 = vst [vmem:[%s222 + $0x4f0] sm:$0xff] %v5663
        %5856 = vst [vmem:[%s222 + $0x4f8] sm:$0xff] %v5664
        %5857 = vst [vmem:[%s222 + $0x500] sm:$0xff] %v5665
        %5858 = vst [vmem:[%s222 + $0x508] sm:$0xff] %v5666
        %5859 = vst [vmem:[%s222 + $0x510] sm:$0xff] %v5667
        %5860 = vst [vmem:[%s222 + $0x518] sm:$0xff] %v5668
        %5861 = vst [vmem:[%s222 + $0x520] sm:$0xff] %v5669
        %5862 = vst [vmem:[%s222 + $0x528] sm:$0xff] %v5670
        %5863 = vst [vmem:[%s222 + $0x530] sm:$0xff] %v5671
        %5864 = vst [vmem:[%s222 + $0x538] sm:$0xff] %v5672
        %5865 = vst [vmem:[%s222 + $0x540] sm:$0xff] %v5673
        %5866 = vst [vmem:[%s222 + $0x548] sm:$0xff] %v5674
        %5867 = vst [vmem:[%s222 + $0x550] sm:$0xff] %v5675
        %5868 = vst [vmem:[%s222 + $0x558] sm:$0xff] %v5676
        %5869 = vst [vmem:[%s222 + $0x560] sm:$0xff] %v5677
        %5870 = vst [vmem:[%s222 + $0x568] sm:$0xff] %v5678
        %5871 = vst [vmem:[%s222 + $0x570] sm:$0xff] %v5679
        %5872 = vst [vmem:[%s222 + $0x578] sm:$0xff] %v5680
        %5873 = vst [vmem:[%s222 + $0x580] sm:$0xff] %v5681
        %5874 = vst [vmem:[%s222 + $0x588] sm:$0xff] %v5682
        %5875 = vst [vmem:[%s222 + $0x590] sm:$0xff] %v5683
        %5876 = vst [vmem:[%s222 + $0x598] sm:$0xff] %v5684
        %5877 = vst [vmem:[%s222 + $0x5a0] sm:$0xff] %v5685
        %5878 = vst [vmem:[%s222 + $0x5a8] sm:$0xff] %v5686
        %5879 = vst [vmem:[%s222 + $0x5b0] sm:$0xff] %v5687
        %5880 = vst [vmem:[%s222 + $0x5b8] sm:$0xff] %v5688
        %5881 = vst [vmem:[%s222 + $0x5c0] sm:$0xff] %v5689
        %5882 = vst [vmem:[%s222 + $0x5c8] sm:$0xff] %v5690
        %5883 = vst [vmem:[%s222 + $0x5d0] sm:$0xff] %v5691
        %5884 = vst [vmem:[%s222 + $0x5d8] sm:$0xff] %v5692
        %5885 = vst [vmem:[%s222 + $0x5e0] sm:$0xff] %v5693
        %5886 = vst [vmem:[%s222 + $0x5e8] sm:$0xff] %v5694
        %5887 = vst [vmem:[%s222 + $0x5f0] sm:$0xff] %v5695
        %5888 = vst [vmem:[%s222 + $0x5f8] sm:$0xff] %v5696
        %s5889 = sand.u32 %s97, 1
        %s5890 = scalar_lea.sflag [#allocation4], %s5889
        %s5891 = sand.u32 %s97, 1
        %s5892 = smul.addr %s5891, 1536
        %s5893 = scalar_lea.vmem [#allocation8], %s5892
        // Predicated region
        $region45: #{tpu_custom_call.1} parent=31 // pred_check
          %p5894 = pneg %p107
        $region46: #{tpu_custom_call.1} parent=31 // pred_check_branch
          %5896 = sbr.rel (%p5894) target = $region48
        $region47: #{tpu_custom_call.1} parent=31 // pred_region
          %s5897 = smul.u32 32, %s21
          %5899 = vsyncadd %s5890, 0
          %s5900 = smul.addr %s5897, 12
          %s5901 = smul.addr %s5900, 4
          %s5902 = scalar_lea.hbm %s3, %s5901
          %s5903 = sshll.u32 %s5893, 4
          %s5904 = int_to_ptr.vmem [resolvable:$true] %s5903
          %s5905 = sshll.u32 %s5902, 4
          %s5906 = int_to_ptr.hbm [resolvable:$true] %s5905
          %5911 = dma.vmem_to_hbm [thread:$0]  %s5904, 24576, %s5906, %s5890, 768, 768, 48
        $region48: #{tpu_custom_call.1} parent=31 // pred_fallthru
          _
      $region32: #{tpu_custom_call.1} parent=5 // pred_fallthru
        _
      %p5912 = scmp.le.s32.totalorder 2, %s16
      // Predicated region
      $region49: #{tpu_custom_call.1} parent=5 // pred_check
        %p5913 = pneg %p5912
      $region50: #{tpu_custom_call.1} parent=5 // pred_check_branch
        %5915 = sbr.rel (%p5913) target = $region52
      $region51: #{tpu_custom_call.1} parent=5 // pred_region
        %s5916 = ssub.s32 %s16, 2
        // Predicated region
        $region53: #{tpu_custom_call.1} parent=51 // pred_check
          %p5917 = pneg %p113
        $region54: #{tpu_custom_call.1} parent=51 // pred_check_branch
          %5919 = sbr.rel (%p5917) target = $region56
        $region55: #{tpu_custom_call.1} parent=51 // pred_region
          %s5920 = sand.u32 %s98, 1
          %s5921 = scalar_lea.sflag [#allocation4], %s5920
          %s5922 = sand.u32 %s98, 1
          %s5923 = smul.addr %s5922, 1536
          %s5924 = scalar_lea.vmem [#allocation8], %s5923
          %5926 = dma.done %s5921, 24576
        $region56: #{tpu_custom_call.1} parent=51 // pred_fallthru
          _
      $region52: #{tpu_custom_call.1} parent=5 // pred_fallthru
        _
    $region6: #{tpu_custom_call.1} parent=1 // loop_footer
      %s20 = sadd.s32 1, %s16
    $region7: #{tpu_custom_call.1} parent=1 // loop_footer_branch
      %15 = sbr.rel target = $region3
    $region8: #{tpu_custom_call.1} parent=1 // loop_exit
      _
    %5927 = vsyncpa [#allocation3], 1
    %s5928 = scalar_lea.sflag [#allocation3], 1
    %5929 = vsyncpa %s5928, 1
    %5930 = vsyncpa [#allocation6], 1
    %5931 = vsyncpa [#allocation4], 1
    %s5932 = scalar_lea.sflag [#allocation4], 1
    %5933 = vsyncpa %s5932, 1

</llo_original>
